<compile_context>
chip_gen: v5e
topology: v5e:2x2
jax: 0.10.0
libtpu: 0.0.40
codegen_flags: <defaults>
</compile_context>

<pallas_src>
import math

import jax
import jax.numpy as jnp
from jax import lax
from jax.experimental import pallas as pl
from jax.experimental.pallas import tpu as pltpu

# ---- model dimensions (small-shape version of the module) -------------------
B = 2            # batch (games)
S = 8            # sequence length (players)
RATING = 32      # rating_size (small stand-in for 256)
NSTATS = 16      # num_stats
IN_FEAT = RATING + NSTATS
IN_PAD = 128     # linear_in input padded to one full lane tile
HIDDEN = 128     # BertConfig hidden_size (module default)
N_HEADS = 8
HEAD_DIM = HIDDEN // N_HEADS
N_LAYERS = 8
INTER = 4 * HIDDEN
HEAD_OUT = 128                                   # lane-dense padded head output
LN_EPS = 1e-12                                   # BertConfig layer_norm_eps
NEG_INF = float(jnp.finfo(jnp.float32).min)      # torch.finfo(float32).min
SCALE = 1.0 / math.sqrt(HEAD_DIM)


# ---------------------------------------------------------------------------
# helpers shared by kernel and pure-JAX reference
# ---------------------------------------------------------------------------
def _layer_norm(x, g, b):
    mu = jnp.mean(x, axis=-1, keepdims=True)
    var = jnp.mean((x - mu) ** 2, axis=-1, keepdims=True)
    return (x - mu) * lax.rsqrt(var + LN_EPS) * g + b


def _gelu(x):
    # TODO(synk): HF Bert default is the exact erf-based GELU; erf has no guaranteed
    # Mosaic lowering, so the tanh approximation is used here (and in the reference).
    c = math.sqrt(2.0 / math.pi)
    return 0.5 * x * (1.0 + jnp.tanh(c * (x + 0.044715 * x * x * x)))


# ---------------------------------------------------------------------------
# fused kernel body: one grid step == one BERT layer
#   l == 0           -> also runs linear_in into the hidden-state scratch
#   l == N_LAYERS-1  -> also runs the fused mean/std heads into out_ref
# ---------------------------------------------------------------------------
def _box_score_kernel(
    x_ref, mask_ref,
    w_in_ref, b_in_ref,
    wqkv_ref, bqkv_ref, wo_ref, bo_ref, ln1g_ref, ln1b_ref,
    wi_ref, bi_ref, wo2_ref, bo2_ref, ln2g_ref, ln2b_ref,
    gsum_ref, gexp_ref, w_head_ref, b_head_ref,
    out_ref,
    h_ref,
):
    f32 = jnp.float32
    bf16 = jnp.bfloat16
    l = pl.program_id(0)

    # ---- linear_in (layer 0 only): padded [B*S, 128] @ [128, HIDDEN] --------
    @pl.when(l == 0)
    def _():
        h_ref[...] = (
            jnp.dot(x_ref[...].astype(bf16), w_in_ref[...],
                    preferred_element_type=f32)
            + b_in_ref[...])

    h = h_ref[...]                                       # [B*S, HIDDEN] f32
    hb = h.astype(bf16)

    # ---- self-attention: fused QKV, all (batch, head) pairs batched ---------
    qkv = (jnp.dot(hb, wqkv_ref[0], preferred_element_type=f32)
           + bqkv_ref[0])                                # [B*S, 3*HIDDEN]
    q = qkv[:, 0:HIDDEN].reshape(B, S, HIDDEN)
    k = qkv[:, HIDDEN:2 * HIDDEN].reshape(B, S, HIDDEN)
    v = qkv[:, 2 * HIDDEN:3 * HIDDEN].reshape(B, S, HIDDEN)

    # scores[b, i, j, h] = scale * sum_d q[b,i,h*D+d] * k[b,j,h*D+d]
    #   via a broadcast product + head-grouping matmul (gsum is pre-scaled)
    e = (q[:, :, None, :] * k[:, None, :, :]).astype(bf16)      # [B,Sq,Sk,HIDDEN]
    s = jnp.dot(e.reshape(B * S * S, HIDDEN), gsum_ref[...],
                preferred_element_type=f32)                      # [B*S*S, H]
    s = s.reshape(B, S, S, N_HEADS) + mask_ref[...]              # additive mask
    s = s - jnp.max(s, axis=2, keepdims=True)
    p = jnp.exp(s)
    p = p * pl.reciprocal(jnp.sum(p, axis=2, keepdims=True), approx=True)

    # ctx[b, i, h*D+d] = sum_j p[b,i,j,h] * v[b,j,h*D+d]
    p_exp = jnp.dot(p.reshape(B * S * S, N_HEADS).astype(bf16), gexp_ref[...],
                    preferred_element_type=f32).reshape(B, S, S, HIDDEN)
    ctx = jnp.sum(p_exp * v[:, None, :, :], axis=2).reshape(B * S, HIDDEN)

    attn = (jnp.dot(ctx.astype(bf16), wo_ref[0], preferred_element_type=f32)
            + bo_ref[0])
    h1 = _layer_norm(h + attn, ln1g_ref[0], ln1b_ref[0])

    # ---- feed-forward --------------------------------------------------------
    ff = (jnp.dot(h1.astype(bf16), wi_ref[0], preferred_element_type=f32)
          + bi_ref[0])
    ff = _gelu(ff)
    ff = (jnp.dot(ff.astype(bf16), wo2_ref[0], preferred_element_type=f32)
          + bo2_ref[0])
    h2 = _layer_norm(h1 + ff, ln2g_ref[0], ln2b_ref[0])
    h_ref[...] = h2

    # ---- fused mean/std heads (last layer only), lane-dense [B*S, 128] ------
    @pl.when(l == N_LAYERS - 1)
    def _():
        out_ref[...] = (
            jnp.dot(h2.astype(bf16), w_head_ref[...], preferred_element_type=f32)
            + b_head_ref[...])


# ---------------------------------------------------------------------------
# parameters (deterministic synthetic init; NOT a checkpoint load)
# ---------------------------------------------------------------------------
def init_params(key):
    keys = iter(jax.random.split(key, 24))

    def nrm(shape, scale=0.02, dtype=jnp.bfloat16):
        return (scale * jax.random.normal(next(keys), shape)).astype(dtype)

    p = {}
    # matmul weights stored bf16 (native MXU dtype, halves HBM traffic);
    # biases / LN params f32
    p["w_in"] = nrm((IN_FEAT, HIDDEN))
    p["b_in"] = nrm((1, HIDDEN), dtype=jnp.float32)
    p["wqkv"] = nrm((N_LAYERS, HIDDEN, 3 * HIDDEN))        # fused Q|K|V
    p["bqkv"] = nrm((N_LAYERS, 1, 3 * HIDDEN), dtype=jnp.float32)
    p["wo"] = nrm((N_LAYERS, HIDDEN, HIDDEN))
    p["bo"] = nrm((N_LAYERS, 1, HIDDEN), dtype=jnp.float32)
    p["ln1g"] = jnp.ones((N_LAYERS, 1, HIDDEN), jnp.float32)
    p["ln1b"] = jnp.zeros((N_LAYERS, 1, HIDDEN), jnp.float32)
    p["wi"] = nrm((N_LAYERS, HIDDEN, INTER))
    p["bi"] = nrm((N_LAYERS, 1, INTER), dtype=jnp.float32)
    p["wo2"] = nrm((N_LAYERS, INTER, HIDDEN))
    p["bo2"] = nrm((N_LAYERS, 1, HIDDEN), dtype=jnp.float32)
    p["ln2g"] = jnp.ones((N_LAYERS, 1, HIDDEN), jnp.float32)
    p["ln2b"] = jnp.zeros((N_LAYERS, 1, HIDDEN), jnp.float32)
    p["w_mean"] = nrm((HIDDEN, NSTATS))
    p["b_mean"] = nrm((NSTATS,), dtype=jnp.float32)
    p["w_var"] = nrm((HIDDEN, NSTATS))
    p["b_var"] = nrm((NSTATS,), dtype=jnp.float32)
    return p


def _fused_head_params(params):
    """Pack mean/std heads into one lane-dense [HIDDEN, 128] weight (zero-padded)."""
    pad = HEAD_OUT - 2 * NSTATS
    w_head = jnp.concatenate(
        [params["w_mean"], params["w_var"],
         jnp.zeros((HIDDEN, pad), jnp.bfloat16)], axis=1)
    b_head = jnp.concatenate(
        [params["b_mean"], params["b_var"],
         jnp.zeros((pad,), jnp.float32)]).reshape(1, HEAD_OUT)
    return w_head, b_head


# ---------------------------------------------------------------------------
# forward pass: one pallas_call, grid over layers (per-layer weight streaming)
# ---------------------------------------------------------------------------
@jax.jit
def box_score_generator_forward(params, ratings, games, mask):
    f32, bf16 = jnp.float32, jnp.bfloat16

    # linear_in input, zero-padded to one lane tile -> single K=128 matmul
    x = jnp.concatenate([ratings, games], axis=-1).reshape(B * S, IN_FEAT)
    x_pad = jnp.pad(x.astype(f32), ((0, 0), (0, IN_PAD - IN_FEAT)))
    w_in_pad = jnp.pad(params["w_in"], ((0, IN_PAD - IN_FEAT), (0, 0)))

    # additive mask, pre-broadcast to the kernel's [B, Sq, Sk, H] score layout
    mask_add = ((1.0 - mask) * NEG_INF).astype(f32)                  # [B, S]
    mask_b = jnp.broadcast_to(mask_add.reshape(B, 1, S, 1), (B, S, S, N_HEADS))

    # head-grouping (sum over each head's HEAD_DIM lanes, pre-scaled by 1/sqrt(D))
    # and head-expansion matrices
    g_sum = (SCALE * jnp.kron(jnp.eye(N_HEADS, dtype=f32),
                              jnp.ones((HEAD_DIM, 1), f32))).astype(bf16)  # [HIDDEN, H]
    g_exp = jnp.kron(jnp.eye(N_HEADS, dtype=f32),
                     jnp.ones((1, HEAD_DIM), f32)).astype(bf16)            # [H, HIDDEN]

    w_head, b_head = _fused_head_params(params)

    inputs = (
        x_pad, mask_b,
        w_in_pad, params["b_in"],
        params["wqkv"], params["bqkv"], params["wo"], params["bo"],
        params["ln1g"], params["ln1b"],
        params["wi"], params["bi"], params["wo2"], params["bo2"],
        params["ln2g"], params["ln2b"],
        g_sum, g_exp, w_head, b_head,
    )

    def resident(a):                       # full array, VMEM-resident (fetched once)
        nd = a.ndim
        return pl.BlockSpec(a.shape, lambda *_: (0,) * nd)

    def per_layer(a):                      # stacked [N_LAYERS, ...] -> one layer/step
        nd = a.ndim
        return pl.BlockSpec((1,) + a.shape[1:],
                            lambda l, _n=nd: (l,) + (0,) * (_n - 1))

    in_specs = [
        resident(x_pad), resident(mask_b),
        resident(w_in_pad), resident(params["b_in"]),
        per_layer(params["wqkv"]), per_layer(params["bqkv"]),
        per_layer(params["wo"]), per_layer(params["bo"]),
        per_layer(params["ln1g"]), per_layer(params["ln1b"]),
        per_layer(params["wi"]), per_layer(params["bi"]),
        per_layer(params["wo2"]), per_layer(params["bo2"]),
        per_layer(params["ln2g"]), per_layer(params["ln2b"]),
        resident(g_sum), resident(g_exp), resident(w_head), resident(b_head),
    ]

    out = pl.pallas_call(
        _box_score_kernel,
        out_shape=jax.ShapeDtypeStruct((B * S, HEAD_OUT), jnp.float32),
        grid_spec=pltpu.PrefetchScalarGridSpec(
            num_scalar_prefetch=0,
            grid=(N_LAYERS,),
            in_specs=in_specs,
            out_specs=pl.BlockSpec((B * S, HEAD_OUT), lambda l: (0, 0)),
            scratch_shapes=[pltpu.VMEM((B * S, HIDDEN), jnp.float32)],
        ),
        compiler_params=pltpu.CompilerParams(
            dimension_semantics=("arbitrary",)),
    )(*inputs)

    pred_mean = out[:, :NSTATS].reshape(B, S, NSTATS)
    pred_std = out[:, NSTATS:2 * NSTATS].reshape(B, S, NSTATS)
    return pred_mean, pred_std


# ---------------------------------------------------------------------------
# pure-JAX reference (module-faithful f32 math) for a sanity check
# ---------------------------------------------------------------------------
def reference_forward(params, ratings, games, mask):
    f32 = jnp.float32
    x = jnp.concatenate([ratings, games], axis=-1)
    h = x @ params["w_in"].astype(f32) + params["b_in"]
    add_mask = ((1.0 - mask) * NEG_INF)[:, None, None, :]      # [B,1,1,S]

    def split(t):
        return t.reshape(B, S, N_HEADS, HEAD_DIM).transpose(0, 2, 1, 3)

    for l in range(N_LAYERS):
        qkv = h @ params["wqkv"][l].astype(f32) + params["bqkv"][l]
        q = split(qkv[..., 0:HIDDEN])
        k = split(qkv[..., HIDDEN:2 * HIDDEN])
        v = split(qkv[..., 2 * HIDDEN:3 * HIDDEN])
        s = jnp.einsum("bhqd,bhkd->bhqk", q, k) / math.sqrt(HEAD_DIM) + add_mask
        p = jax.nn.softmax(s, axis=-1)
        ctx = jnp.einsum("bhqk,bhkd->bhqd", p, v)
        ctx = ctx.transpose(0, 2, 1, 3).reshape(B, S, HIDDEN)
        attn = ctx @ params["wo"][l].astype(f32) + params["bo"][l]
        h = _layer_norm(h + attn, params["ln1g"][l], params["ln1b"][l])
        ff = _gelu(h @ params["wi"][l].astype(f32) + params["bi"][l])
        ff = ff @ params["wo2"][l].astype(f32) + params["bo2"][l]
        h = _layer_norm(h + ff, params["ln2g"][l], params["ln2b"][l])

    return (h @ params["w_mean"].astype(f32) + params["b_mean"],
            h @ params["w_var"].astype(f32) + params["b_var"])


if __name__ == "__main__":
    key = jax.random.PRNGKey(0)
    k_param, k_rat, k_games = jax.random.split(key, 3)

    params = init_params(k_param)
    ratings = jax.random.normal(k_rat, (B, S, RATING), jnp.float32)
    games = jax.random.normal(k_games, (B, S, NSTATS), jnp.float32)
    mask = (games[:, :, 0] > 0).astype(jnp.float32)             # [B, S]

    pred_mean, pred_std = box_score_generator_forward(params, ratings, games, mask)
    jax.block_until_ready((pred_mean, pred_std))

    ref_mean, ref_std = reference_forward(params, ratings, games, mask)
    err = max(float(jnp.max(jnp.abs(pred_mean - ref_mean))),
              float(jnp.max(jnp.abs(pred_std - ref_std))))
    assert pred_mean.shape == (B, S, NSTATS) and pred_std.shape == (B, S, NSTATS)
    assert err < 5e-2, f"kernel/reference mismatch: max abs err = {err}"
    print("KERNEL_OK")
</pallas_src>

<mosaic_0001>
module attributes {stable_mosaic.version = 11 : i64} {
  func.func @_box_score_kernel(%arg0: i32, %arg1: memref<16x128xf32, #tpu.memory_space<vmem>>, %arg2: memref<2x8x8x8xf32, #tpu.memory_space<vmem>>, %arg3: memref<128x128xbf16, #tpu.memory_space<vmem>>, %arg4: memref<1x128xf32, #tpu.memory_space<vmem>>, %arg5: memref<1x128x384xbf16, #tpu.memory_space<vmem>>, %arg6: memref<1x1x384xf32, #tpu.memory_space<vmem>>, %arg7: memref<1x128x128xbf16, #tpu.memory_space<vmem>>, %arg8: memref<1x1x128xf32, #tpu.memory_space<vmem>>, %arg9: memref<1x1x128xf32, #tpu.memory_space<vmem>>, %arg10: memref<1x1x128xf32, #tpu.memory_space<vmem>>, %arg11: memref<1x128x512xbf16, #tpu.memory_space<vmem>>, %arg12: memref<1x1x512xf32, #tpu.memory_space<vmem>>, %arg13: memref<1x512x128xbf16, #tpu.memory_space<vmem>>, %arg14: memref<1x1x128xf32, #tpu.memory_space<vmem>>, %arg15: memref<1x1x128xf32, #tpu.memory_space<vmem>>, %arg16: memref<1x1x128xf32, #tpu.memory_space<vmem>>, %arg17: memref<128x8xbf16, #tpu.memory_space<vmem>>, %arg18: memref<8x128xbf16, #tpu.memory_space<vmem>>, %arg19: memref<128x128xbf16, #tpu.memory_space<vmem>>, %arg20: memref<1x128xf32, #tpu.memory_space<vmem>>, %arg21: memref<16x128xf32, #tpu.memory_space<vmem>>, %arg22: memref<16x128xf32, #tpu.memory_space<vmem>>) attributes {dimension_semantics = [#tpu.dimension_semantics<arbitrary>], iteration_bounds = array<i64: 8>, scalar_prefetch = 0 : i64, scratch_operands = 1 : i64, tpu.core_type = #tpu.core_type<tc>, window_params = [{pipeline_mode = #tpu.pipeline_mode<synchronous>, transform_indices = @transform_0, window_bounds = array<i64: 16, 128>}, {pipeline_mode = #tpu.pipeline_mode<synchronous>, transform_indices = @transform_1, window_bounds = array<i64: 2, 8, 8, 8>}, {pipeline_mode = #tpu.pipeline_mode<synchronous>, transform_indices = @transform_2, window_bounds = array<i64: 128, 128>}, {pipeline_mode = #tpu.pipeline_mode<synchronous>, transform_indices = @transform_3, window_bounds = array<i64: 1, 128>}, {transform_indices = @transform_4, window_bounds = array<i64: 1, 128, 384>}, {transform_indices = @transform_5, window_bounds = array<i64: 1, 1, 384>}, {transform_indices = @transform_6, window_bounds = array<i64: 1, 128, 128>}, {transform_indices = @transform_7, window_bounds = array<i64: 1, 1, 128>}, {transform_indices = @transform_8, window_bounds = array<i64: 1, 1, 128>}, {transform_indices = @transform_9, window_bounds = array<i64: 1, 1, 128>}, {transform_indices = @transform_10, window_bounds = array<i64: 1, 128, 512>}, {transform_indices = @transform_11, window_bounds = array<i64: 1, 1, 512>}, {transform_indices = @transform_12, window_bounds = array<i64: 1, 512, 128>}, {transform_indices = @transform_13, window_bounds = array<i64: 1, 1, 128>}, {transform_indices = @transform_14, window_bounds = array<i64: 1, 1, 128>}, {transform_indices = @transform_15, window_bounds = array<i64: 1, 1, 128>}, {pipeline_mode = #tpu.pipeline_mode<synchronous>, transform_indices = @transform_16, window_bounds = array<i64: 128, 8>}, {pipeline_mode = #tpu.pipeline_mode<synchronous>, transform_indices = @transform_17, window_bounds = array<i64: 8, 128>}, {pipeline_mode = #tpu.pipeline_mode<synchronous>, transform_indices = @transform_18, window_bounds = array<i64: 128, 128>}, {pipeline_mode = #tpu.pipeline_mode<synchronous>, transform_indices = @transform_19, window_bounds = array<i64: 1, 128>}, {pipeline_mode = #tpu.pipeline_mode<synchronous>, transform_indices = @transform_20, window_bounds = array<i64: 16, 128>}]} {
    %c0_i32 = arith.constant 0 : i32
    %0 = arith.cmpi eq, %arg0, %c0_i32 : i32
    %1 = arith.extui %0 : i1 to i32
    %c0_i32_0 = arith.constant 0 : i32
    %2 = arith.cmpi ne, %1, %c0_i32_0 : i32
    scf.if %2 {
      %c0_71 = arith.constant 0 : index
      %c0_72 = arith.constant 0 : index
      %145 = vector.load %arg1[%c0_71, %c0_72] : memref<16x128xf32, #tpu.memory_space<vmem>>, vector<16x128xf32>
      %146 = arith.truncf %145 : vector<16x128xf32> to vector<16x128xbf16>
      %c0_73 = arith.constant 0 : index
      %c0_74 = arith.constant 0 : index
      %147 = vector.load %arg3[%c0_73, %c0_74] : memref<128x128xbf16, #tpu.memory_space<vmem>>, vector<128x128xbf16>
      %cst_75 = arith.constant dense<0.000000e+00> : vector<16x128xf32>
      %148 = tpu.matmul %146, %147, %cst_75 {dimension_numbers = #tpu.dot_dimension_numbers<[1], [0], [0], [1], [0, 0, 1, 1], [], []>} : vector<16x128xbf16>, vector<128x128xbf16>, vector<16x128xf32> -> vector<16x128xf32>
      %c0_76 = arith.constant 0 : index
      %c0_77 = arith.constant 0 : index
      %149 = vector.load %arg4[%c0_76, %c0_77] : memref<1x128xf32, #tpu.memory_space<vmem>>, vector<1x128xf32>
      %150 = vector.broadcast %149 : vector<1x128xf32> to vector<16x128xf32>
      %151 = arith.addf %148, %150 : vector<16x128xf32>
      %c0_78 = arith.constant 0 : index
      %c0_79 = arith.constant 0 : index
      %152 = vector.load %arg22[%c0_78, %c0_79] : memref<16x128xf32, #tpu.memory_space<vmem>>, vector<16x128xf32>
      tpu.vector_store %arg22[%c0_78, %c0_79], %151 {strides = array<i32>} : memref<16x128xf32, #tpu.memory_space<vmem>>, vector<16x128xf32>,
    } else {
    }
    %c0 = arith.constant 0 : index
    %c0_1 = arith.constant 0 : index
    %3 = vector.load %arg22[%c0, %c0_1] : memref<16x128xf32, #tpu.memory_space<vmem>>, vector<16x128xf32>
    %4 = arith.truncf %3 : vector<16x128xf32> to vector<16x128xbf16>
    %c0_2 = arith.constant 0 : index
    %c0_3 = arith.constant 0 : index
    %c0_4 = arith.constant 0 : index
    %5 = vector.load %arg5[%c0_2, %c0_3, %c0_4] : memref<1x128x384xbf16, #tpu.memory_space<vmem>>, vector<1x128x384xbf16>
    %6 = vector.shape_cast %5 : vector<1x128x384xbf16> to vector<128x384xbf16>
    %cst = arith.constant dense<0.000000e+00> : vector<16x384xf32>
    %7 = tpu.matmul %4, %6, %cst {dimension_numbers = #tpu.dot_dimension_numbers<[1], [0], [0], [1], [0, 0, 1, 1], [], []>} : vector<16x128xbf16>, vector<128x384xbf16>, vector<16x384xf32> -> vector<16x384xf32>
    %c0_5 = arith.constant 0 : index
    %c0_6 = arith.constant 0 : index
    %c0_7 = arith.constant 0 : index
    %8 = vector.load %arg6[%c0_5, %c0_6, %c0_7] : memref<1x1x384xf32, #tpu.memory_space<vmem>>, vector<1x1x384xf32>
    %9 = vector.shape_cast %8 : vector<1x1x384xf32> to vector<1x384xf32>
    %10 = vector.broadcast %9 : vector<1x384xf32> to vector<16x384xf32>
    %11 = arith.addf %7, %10 : vector<16x384xf32>
    %12 = vector.extract_strided_slice %11 {offsets = [0, 0], sizes = [16, 128], strides = [1, 1]} : vector<16x384xf32> to vector<16x128xf32>
    %13 = vector.shape_cast %12 : vector<16x128xf32> to vector<2x8x128xf32>
    %14 = vector.extract_strided_slice %11 {offsets = [0, 128], sizes = [16, 128], strides = [1, 1]} : vector<16x384xf32> to vector<16x128xf32>
    %15 = vector.shape_cast %14 : vector<16x128xf32> to vector<2x8x128xf32>
    %16 = vector.extract_strided_slice %11 {offsets = [0, 256], sizes = [16, 128], strides = [1, 1]} : vector<16x384xf32> to vector<16x128xf32>
    %17 = vector.shape_cast %16 : vector<16x128xf32> to vector<2x8x128xf32>
    %18 = vector.shape_cast %13 : vector<2x8x128xf32> to vector<2x8x1x128xf32>
    %19 = vector.shape_cast %15 : vector<2x8x128xf32> to vector<2x1x8x128xf32>
    %20 = vector.broadcast %18 : vector<2x8x1x128xf32> to vector<2x8x8x128xf32>
    %21 = vector.broadcast %19 : vector<2x1x8x128xf32> to vector<2x8x8x128xf32>
    %22 = arith.mulf %20, %21 : vector<2x8x8x128xf32>
    %23 = arith.truncf %22 : vector<2x8x8x128xf32> to vector<2x8x8x128xbf16>
    %24 = vector.shape_cast %23 : vector<2x8x8x128xbf16> to vector<128x128xbf16>
    %c0_8 = arith.constant 0 : index
    %c0_9 = arith.constant 0 : index
    %25 = vector.load %arg17[%c0_8, %c0_9] : memref<128x8xbf16, #tpu.memory_space<vmem>>, vector<128x8xbf16>
    %cst_10 = arith.constant dense<0.000000e+00> : vector<128x8xf32>
    %26 = tpu.matmul %24, %25, %cst_10 {dimension_numbers = #tpu.dot_dimension_numbers<[1], [0], [0], [1], [0, 0, 1, 1], [], []>} : vector<128x128xbf16>, vector<128x8xbf16>, vector<128x8xf32> -> vector<128x8xf32>
    %27 = vector.shape_cast %26 : vector<128x8xf32> to vector<2x8x8x8xf32>
    %c0_11 = arith.constant 0 : index
    %c0_12 = arith.constant 0 : index
    %c0_13 = arith.constant 0 : index
    %c0_14 = arith.constant 0 : index
    %28 = vector.load %arg2[%c0_11, %c0_12, %c0_13, %c0_14] : memref<2x8x8x8xf32, #tpu.memory_space<vmem>>, vector<2x8x8x8xf32>
    %29 = arith.addf %27, %28 : vector<2x8x8x8xf32>
    %cst_15 = arith.constant dense<0xFF800000> : vector<2x8x8xf32>
    %30 = vector.multi_reduction <maximumf>, %29, %cst_15 [2] : vector<2x8x8x8xf32> to vector<2x8x8xf32>
    %31 = vector.shape_cast %30 : vector<2x8x8xf32> to vector<2x8x1x8xf32>
    %32 = vector.broadcast %31 : vector<2x8x1x8xf32> to vector<2x8x8x8xf32>
    %33 = arith.subf %29, %32 : vector<2x8x8x8xf32>
    %34 = math.exp %33 : vector<2x8x8x8xf32>
    %cst_16 = arith.constant dense<0.000000e+00> : vector<2x8x8xf32>
    %35 = vector.multi_reduction <add>, %34, %cst_16 [2] : vector<2x8x8x8xf32> to vector<2x8x8xf32>
    %36 = vector.shape_cast %35 : vector<2x8x8xf32> to vector<2x8x1x8xf32>
    %37 = tpu.reciprocal %36 {approx = true} : vector<2x8x1x8xf32> -> vector<2x8x1x8xf32>
    %38 = vector.broadcast %37 : vector<2x8x1x8xf32> to vector<2x8x8x8xf32>
    %39 = arith.mulf %34, %38 : vector<2x8x8x8xf32>
    %40 = vector.shape_cast %39 : vector<2x8x8x8xf32> to vector<128x8xf32>
    %41 = arith.truncf %40 : vector<128x8xf32> to vector<128x8xbf16>
    %c0_17 = arith.constant 0 : index
    %c0_18 = arith.constant 0 : index
    %42 = vector.load %arg18[%c0_17, %c0_18] : memref<8x128xbf16, #tpu.memory_space<vmem>>, vector<8x128xbf16>
    %cst_19 = arith.constant dense<0.000000e+00> : vector<128x128xf32>
    %43 = tpu.matmul %41, %42, %cst_19 {dimension_numbers = #tpu.dot_dimension_numbers<[1], [0], [0], [1], [0, 0, 1, 1], [], []>} : vector<128x8xbf16>, vector<8x128xbf16>, vector<128x128xf32> -> vector<128x128xf32>
    %44 = vector.shape_cast %43 : vector<128x128xf32> to vector<2x8x8x128xf32>
    %45 = vector.shape_cast %17 : vector<2x8x128xf32> to vector<2x1x8x128xf32>
    %46 = vector.broadcast %45 : vector<2x1x8x128xf32> to vector<2x8x8x128xf32>
    %47 = arith.mulf %44, %46 : vector<2x8x8x128xf32>
    %cst_20 = arith.constant dense<0.000000e+00> : vector<2x8x128xf32>
    %48 = vector.multi_reduction <add>, %47, %cst_20 [2] : vector<2x8x8x128xf32> to vector<2x8x128xf32>
    %49 = vector.shape_cast %48 : vector<2x8x128xf32> to vector<16x128xf32>
    %50 = arith.truncf %49 : vector<16x128xf32> to vector<16x128xbf16>
    %c0_21 = arith.constant 0 : index
    %c0_22 = arith.constant 0 : index
    %c0_23 = arith.constant 0 : index
    %51 = vector.load %arg7[%c0_21, %c0_22, %c0_23] : memref<1x128x128xbf16, #tpu.memory_space<vmem>>, vector<1x128x128xbf16>
    %52 = vector.shape_cast %51 : vector<1x128x128xbf16> to vector<128x128xbf16>
    %cst_24 = arith.constant dense<0.000000e+00> : vector<16x128xf32>
    %53 = tpu.matmul %50, %52, %cst_24 {dimension_numbers = #tpu.dot_dimension_numbers<[1], [0], [0], [1], [0, 0, 1, 1], [], []>} : vector<16x128xbf16>, vector<128x128xbf16>, vector<16x128xf32> -> vector<16x128xf32>
    %c0_25 = arith.constant 0 : index
    %c0_26 = arith.constant 0 : index
    %c0_27 = arith.constant 0 : index
    %54 = vector.load %arg8[%c0_25, %c0_26, %c0_27] : memref<1x1x128xf32, #tpu.memory_space<vmem>>, vector<1x1x128xf32>
    %55 = vector.shape_cast %54 : vector<1x1x128xf32> to vector<1x128xf32>
    %56 = vector.broadcast %55 : vector<1x128xf32> to vector<16x128xf32>
    %57 = arith.addf %53, %56 : vector<16x128xf32>
    %58 = arith.addf %3, %57 : vector<16x128xf32>
    %c0_28 = arith.constant 0 : index
    %c0_29 = arith.constant 0 : index
    %c0_30 = arith.constant 0 : index
    %59 = vector.load %arg9[%c0_28, %c0_29, %c0_30] : memref<1x1x128xf32, #tpu.memory_space<vmem>>, vector<1x1x128xf32>
    %60 = vector.shape_cast %59 : vector<1x1x128xf32> to vector<1x128xf32>
    %c0_31 = arith.constant 0 : index
    %c0_32 = arith.constant 0 : index
    %c0_33 = arith.constant 0 : index
    %61 = vector.load %arg10[%c0_31, %c0_32, %c0_33] : memref<1x1x128xf32, #tpu.memory_space<vmem>>, vector<1x1x128xf32>
    %62 = vector.shape_cast %61 : vector<1x1x128xf32> to vector<1x128xf32>
    %cst_34 = arith.constant dense<0.000000e+00> : vector<16xf32>
    %63 = vector.multi_reduction <add>, %58, %cst_34 [1] : vector<16x128xf32> to vector<16xf32>
    %64 = vector.shape_cast %63 : vector<16xf32> to vector<16x1xf32>
    %cst_35 = arith.constant 1.280000e+02 : f32
    %65 = vector.broadcast %cst_35 : f32 to vector<16x1xf32>
    %66 = arith.divf %64, %65 : vector<16x1xf32>
    %67 = vector.broadcast %66 : vector<16x1xf32> to vector<16x128xf32>
    %68 = arith.subf %58, %67 : vector<16x128xf32>
    %69 = arith.mulf %68, %68 : vector<16x128xf32>
    %cst_36 = arith.constant dense<0.000000e+00> : vector<16xf32>
    %70 = vector.multi_reduction <add>, %69, %cst_36 [1] : vector<16x128xf32> to vector<16xf32>
    %71 = vector.shape_cast %70 : vector<16xf32> to vector<16x1xf32>
    %cst_37 = arith.constant 1.280000e+02 : f32
    %72 = vector.broadcast %cst_37 : f32 to vector<16x1xf32>
    %73 = arith.divf %71, %72 : vector<16x1xf32>
    %74 = vector.broadcast %66 : vector<16x1xf32> to vector<16x128xf32>
    %75 = arith.subf %58, %74 : vector<16x128xf32>
    %cst_38 = arith.constant 9.99999996E-13 : f32
    %76 = vector.broadcast %cst_38 : f32 to vector<16x1xf32>
    %77 = arith.addf %73, %76 : vector<16x1xf32>
    %78 = math.rsqrt %77 : vector<16x1xf32>
    %79 = vector.broadcast %78 : vector<16x1xf32> to vector<16x128xf32>
    %80 = arith.mulf %75, %79 : vector<16x128xf32>
    %81 = vector.broadcast %60 : vector<1x128xf32> to vector<16x128xf32>
    %82 = arith.mulf %80, %81 : vector<16x128xf32>
    %83 = vector.broadcast %62 : vector<1x128xf32> to vector<16x128xf32>
    %84 = arith.addf %82, %83 : vector<16x128xf32>
    %85 = arith.truncf %84 : vector<16x128xf32> to vector<16x128xbf16>
    %c0_39 = arith.constant 0 : index
    %c0_40 = arith.constant 0 : index
    %c0_41 = arith.constant 0 : index
    %86 = vector.load %arg11[%c0_39, %c0_40, %c0_41] : memref<1x128x512xbf16, #tpu.memory_space<vmem>>, vector<1x128x512xbf16>
    %87 = vector.shape_cast %86 : vector<1x128x512xbf16> to vector<128x512xbf16>
    %cst_42 = arith.constant dense<0.000000e+00> : vector<16x512xf32>
    %88 = tpu.matmul %85, %87, %cst_42 {dimension_numbers = #tpu.dot_dimension_numbers<[1], [0], [0], [1], [0, 0, 1, 1], [], []>} : vector<16x128xbf16>, vector<128x512xbf16>, vector<16x512xf32> -> vector<16x512xf32>
    %c0_43 = arith.constant 0 : index
    %c0_44 = arith.constant 0 : index
    %c0_45 = arith.constant 0 : index
    %89 = vector.load %arg12[%c0_43, %c0_44, %c0_45] : memref<1x1x512xf32, #tpu.memory_space<vmem>>, vector<1x1x512xf32>
    %90 = vector.shape_cast %89 : vector<1x1x512xf32> to vector<1x512xf32>
    %91 = vector.broadcast %90 : vector<1x512xf32> to vector<16x512xf32>
    %92 = arith.addf %88, %91 : vector<16x512xf32>
    %cst_46 = arith.constant 5.000000e-01 : f32
    %93 = vector.broadcast %cst_46 : f32 to vector<16x512xf32>
    %94 = arith.mulf %93, %92 : vector<16x512xf32>
    %cst_47 = arith.constant 4.471500e-02 : f32
    %95 = vector.broadcast %cst_47 : f32 to vector<16x512xf32>
    %96 = arith.mulf %95, %92 : vector<16x512xf32>
    %97 = arith.mulf %96, %92 : vector<16x512xf32>
    %98 = arith.mulf %97, %92 : vector<16x512xf32>
    %99 = arith.addf %92, %98 : vector<16x512xf32>
    %cst_48 = arith.constant 0.797884583 : f32
    %100 = vector.broadcast %cst_48 : f32 to vector<16x512xf32>
    %101 = arith.mulf %100, %99 : vector<16x512xf32>
    %102 = math.tanh %101 : vector<16x512xf32>
    %cst_49 = arith.constant 1.000000e+00 : f32
    %103 = vector.broadcast %cst_49 : f32 to vector<16x512xf32>
    %104 = arith.addf %103, %102 : vector<16x512xf32>
    %105 = arith.mulf %94, %104 : vector<16x512xf32>
    %106 = arith.truncf %105 : vector<16x512xf32> to vector<16x512xbf16>
    %c0_50 = arith.constant 0 : index
    %c0_51 = arith.constant 0 : index
    %c0_52 = arith.constant 0 : index
    %107 = vector.load %arg13[%c0_50, %c0_51, %c0_52] : memref<1x512x128xbf16, #tpu.memory_space<vmem>>, vector<1x512x128xbf16>
    %108 = vector.shape_cast %107 : vector<1x512x128xbf16> to vector<512x128xbf16>
    %cst_53 = arith.constant dense<0.000000e+00> : vector<16x128xf32>
    %109 = tpu.matmul %106, %108, %cst_53 {dimension_numbers = #tpu.dot_dimension_numbers<[1], [0], [0], [1], [0, 0, 1, 1], [], []>} : vector<16x512xbf16>, vector<512x128xbf16>, vector<16x128xf32> -> vector<16x128xf32>
    %c0_54 = arith.constant 0 : index
    %c0_55 = arith.constant 0 : index
    %c0_56 = arith.constant 0 : index
    %110 = vector.load %arg14[%c0_54, %c0_55, %c0_56] : memref<1x1x128xf32, #tpu.memory_space<vmem>>, vector<1x1x128xf32>
    %111 = vector.shape_cast %110 : vector<1x1x128xf32> to vector<1x128xf32>
    %112 = vector.broadcast %111 : vector<1x128xf32> to vector<16x128xf32>
    %113 = arith.addf %109, %112 : vector<16x128xf32>
    %114 = arith.addf %84, %113 : vector<16x128xf32>
    %c0_57 = arith.constant 0 : index
    %c0_58 = arith.constant 0 : index
    %c0_59 = arith.constant 0 : index
    %115 = vector.load %arg15[%c0_57, %c0_58, %c0_59] : memref<1x1x128xf32, #tpu.memory_space<vmem>>, vector<1x1x128xf32>
    %116 = vector.shape_cast %115 : vector<1x1x128xf32> to vector<1x128xf32>
    %c0_60 = arith.constant 0 : index
    %c0_61 = arith.constant 0 : index
    %c0_62 = arith.constant 0 : index
    %117 = vector.load %arg16[%c0_60, %c0_61, %c0_62] : memref<1x1x128xf32, #tpu.memory_space<vmem>>, vector<1x1x128xf32>
    %118 = vector.shape_cast %117 : vector<1x1x128xf32> to vector<1x128xf32>
    %cst_63 = arith.constant dense<0.000000e+00> : vector<16xf32>
    %119 = vector.multi_reduction <add>, %114, %cst_63 [1] : vector<16x128xf32> to vector<16xf32>
    %120 = vector.shape_cast %119 : vector<16xf32> to vector<16x1xf32>
    %cst_64 = arith.constant 1.280000e+02 : f32
    %121 = vector.broadcast %cst_64 : f32 to vector<16x1xf32>
    %122 = arith.divf %120, %121 : vector<16x1xf32>
    %123 = vector.broadcast %122 : vector<16x1xf32> to vector<16x128xf32>
    %124 = arith.subf %114, %123 : vector<16x128xf32>
    %125 = arith.mulf %124, %124 : vector<16x128xf32>
    %cst_65 = arith.constant dense<0.000000e+00> : vector<16xf32>
    %126 = vector.multi_reduction <add>, %125, %cst_65 [1] : vector<16x128xf32> to vector<16xf32>
    %127 = vector.shape_cast %126 : vector<16xf32> to vector<16x1xf32>
    %cst_66 = arith.constant 1.280000e+02 : f32
    %128 = vector.broadcast %cst_66 : f32 to vector<16x1xf32>
    %129 = arith.divf %127, %128 : vector<16x1xf32>
    %130 = vector.broadcast %122 : vector<16x1xf32> to vector<16x128xf32>
    %131 = arith.subf %114, %130 : vector<16x128xf32>
    %cst_67 = arith.constant 9.99999996E-13 : f32
    %132 = vector.broadcast %cst_67 : f32 to vector<16x1xf32>
    %133 = arith.addf %129, %132 : vector<16x1xf32>
    %134 = math.rsqrt %133 : vector<16x1xf32>
    %135 = vector.broadcast %134 : vector<16x1xf32> to vector<16x128xf32>
    %136 = arith.mulf %131, %135 : vector<16x128xf32>
    %137 = vector.broadcast %116 : vector<1x128xf32> to vector<16x128xf32>
    %138 = arith.mulf %136, %137 : vector<16x128xf32>
    %139 = vector.broadcast %118 : vector<1x128xf32> to vector<16x128xf32>
    %140 = arith.addf %138, %139 : vector<16x128xf32>
    %c0_68 = arith.constant 0 : index
    %c0_69 = arith.constant 0 : index
    %141 = vector.load %arg22[%c0_68, %c0_69] : memref<16x128xf32, #tpu.memory_space<vmem>>, vector<16x128xf32>
    tpu.vector_store %arg22[%c0_68, %c0_69], %140 {strides = array<i32>} : memref<16x128xf32, #tpu.memory_space<vmem>>, vector<16x128xf32>,
    %c7_i32 = arith.constant 7 : i32
    %142 = arith.cmpi eq, %arg0, %c7_i32 : i32
    %143 = arith.extui %142 : i1 to i32
    %c0_i32_70 = arith.constant 0 : i32
    %144 = arith.cmpi ne, %143, %c0_i32_70 : i32
    scf.if %144 {
      %145 = arith.truncf %140 : vector<16x128xf32> to vector<16x128xbf16>
      %c0_71 = arith.constant 0 : index
      %c0_72 = arith.constant 0 : index
      %146 = vector.load %arg19[%c0_71, %c0_72] : memref<128x128xbf16, #tpu.memory_space<vmem>>, vector<128x128xbf16>
      %cst_73 = arith.constant dense<0.000000e+00> : vector<16x128xf32>
      %147 = tpu.matmul %145, %146, %cst_73 {dimension_numbers = #tpu.dot_dimension_numbers<[1], [0], [0], [1], [0, 0, 1, 1], [], []>} : vector<16x128xbf16>, vector<128x128xbf16>, vector<16x128xf32> -> vector<16x128xf32>
      %c0_74 = arith.constant 0 : index
      %c0_75 = arith.constant 0 : index
      %148 = vector.load %arg20[%c0_74, %c0_75] : memref<1x128xf32, #tpu.memory_space<vmem>>, vector<1x128xf32>
      %149 = vector.broadcast %148 : vector<1x128xf32> to vector<16x128xf32>
      %150 = arith.addf %147, %149 : vector<16x128xf32>
      %c0_76 = arith.constant 0 : index
      %c0_77 = arith.constant 0 : index
      %151 = vector.load %arg21[%c0_76, %c0_77] : memref<16x128xf32, #tpu.memory_space<vmem>>, vector<16x128xf32>
      tpu.vector_store %arg21[%c0_76, %c0_77], %150 {strides = array<i32>} : memref<16x128xf32, #tpu.memory_space<vmem>>, vector<16x128xf32>,
    } else {
    }
    return
  }
  func.func @transform_0(%arg0: i32) -> (i32, i32) {
    %c0_i32 = arith.constant 0 : i32
    %c0_i32_0 = arith.constant 0 : i32
    %c0_i32_1 = arith.constant 0 : i32
    return %c0_i32, %c0_i32_0 : i32, i32
  }
  func.func @transform_1(%arg0: i32) -> (i32, i32, i32, i32) {
    %c0_i32 = arith.constant 0 : i32
    %c0_i32_0 = arith.constant 0 : i32
    %c0_i32_1 = arith.constant 0 : i32
    %c0_i32_2 = arith.constant 0 : i32
    %c0_i32_3 = arith.constant 0 : i32
    return %c0_i32, %c0_i32_0, %c0_i32_1, %c0_i32_2 : i32, i32, i32, i32
  }
  func.func @transform_2(%arg0: i32) -> (i32, i32) {
    %c0_i32 = arith.constant 0 : i32
    %c0_i32_0 = arith.constant 0 : i32
    %c0_i32_1 = arith.constant 0 : i32
    return %c0_i32, %c0_i32_0 : i32, i32
  }
  func.func @transform_3(%arg0: i32) -> (i32, i32) {
    %c0_i32 = arith.constant 0 : i32
    %c0_i32_0 = arith.constant 0 : i32
    %c0_i32_1 = arith.constant 0 : i32
    return %c0_i32, %c0_i32_0 : i32, i32
  }
  func.func @transform_4(%arg0: i32) -> (i32, i32, i32) {
    %c0_i32 = arith.constant 0 : i32
    %c0_i32_0 = arith.constant 0 : i32
    %c0_i32_1 = arith.constant 0 : i32
    return %arg0, %c0_i32, %c0_i32_0 : i32, i32, i32
  }
  func.func @transform_5(%arg0: i32) -> (i32, i32, i32) {
    %c0_i32 = arith.constant 0 : i32
    %c0_i32_0 = arith.constant 0 : i32
    %c0_i32_1 = arith.constant 0 : i32
    return %arg0, %c0_i32, %c0_i32_0 : i32, i32, i32
  }
  func.func @transform_6(%arg0: i32) -> (i32, i32, i32) {
    %c0_i32 = arith.constant 0 : i32
    %c0_i32_0 = arith.constant 0 : i32
    %c0_i32_1 = arith.constant 0 : i32
    return %arg0, %c0_i32, %c0_i32_0 : i32, i32, i32
  }
  func.func @transform_7(%arg0: i32) -> (i32, i32, i32) {
    %c0_i32 = arith.constant 0 : i32
    %c0_i32_0 = arith.constant 0 : i32
    %c0_i32_1 = arith.constant 0 : i32
    return %arg0, %c0_i32, %c0_i32_0 : i32, i32, i32
  }
  func.func @transform_8(%arg0: i32) -> (i32, i32, i32) {
    %c0_i32 = arith.constant 0 : i32
    %c0_i32_0 = arith.constant 0 : i32
    %c0_i32_1 = arith.constant 0 : i32
    return %arg0, %c0_i32, %c0_i32_0 : i32, i32, i32
  }
  func.func @transform_9(%arg0: i32) -> (i32, i32, i32) {
    %c0_i32 = arith.constant 0 : i32
    %c0_i32_0 = arith.constant 0 : i32
    %c0_i32_1 = arith.constant 0 : i32
    return %arg0, %c0_i32, %c0_i32_0 : i32, i32, i32
  }
  func.func @transform_10(%arg0: i32) -> (i32, i32, i32) {
    %c0_i32 = arith.constant 0 : i32
    %c0_i32_0 = arith.constant 0 : i32
    %c0_i32_1 = arith.constant 0 : i32
    return %arg0, %c0_i32, %c0_i32_0 : i32, i32, i32
  }
  func.func @transform_11(%arg0: i32) -> (i32, i32, i32) {
    %c0_i32 = arith.constant 0 : i32
    %c0_i32_0 = arith.constant 0 : i32
    %c0_i32_1 = arith.constant 0 : i32
    return %arg0, %c0_i32, %c0_i32_0 : i32, i32, i32
  }
  func.func @transform_12(%arg0: i32) -> (i32, i32, i32) {
    %c0_i32 = arith.constant 0 : i32
    %c0_i32_0 = arith.constant 0 : i32
    %c0_i32_1 = arith.constant 0 : i32
    return %arg0, %c0_i32, %c0_i32_0 : i32, i32, i32
  }
  func.func @transform_13(%arg0: i32) -> (i32, i32, i32) {
    %c0_i32 = arith.constant 0 : i32
    %c0_i32_0 = arith.constant 0 : i32
    %c0_i32_1 = arith.constant 0 : i32
    return %arg0, %c0_i32, %c0_i32_0 : i32, i32, i32
  }
  func.func @transform_14(%arg0: i32) -> (i32, i32, i32) {
    %c0_i32 = arith.constant 0 : i32
    %c0_i32_0 = arith.constant 0 : i32
    %c0_i32_1 = arith.constant 0 : i32
    return %arg0, %c0_i32, %c0_i32_0 : i32, i32, i32
  }
  func.func @transform_15(%arg0: i32) -> (i32, i32, i32) {
    %c0_i32 = arith.constant 0 : i32
    %c0_i32_0 = arith.constant 0 : i32
    %c0_i32_1 = arith.constant 0 : i32
    return %arg0, %c0_i32, %c0_i32_0 : i32, i32, i32
  }
  func.func @transform_16(%arg0: i32) -> (i32, i32) {
    %c0_i32 = arith.constant 0 : i32
    %c0_i32_0 = arith.constant 0 : i32
    %c0_i32_1 = arith.constant 0 : i32
    return %c0_i32, %c0_i32_0 : i32, i32
  }
  func.func @transform_17(%arg0: i32) -> (i32, i32) {
    %c0_i32 = arith.constant 0 : i32
    %c0_i32_0 = arith.constant 0 : i32
    %c0_i32_1 = arith.constant 0 : i32
    return %c0_i32, %c0_i32_0 : i32, i32
  }
  func.func @transform_18(%arg0: i32) -> (i32, i32) {
    %c0_i32 = arith.constant 0 : i32
    %c0_i32_0 = arith.constant 0 : i32
    %c0_i32_1 = arith.constant 0 : i32
    return %c0_i32, %c0_i32_0 : i32, i32
  }
  func.func @transform_19(%arg0: i32) -> (i32, i32) {
    %c0_i32 = arith.constant 0 : i32
    %c0_i32_0 = arith.constant 0 : i32
    %c0_i32_1 = arith.constant 0 : i32
    return %c0_i32, %c0_i32_0 : i32, i32
  }
  func.func @transform_20(%arg0: i32) -> (i32, i32) {
    %c0_i32 = arith.constant 0 : i32
    %c0_i32_0 = arith.constant 0 : i32
    %c0_i32_1 = arith.constant 0 : i32
    return %c0_i32, %c0_i32_0 : i32, i32
  }
}

</mosaic_0001>

<llo_original>
// kernel: box_score_generator_forward.1
$region0: #{box_score_generator_forward.1}
  #allocation0 [shape = 'u32[]', space=smem, size = 0x4, offset = 0x4, fixed_abs, tag = 'smem constant byte address 0x4 - core index']
  #allocation1 [shape = 'u32[72,128]{1,0:T(1,128)}', space=vmem, size = 0x9000, scoped, tag = 'internal scratch']
  #allocation2 [shape = 'f32[16,128]{1,0:T(8,128)}', space=vmem, size = 0x2000, scoped, tag = 'scratch operand']
  %s0 = inlined_call_operand.vmem [shape: f32[16,128], index: 0, kind: input, shape index: {}]
  %s1 = inlined_call_operand.vmem [shape: f32[2,8,8,8], index: 1, kind: input, shape index: {}]
  %s2 = inlined_call_operand.vmem [shape: bf16[128,128], index: 2, kind: input, shape index: {}]
  %s3 = inlined_call_operand.vmem [shape: f32[1,128], index: 3, kind: input, shape index: {}]
  %s4 = inlined_call_operand.hbm [shape: bf16[8,128,384], index: 4, kind: input, shape index: {}]
  %s5 = inlined_call_operand.vmem [shape: f32[8,1,384], index: 5, kind: input, shape index: {}]
  %s6 = inlined_call_operand.hbm [shape: bf16[8,128,128], index: 6, kind: input, shape index: {}]
  %s7 = inlined_call_operand.vmem [shape: f32[8,1,128], index: 7, kind: input, shape index: {}]
  %s8 = inlined_call_operand.vmem [shape: f32[8,1,128], index: 8, kind: input, shape index: {}]
  %s9 = inlined_call_operand.vmem [shape: f32[8,1,128], index: 9, kind: input, shape index: {}]
  %s10 = inlined_call_operand.hbm [shape: bf16[8,128,512], index: 10, kind: input, shape index: {}]
  %s11 = inlined_call_operand.vmem [shape: f32[8,1,512], index: 11, kind: input, shape index: {}]
  %s12 = inlined_call_operand.hbm [shape: bf16[8,512,128], index: 12, kind: input, shape index: {}]
  %s13 = inlined_call_operand.vmem [shape: f32[8,1,128], index: 13, kind: input, shape index: {}]
  %s14 = inlined_call_operand.vmem [shape: f32[8,1,128], index: 14, kind: input, shape index: {}]
  %s15 = inlined_call_operand.vmem [shape: f32[8,1,128], index: 15, kind: input, shape index: {}]
  %s16 = inlined_call_operand.vmem [shape: bf16[128,8], index: 16, kind: input, shape index: {}]
  %s17 = inlined_call_operand.vmem [shape: bf16[8,128], index: 17, kind: input, shape index: {}]
  %s18 = inlined_call_operand.vmem [shape: bf16[128,128], index: 18, kind: input, shape index: {}]
  %s19 = inlined_call_operand.vmem [shape: f32[1,128], index: 19, kind: input, shape index: {}]
  %s20 = inlined_call_operand.vmem [shape: f32[16,128], index: 20, kind: output, shape index: {}]
  %s21 = sld [smem:[#allocation0]]
  $region137: #{box_score_generator_forward.1} parent=0
    _
  %s23 = ssub.s32 1, %s21
  %s24 = scalar_select 0, %s23, %s21
  $region1: #{box_score_generator_forward.1} parent=0
    #allocation3 [shape = 'u8[196608]{0}', space=vmem, size = 0x30000, scoped, tag = 'input window, operand 4']
    #allocation4 [shape = 's32[2]{0}', space=sflag, size = 0x8, scoped, tag = 'scoped memory for box_score_generator_forward.1']
    #allocation5 [shape = 'u8[65536]{0}', space=vmem, size = 0x10000, scoped, tag = 'input window, operand 6']
    #allocation6 [shape = 's32[2]{0}', space=sflag, size = 0x8, scoped, tag = 'scoped memory for box_score_generator_forward.1']
    #allocation7 [shape = 'u8[262144]{0}', space=vmem, size = 0x40000, scoped, tag = 'input window, operand 10']
    #allocation8 [shape = 'u8[262144]{0}', space=vmem, size = 0x40000, scoped, tag = 'input window, operand 12']
    #allocation9 [shape = 's32[2]{0}', space=sflag, size = 0x8, scoped, tag = 'scoped memory for box_score_generator_forward.1']
    %25 = vsyncpa [#allocation4], 0
    %s26 = scalar_lea.sflag [#allocation4], 1
    %27 = vsyncpa %s26, 0
    %28 = vsyncpa [#allocation6], 0
    %s29 = scalar_lea.sflag [#allocation6], 1
    %30 = vsyncpa %s29, 0
    %31 = vsyncpa [#allocation9], 0
    %s32 = scalar_lea.sflag [#allocation9], 1
    %33 = vsyncpa %s32, 0
    loop: start=0, step=1, limit=10
    $region2: #{box_score_generator_forward.1} parent=1 // loop_pre_header
      _
    $region3: #{box_score_generator_forward.1} parent=1 // loop_header
      %s35 = sphi 0, %s39
      %p36 = scmp.ge.s32.totalorder %s35, 10
      %s43 = sphi 0, %s43
      %s45 = sphi 0, %s43
      %s46 = sphi 0, %s45
      %s60 = sphi 0, %s46
      %s64 = sphi 0, %s64
      %s66 = sphi 0, %s64
      %s67 = sphi 0, %s66
      %s81 = sphi 0, %s67
      %s85 = sphi 0, %s85
      %s87 = sphi 0, %s85
      %s88 = sphi 0, %s87
      %s102 = sphi 0, %s88
      %s106 = sphi 0, %s106
      %s108 = sphi 0, %s106
      %s109 = sphi 0, %s108
      %s123 = sphi 0, %s109
      %s129 = sphi 0, %s131
      %s132 = sphi 0, %s129
      %s133 = sphi 0, %s132
      %s149 = sphi 0, %s133
      %s155 = sphi 0, %s157
      %s158 = sphi 0, %s155
      %s159 = sphi 0, %s158
      %s175 = sphi 0, %s159
      %s181 = sphi 0, %s183
      %s184 = sphi 0, %s181
      %s185 = sphi 0, %s184
      %s201 = sphi 0, %s185
      %s207 = sphi 0, %s209
      %s210 = sphi 0, %s207
      %s211 = sphi 0, %s210
      %s227 = sphi 0, %s211
      %s233 = sphi 0, %s235
      %s236 = sphi 0, %s233
      %s237 = sphi 0, %s236
      %s253 = sphi 0, %s237
      %s259 = sphi 0, %s261
      %s262 = sphi 0, %s259
      %s263 = sphi 0, %s262
      %s279 = sphi 0, %s263
      %s285 = sphi 0, %s287
      %s288 = sphi 0, %s285
      %s289 = sphi 0, %s288
      %s305 = sphi 0, %s289
      %s311 = sphi 0, %s313
      %s314 = sphi 0, %s311
      %s315 = sphi 0, %s314
      %s331 = sphi 0, %s315
      %s337 = sphi 0, %s339
      %s340 = sphi 0, %s337
      %s341 = sphi 0, %s340
      %s357 = sphi 0, %s341
      %s363 = sphi 0, %s365
      %s366 = sphi 0, %s363
      %s367 = sphi 0, %s366
      %s383 = sphi 0, %s367
      %s389 = sphi 0, %s391
      %s392 = sphi 0, %s389
      %s393 = sphi 0, %s392
      %s409 = sphi 0, %s393
      %s415 = sphi 0, %s417
      %s418 = sphi 0, %s415
      %s419 = sphi 0, %s418
      %s435 = sphi 0, %s419
      %s439 = sphi 0, %s439
      %s441 = sphi 0, %s439
      %s442 = sphi 0, %s441
      %s456 = sphi 0, %s442
      %s460 = sphi 0, %s460
      %s462 = sphi 0, %s460
      %s463 = sphi 0, %s462
      %s477 = sphi 0, %s463
      %s481 = sphi 0, %s481
      %s483 = sphi 0, %s481
      %s484 = sphi 0, %s483
      %s498 = sphi 0, %s484
      %s502 = sphi 0, %s502
      %s504 = sphi 0, %s502
      %s505 = sphi 0, %s504
      %s519 = sphi 0, %s505
      %s523 = sphi 0, %s523
      %s525 = sphi 0, %s523
      %s526 = sphi 0, %s525
      %s540 = sphi 0, %s526
    $region4: #{box_score_generator_forward.1} parent=1 // loop_header_branch
      %38 = sbr.rel (%p36) target = $region8
    $region5: #{box_score_generator_forward.1} parent=1 // loop_body
      %s40 = ssub.s32 %s35, 1
      %s41 = ssub.s32 %s35, 2
      %s42 = sadd.s32 %s35, 1
      %s44 = sadd.s32 %s43, 1
      %p47 = scmp.eq.s32.totalorder %s35, 7
      %p48 = scmp.ne.s32.totalorder %s43, %s45
      %p49 = scmp.eq.s32.totalorder %s35, 0
      %p50 = por %p48, %p49
      %p51 = scmp.ne.s32.totalorder %s43, %s45
      %p52 = scmp.eq.s32.totalorder %s40, 7
      %p53 = por %p51, %p52
      %p54 = scmp.ne.s32.totalorder %s45, %s46
      %p55 = scmp.eq.s32.totalorder %s40, 0
      %p56 = por %p54, %p55
      %p57 = scmp.ne.s32.totalorder %s45, %s46
      %p58 = scmp.eq.s32.totalorder %s41, 7
      %p59 = por %p57, %p58
      %p61 = scmp.ne.s32.totalorder %s46, %s60
      %p62 = scmp.eq.s32.totalorder %s41, 0
      %p63 = por %p61, %p62
      %s65 = sadd.s32 %s64, 1
      %p68 = scmp.eq.s32.totalorder %s35, 7
      %p69 = scmp.ne.s32.totalorder %s64, %s66
      %p70 = scmp.eq.s32.totalorder %s35, 0
      %p71 = por %p69, %p70
      %p72 = scmp.ne.s32.totalorder %s64, %s66
      %p73 = scmp.eq.s32.totalorder %s40, 7
      %p74 = por %p72, %p73
      %p75 = scmp.ne.s32.totalorder %s66, %s67
      %p76 = scmp.eq.s32.totalorder %s40, 0
      %p77 = por %p75, %p76
      %p78 = scmp.ne.s32.totalorder %s66, %s67
      %p79 = scmp.eq.s32.totalorder %s41, 7
      %p80 = por %p78, %p79
      %p82 = scmp.ne.s32.totalorder %s67, %s81
      %p83 = scmp.eq.s32.totalorder %s41, 0
      %p84 = por %p82, %p83
      %s86 = sadd.s32 %s85, 1
      %p89 = scmp.eq.s32.totalorder %s35, 7
      %p90 = scmp.ne.s32.totalorder %s85, %s87
      %p91 = scmp.eq.s32.totalorder %s35, 0
      %p92 = por %p90, %p91
      %p93 = scmp.ne.s32.totalorder %s85, %s87
      %p94 = scmp.eq.s32.totalorder %s40, 7
      %p95 = por %p93, %p94
      %p96 = scmp.ne.s32.totalorder %s87, %s88
      %p97 = scmp.eq.s32.totalorder %s40, 0
      %p98 = por %p96, %p97
      %p99 = scmp.ne.s32.totalorder %s87, %s88
      %p100 = scmp.eq.s32.totalorder %s41, 7
      %p101 = por %p99, %p100
      %p103 = scmp.ne.s32.totalorder %s88, %s102
      %p104 = scmp.eq.s32.totalorder %s41, 0
      %p105 = por %p103, %p104
      %s107 = sadd.s32 %s106, 1
      %p110 = scmp.eq.s32.totalorder %s35, 7
      %p111 = scmp.ne.s32.totalorder %s106, %s108
      %p112 = scmp.eq.s32.totalorder %s35, 0
      %p113 = por %p111, %p112
      %p114 = scmp.ne.s32.totalorder %s106, %s108
      %p115 = scmp.eq.s32.totalorder %s40, 7
      %p116 = por %p114, %p115
      %p117 = scmp.ne.s32.totalorder %s108, %s109
      %p118 = scmp.eq.s32.totalorder %s40, 0
      %p119 = por %p117, %p118
      %p120 = scmp.ne.s32.totalorder %s108, %s109
      %p121 = scmp.eq.s32.totalorder %s41, 7
      %p122 = por %p120, %p121
      %p124 = scmp.ne.s32.totalorder %s109, %s123
      %p125 = scmp.eq.s32.totalorder %s41, 0
      %p126 = por %p124, %p125
      %s127 = ssub.s32 %s35, %s42
      %p128 = scmp.eq.s32.totalorder %s127, 0
      %s130 = sadd.s32 %s129, 1
      %s131 = scalar_select %p128, %s129, %s130
      %p134 = pneg %p128
      %p135 = scmp.eq.s32.totalorder %s35, 7
      %p136 = por %p134, %p135
      %p137 = scmp.ne.s32.totalorder %s129, %s132
      %p138 = scmp.eq.s32.totalorder %s35, 0
      %p139 = por %p137, %p138
      %p140 = scmp.ne.s32.totalorder %s129, %s132
      %p141 = scmp.eq.s32.totalorder %s40, 7
      %p142 = por %p140, %p141
      %p143 = scmp.ne.s32.totalorder %s132, %s133
      %p144 = scmp.eq.s32.totalorder %s40, 0
      %p145 = por %p143, %p144
      %p146 = scmp.ne.s32.totalorder %s132, %s133
      %p147 = scmp.eq.s32.totalorder %s41, 7
      %p148 = por %p146, %p147
      %p150 = scmp.ne.s32.totalorder %s133, %s149
      %p151 = scmp.eq.s32.totalorder %s41, 0
      %p152 = por %p150, %p151
      %s153 = ssub.s32 %s35, %s42
      %p154 = scmp.eq.s32.totalorder %s153, 0
      %s156 = sadd.s32 %s155, 1
      %s157 = scalar_select %p154, %s155, %s156
      %p160 = pneg %p154
      %p161 = scmp.eq.s32.totalorder %s35, 7
      %p162 = por %p160, %p161
      %p163 = scmp.ne.s32.totalorder %s155, %s158
      %p164 = scmp.eq.s32.totalorder %s35, 0
      %p165 = por %p163, %p164
      %p166 = scmp.ne.s32.totalorder %s155, %s158
      %p167 = scmp.eq.s32.totalorder %s40, 7
      %p168 = por %p166, %p167
      %p169 = scmp.ne.s32.totalorder %s158, %s159
      %p170 = scmp.eq.s32.totalorder %s40, 0
      %p171 = por %p169, %p170
      %p172 = scmp.ne.s32.totalorder %s158, %s159
      %p173 = scmp.eq.s32.totalorder %s41, 7
      %p174 = por %p172, %p173
      %p176 = scmp.ne.s32.totalorder %s159, %s175
      %p177 = scmp.eq.s32.totalorder %s41, 0
      %p178 = por %p176, %p177
      %s179 = ssub.s32 %s35, %s42
      %p180 = scmp.eq.s32.totalorder %s179, 0
      %s182 = sadd.s32 %s181, 1
      %s183 = scalar_select %p180, %s181, %s182
      %p186 = pneg %p180
      %p187 = scmp.eq.s32.totalorder %s35, 7
      %p188 = por %p186, %p187
      %p189 = scmp.ne.s32.totalorder %s181, %s184
      %p190 = scmp.eq.s32.totalorder %s35, 0
      %p191 = por %p189, %p190
      %p192 = scmp.ne.s32.totalorder %s181, %s184
      %p193 = scmp.eq.s32.totalorder %s40, 7
      %p194 = por %p192, %p193
      %p195 = scmp.ne.s32.totalorder %s184, %s185
      %p196 = scmp.eq.s32.totalorder %s40, 0
      %p197 = por %p195, %p196
      %p198 = scmp.ne.s32.totalorder %s184, %s185
      %p199 = scmp.eq.s32.totalorder %s41, 7
      %p200 = por %p198, %p199
      %p202 = scmp.ne.s32.totalorder %s185, %s201
      %p203 = scmp.eq.s32.totalorder %s41, 0
      %p204 = por %p202, %p203
      %s205 = ssub.s32 %s35, %s42
      %p206 = scmp.eq.s32.totalorder %s205, 0
      %s208 = sadd.s32 %s207, 1
      %s209 = scalar_select %p206, %s207, %s208
      %p212 = pneg %p206
      %p213 = scmp.eq.s32.totalorder %s35, 7
      %p214 = por %p212, %p213
      %p215 = scmp.ne.s32.totalorder %s207, %s210
      %p216 = scmp.eq.s32.totalorder %s35, 0
      %p217 = por %p215, %p216
      %p218 = scmp.ne.s32.totalorder %s207, %s210
      %p219 = scmp.eq.s32.totalorder %s40, 7
      %p220 = por %p218, %p219
      %p221 = scmp.ne.s32.totalorder %s210, %s211
      %p222 = scmp.eq.s32.totalorder %s40, 0
      %p223 = por %p221, %p222
      %p224 = scmp.ne.s32.totalorder %s210, %s211
      %p225 = scmp.eq.s32.totalorder %s41, 7
      %p226 = por %p224, %p225
      %p228 = scmp.ne.s32.totalorder %s211, %s227
      %p229 = scmp.eq.s32.totalorder %s41, 0
      %p230 = por %p228, %p229
      %s231 = ssub.s32 %s35, %s42
      %p232 = scmp.eq.s32.totalorder %s231, 0
      %s234 = sadd.s32 %s233, 1
      %s235 = scalar_select %p232, %s233, %s234
      %p238 = pneg %p232
      %p239 = scmp.eq.s32.totalorder %s35, 7
      %p240 = por %p238, %p239
      %p241 = scmp.ne.s32.totalorder %s233, %s236
      %p242 = scmp.eq.s32.totalorder %s35, 0
      %p243 = por %p241, %p242
      %p244 = scmp.ne.s32.totalorder %s233, %s236
      %p245 = scmp.eq.s32.totalorder %s40, 7
      %p246 = por %p244, %p245
      %p247 = scmp.ne.s32.totalorder %s236, %s237
      %p248 = scmp.eq.s32.totalorder %s40, 0
      %p249 = por %p247, %p248
      %p250 = scmp.ne.s32.totalorder %s236, %s237
      %p251 = scmp.eq.s32.totalorder %s41, 7
      %p252 = por %p250, %p251
      %p254 = scmp.ne.s32.totalorder %s237, %s253
      %p255 = scmp.eq.s32.totalorder %s41, 0
      %p256 = por %p254, %p255
      %s257 = ssub.s32 %s35, %s42
      %p258 = scmp.eq.s32.totalorder %s257, 0
      %s260 = sadd.s32 %s259, 1
      %s261 = scalar_select %p258, %s259, %s260
      %p264 = pneg %p258
      %p265 = scmp.eq.s32.totalorder %s35, 7
      %p266 = por %p264, %p265
      %p267 = scmp.ne.s32.totalorder %s259, %s262
      %p268 = scmp.eq.s32.totalorder %s35, 0
      %p269 = por %p267, %p268
      %p270 = scmp.ne.s32.totalorder %s259, %s262
      %p271 = scmp.eq.s32.totalorder %s40, 7
      %p272 = por %p270, %p271
      %p273 = scmp.ne.s32.totalorder %s262, %s263
      %p274 = scmp.eq.s32.totalorder %s40, 0
      %p275 = por %p273, %p274
      %p276 = scmp.ne.s32.totalorder %s262, %s263
      %p277 = scmp.eq.s32.totalorder %s41, 7
      %p278 = por %p276, %p277
      %p280 = scmp.ne.s32.totalorder %s263, %s279
      %p281 = scmp.eq.s32.totalorder %s41, 0
      %p282 = por %p280, %p281
      %s283 = ssub.s32 %s35, %s42
      %p284 = scmp.eq.s32.totalorder %s283, 0
      %s286 = sadd.s32 %s285, 1
      %s287 = scalar_select %p284, %s285, %s286
      %p290 = pneg %p284
      %p291 = scmp.eq.s32.totalorder %s35, 7
      %p292 = por %p290, %p291
      %p293 = scmp.ne.s32.totalorder %s285, %s288
      %p294 = scmp.eq.s32.totalorder %s35, 0
      %p295 = por %p293, %p294
      %p296 = scmp.ne.s32.totalorder %s285, %s288
      %p297 = scmp.eq.s32.totalorder %s40, 7
      %p298 = por %p296, %p297
      %p299 = scmp.ne.s32.totalorder %s288, %s289
      %p300 = scmp.eq.s32.totalorder %s40, 0
      %p301 = por %p299, %p300
      %p302 = scmp.ne.s32.totalorder %s288, %s289
      %p303 = scmp.eq.s32.totalorder %s41, 7
      %p304 = por %p302, %p303
      %p306 = scmp.ne.s32.totalorder %s289, %s305
      %p307 = scmp.eq.s32.totalorder %s41, 0
      %p308 = por %p306, %p307
      %s309 = ssub.s32 %s35, %s42
      %p310 = scmp.eq.s32.totalorder %s309, 0
      %s312 = sadd.s32 %s311, 1
      %s313 = scalar_select %p310, %s311, %s312
      %p316 = pneg %p310
      %p317 = scmp.eq.s32.totalorder %s35, 7
      %p318 = por %p316, %p317
      %p319 = scmp.ne.s32.totalorder %s311, %s314
      %p320 = scmp.eq.s32.totalorder %s35, 0
      %p321 = por %p319, %p320
      %p322 = scmp.ne.s32.totalorder %s311, %s314
      %p323 = scmp.eq.s32.totalorder %s40, 7
      %p324 = por %p322, %p323
      %p325 = scmp.ne.s32.totalorder %s314, %s315
      %p326 = scmp.eq.s32.totalorder %s40, 0
      %p327 = por %p325, %p326
      %p328 = scmp.ne.s32.totalorder %s314, %s315
      %p329 = scmp.eq.s32.totalorder %s41, 7
      %p330 = por %p328, %p329
      %p332 = scmp.ne.s32.totalorder %s315, %s331
      %p333 = scmp.eq.s32.totalorder %s41, 0
      %p334 = por %p332, %p333
      %s335 = ssub.s32 %s35, %s42
      %p336 = scmp.eq.s32.totalorder %s335, 0
      %s338 = sadd.s32 %s337, 1
      %s339 = scalar_select %p336, %s337, %s338
      %p342 = pneg %p336
      %p343 = scmp.eq.s32.totalorder %s35, 7
      %p344 = por %p342, %p343
      %p345 = scmp.ne.s32.totalorder %s337, %s340
      %p346 = scmp.eq.s32.totalorder %s35, 0
      %p347 = por %p345, %p346
      %p348 = scmp.ne.s32.totalorder %s337, %s340
      %p349 = scmp.eq.s32.totalorder %s40, 7
      %p350 = por %p348, %p349
      %p351 = scmp.ne.s32.totalorder %s340, %s341
      %p352 = scmp.eq.s32.totalorder %s40, 0
      %p353 = por %p351, %p352
      %p354 = scmp.ne.s32.totalorder %s340, %s341
      %p355 = scmp.eq.s32.totalorder %s41, 7
      %p356 = por %p354, %p355
      %p358 = scmp.ne.s32.totalorder %s341, %s357
      %p359 = scmp.eq.s32.totalorder %s41, 0
      %p360 = por %p358, %p359
      %s361 = ssub.s32 %s35, %s42
      %p362 = scmp.eq.s32.totalorder %s361, 0
      %s364 = sadd.s32 %s363, 1
      %s365 = scalar_select %p362, %s363, %s364
      %p368 = pneg %p362
      %p369 = scmp.eq.s32.totalorder %s35, 7
      %p370 = por %p368, %p369
      %p371 = scmp.ne.s32.totalorder %s363, %s366
      %p372 = scmp.eq.s32.totalorder %s35, 0
      %p373 = por %p371, %p372
      %p374 = scmp.ne.s32.totalorder %s363, %s366
      %p375 = scmp.eq.s32.totalorder %s40, 7
      %p376 = por %p374, %p375
      %p377 = scmp.ne.s32.totalorder %s366, %s367
      %p378 = scmp.eq.s32.totalorder %s40, 0
      %p379 = por %p377, %p378
      %p380 = scmp.ne.s32.totalorder %s366, %s367
      %p381 = scmp.eq.s32.totalorder %s41, 7
      %p382 = por %p380, %p381
      %p384 = scmp.ne.s32.totalorder %s367, %s383
      %p385 = scmp.eq.s32.totalorder %s41, 0
      %p386 = por %p384, %p385
      %s387 = ssub.s32 %s35, %s42
      %p388 = scmp.eq.s32.totalorder %s387, 0
      %s390 = sadd.s32 %s389, 1
      %s391 = scalar_select %p388, %s389, %s390
      %p394 = pneg %p388
      %p395 = scmp.eq.s32.totalorder %s35, 7
      %p396 = por %p394, %p395
      %p397 = scmp.ne.s32.totalorder %s389, %s392
      %p398 = scmp.eq.s32.totalorder %s35, 0
      %p399 = por %p397, %p398
      %p400 = scmp.ne.s32.totalorder %s389, %s392
      %p401 = scmp.eq.s32.totalorder %s40, 7
      %p402 = por %p400, %p401
      %p403 = scmp.ne.s32.totalorder %s392, %s393
      %p404 = scmp.eq.s32.totalorder %s40, 0
      %p405 = por %p403, %p404
      %p406 = scmp.ne.s32.totalorder %s392, %s393
      %p407 = scmp.eq.s32.totalorder %s41, 7
      %p408 = por %p406, %p407
      %p410 = scmp.ne.s32.totalorder %s393, %s409
      %p411 = scmp.eq.s32.totalorder %s41, 0
      %p412 = por %p410, %p411
      %s413 = ssub.s32 %s35, %s42
      %p414 = scmp.eq.s32.totalorder %s413, 0
      %s416 = sadd.s32 %s415, 1
      %s417 = scalar_select %p414, %s415, %s416
      %p420 = pneg %p414
      %p421 = scmp.eq.s32.totalorder %s35, 7
      %p422 = por %p420, %p421
      %p423 = scmp.ne.s32.totalorder %s415, %s418
      %p424 = scmp.eq.s32.totalorder %s35, 0
      %p425 = por %p423, %p424
      %p426 = scmp.ne.s32.totalorder %s415, %s418
      %p427 = scmp.eq.s32.totalorder %s40, 7
      %p428 = por %p426, %p427
      %p429 = scmp.ne.s32.totalorder %s418, %s419
      %p430 = scmp.eq.s32.totalorder %s40, 0
      %p431 = por %p429, %p430
      %p432 = scmp.ne.s32.totalorder %s418, %s419
      %p433 = scmp.eq.s32.totalorder %s41, 7
      %p434 = por %p432, %p433
      %p436 = scmp.ne.s32.totalorder %s419, %s435
      %p437 = scmp.eq.s32.totalorder %s41, 0
      %p438 = por %p436, %p437
      %s440 = sadd.s32 %s439, 1
      %p443 = scmp.eq.s32.totalorder %s35, 7
      %p444 = scmp.ne.s32.totalorder %s439, %s441
      %p445 = scmp.eq.s32.totalorder %s35, 0
      %p446 = por %p444, %p445
      %p447 = scmp.ne.s32.totalorder %s439, %s441
      %p448 = scmp.eq.s32.totalorder %s40, 7
      %p449 = por %p447, %p448
      %p450 = scmp.ne.s32.totalorder %s441, %s442
      %p451 = scmp.eq.s32.totalorder %s40, 0
      %p452 = por %p450, %p451
      %p453 = scmp.ne.s32.totalorder %s441, %s442
      %p454 = scmp.eq.s32.totalorder %s41, 7
      %p455 = por %p453, %p454
      %p457 = scmp.ne.s32.totalorder %s442, %s456
      %p458 = scmp.eq.s32.totalorder %s41, 0
      %p459 = por %p457, %p458
      %s461 = sadd.s32 %s460, 1
      %p464 = scmp.eq.s32.totalorder %s35, 7
      %p465 = scmp.ne.s32.totalorder %s460, %s462
      %p466 = scmp.eq.s32.totalorder %s35, 0
      %p467 = por %p465, %p466
      %p468 = scmp.ne.s32.totalorder %s460, %s462
      %p469 = scmp.eq.s32.totalorder %s40, 7
      %p470 = por %p468, %p469
      %p471 = scmp.ne.s32.totalorder %s462, %s463
      %p472 = scmp.eq.s32.totalorder %s40, 0
      %p473 = por %p471, %p472
      %p474 = scmp.ne.s32.totalorder %s462, %s463
      %p475 = scmp.eq.s32.totalorder %s41, 7
      %p476 = por %p474, %p475
      %p478 = scmp.ne.s32.totalorder %s463, %s477
      %p479 = scmp.eq.s32.totalorder %s41, 0
      %p480 = por %p478, %p479
      %s482 = sadd.s32 %s481, 1
      %p485 = scmp.eq.s32.totalorder %s35, 7
      %p486 = scmp.ne.s32.totalorder %s481, %s483
      %p487 = scmp.eq.s32.totalorder %s35, 0
      %p488 = por %p486, %p487
      %p489 = scmp.ne.s32.totalorder %s481, %s483
      %p490 = scmp.eq.s32.totalorder %s40, 7
      %p491 = por %p489, %p490
      %p492 = scmp.ne.s32.totalorder %s483, %s484
      %p493 = scmp.eq.s32.totalorder %s40, 0
      %p494 = por %p492, %p493
      %p495 = scmp.ne.s32.totalorder %s483, %s484
      %p496 = scmp.eq.s32.totalorder %s41, 7
      %p497 = por %p495, %p496
      %p499 = scmp.ne.s32.totalorder %s484, %s498
      %p500 = scmp.eq.s32.totalorder %s41, 0
      %p501 = por %p499, %p500
      %s503 = sadd.s32 %s502, 1
      %p506 = scmp.eq.s32.totalorder %s35, 7
      %p507 = scmp.ne.s32.totalorder %s502, %s504
      %p508 = scmp.eq.s32.totalorder %s35, 0
      %p509 = por %p507, %p508
      %p510 = scmp.ne.s32.totalorder %s502, %s504
      %p511 = scmp.eq.s32.totalorder %s40, 7
      %p512 = por %p510, %p511
      %p513 = scmp.ne.s32.totalorder %s504, %s505
      %p514 = scmp.eq.s32.totalorder %s40, 0
      %p515 = por %p513, %p514
      %p516 = scmp.ne.s32.totalorder %s504, %s505
      %p517 = scmp.eq.s32.totalorder %s41, 7
      %p518 = por %p516, %p517
      %p520 = scmp.ne.s32.totalorder %s505, %s519
      %p521 = scmp.eq.s32.totalorder %s41, 0
      %p522 = por %p520, %p521
      %s524 = sadd.s32 %s523, 1
      %p527 = scmp.eq.s32.totalorder %s35, 7
      %p528 = scmp.ne.s32.totalorder %s523, %s525
      %p529 = scmp.eq.s32.totalorder %s35, 0
      %p530 = por %p528, %p529
      %p531 = scmp.ne.s32.totalorder %s523, %s525
      %p532 = scmp.eq.s32.totalorder %s40, 7
      %p533 = por %p531, %p532
      %p534 = scmp.ne.s32.totalorder %s525, %s526
      %p535 = scmp.eq.s32.totalorder %s40, 0
      %p536 = por %p534, %p535
      %p537 = scmp.ne.s32.totalorder %s525, %s526
      %p538 = scmp.eq.s32.totalorder %s41, 7
      %p539 = por %p537, %p538
      %p541 = scmp.ne.s32.totalorder %s526, %s540
      %p542 = scmp.eq.s32.totalorder %s41, 0
      %p543 = por %p541, %p542
      %p544 = scmp.le.s32.totalorder 1, %s35
      %p545 = scmp.lt.s32.totalorder %s35, 9
      %p546 = pnand %p544, %p545
      %p547 = pneg %p546
      // Predicated region
      $region9: #{box_score_generator_forward.1} parent=5 // pred_check
        _
      $region10: #{box_score_generator_forward.1} parent=5 // pred_check_branch
        %549 = sbr.rel (%p546) target = $region12
      $region11: #{box_score_generator_forward.1} parent=5 // pred_region
        %s550 = ssub.s32 %s35, 1
        // Predicated region
        $region13: #{box_score_generator_forward.1} parent=11 // pred_check
          %p551 = pneg %p56
        $region14: #{box_score_generator_forward.1} parent=11 // pred_check_branch
          %553 = sbr.rel (%p551) target = $region16
        $region15: #{box_score_generator_forward.1} parent=11 // pred_region
          _
        $region16: #{box_score_generator_forward.1} parent=11 // pred_fallthru
          _
        // Predicated region
        $region17: #{box_score_generator_forward.1} parent=11 // pred_check
          %p554 = pneg %p77
        $region18: #{box_score_generator_forward.1} parent=11 // pred_check_branch
          %556 = sbr.rel (%p554) target = $region20
        $region19: #{box_score_generator_forward.1} parent=11 // pred_region
          _
        $region20: #{box_score_generator_forward.1} parent=11 // pred_fallthru
          _
        // Predicated region
        $region21: #{box_score_generator_forward.1} parent=11 // pred_check
          %p557 = pneg %p98
        $region22: #{box_score_generator_forward.1} parent=11 // pred_check_branch
          %559 = sbr.rel (%p557) target = $region24
        $region23: #{box_score_generator_forward.1} parent=11 // pred_region
          _
        $region24: #{box_score_generator_forward.1} parent=11 // pred_fallthru
          _
        // Predicated region
        $region25: #{box_score_generator_forward.1} parent=11 // pred_check
          %p560 = pneg %p119
        $region26: #{box_score_generator_forward.1} parent=11 // pred_check_branch
          %562 = sbr.rel (%p560) target = $region28
        $region27: #{box_score_generator_forward.1} parent=11 // pred_region
          _
        $region28: #{box_score_generator_forward.1} parent=11 // pred_fallthru
          _
        // Predicated region
        $region29: #{box_score_generator_forward.1} parent=11 // pred_check
          %p563 = pneg %p452
        $region30: #{box_score_generator_forward.1} parent=11 // pred_check_branch
          %565 = sbr.rel (%p563) target = $region32
        $region31: #{box_score_generator_forward.1} parent=11 // pred_region
          _
        $region32: #{box_score_generator_forward.1} parent=11 // pred_fallthru
          _
        // Predicated region
        $region33: #{box_score_generator_forward.1} parent=11 // pred_check
          %p566 = pneg %p473
        $region34: #{box_score_generator_forward.1} parent=11 // pred_check_branch
          %568 = sbr.rel (%p566) target = $region36
        $region35: #{box_score_generator_forward.1} parent=11 // pred_region
          _
        $region36: #{box_score_generator_forward.1} parent=11 // pred_fallthru
          _
        // Predicated region
        $region37: #{box_score_generator_forward.1} parent=11 // pred_check
          %p569 = pneg %p494
        $region38: #{box_score_generator_forward.1} parent=11 // pred_check_branch
          %571 = sbr.rel (%p569) target = $region40
        $region39: #{box_score_generator_forward.1} parent=11 // pred_region
          _
        $region40: #{box_score_generator_forward.1} parent=11 // pred_fallthru
          _
        // Predicated region
        $region41: #{box_score_generator_forward.1} parent=11 // pred_check
          %p572 = pneg %p515
        $region42: #{box_score_generator_forward.1} parent=11 // pred_check_branch
          %574 = sbr.rel (%p572) target = $region44
        $region43: #{box_score_generator_forward.1} parent=11 // pred_region
          _
        $region44: #{box_score_generator_forward.1} parent=11 // pred_fallthru
          _
      $region12: #{box_score_generator_forward.1} parent=5 // pred_fallthru
        _
      %p575 = scmp.lt.s32.totalorder %s35, 8
      // Predicated region
      $region45: #{box_score_generator_forward.1} parent=5 // pred_check
        %p576 = pneg %p575
      $region46: #{box_score_generator_forward.1} parent=5 // pred_check_branch
        %578 = sbr.rel (%p576) target = $region48
      $region47: #{box_score_generator_forward.1} parent=5 // pred_region
        // Predicated region
        $region49: #{box_score_generator_forward.1} parent=47 // pred_check
          %p579 = pneg %p139
        $region50: #{box_score_generator_forward.1} parent=47 // pred_check_branch
          %581 = sbr.rel (%p579) target = $region52
        $region51: #{box_score_generator_forward.1} parent=47 // pred_region
          %s582 = sand.u32 %s129, 1
          %s583 = scalar_lea.sflag [#allocation4], %s582
          %s584 = sand.u32 %s129, 1
          %s585 = smul.addr %s584, 192
          %s586 = scalar_lea.vmem [#allocation3], %s585
          %588 = vsyncadd %s583, 0
          %s589 = smul.addr %s35, 48
          %s590 = smul.addr %s589, 4
          %s591 = scalar_lea.hbm %s4, %s590
          %s592 = sshll.u32 %s591, 4
          %s593 = int_to_ptr.hbm [resolvable:$true] %s592
          %s594 = sshll.u32 %s586, 4
          %s595 = int_to_ptr.vmem [resolvable:$true] %s594
          %600 = dma.hbm_to_vmem [thread:$0]  %s593, 3072, %s595, %s583, 192, 192, 12
        $region52: #{box_score_generator_forward.1} parent=47 // pred_fallthru
          _
        // Predicated region
        $region53: #{box_score_generator_forward.1} parent=47 // pred_check
          %p601 = pneg %p165
        $region54: #{box_score_generator_forward.1} parent=47 // pred_check_branch
          %603 = sbr.rel (%p601) target = $region56
        $region55: #{box_score_generator_forward.1} parent=47 // pred_region
          %p604 = scmp.lt.s32.totalorder %s35, 7
          %s605 = scalar_select %p604, %s35, 7
          %s606 = smul.addr %s605, 3
          %s607 = scalar_lea.vmem %s5, %s606
        $region56: #{box_score_generator_forward.1} parent=47 // pred_fallthru
          _
        // Predicated region
        $region57: #{box_score_generator_forward.1} parent=47 // pred_check
          %p608 = pneg %p191
        $region58: #{box_score_generator_forward.1} parent=47 // pred_check_branch
          %610 = sbr.rel (%p608) target = $region60
        $region59: #{box_score_generator_forward.1} parent=47 // pred_region
          %s611 = sand.u32 %s35, 1
          %s612 = scalar_lea.sflag [#allocation6], %s611
          %s613 = sand.u32 %s181, 1
          %s614 = smul.addr %s613, 64
          %s615 = scalar_lea.vmem [#allocation5], %s614
          %617 = vsyncadd %s612, 0
          %s618 = smul.addr %s35, 16
          %s619 = smul.addr %s618, 4
          %s620 = scalar_lea.hbm %s6, %s619
          %s621 = sshll.u32 %s620, 4
          %s622 = int_to_ptr.hbm [resolvable:$true] %s621
          %s623 = sshll.u32 %s615, 4
          %s624 = int_to_ptr.vmem [resolvable:$true] %s623
          %629 = dma.hbm_to_vmem [thread:$0]  %s622, 1024, %s624, %s612, 64, 64, 4
        $region60: #{box_score_generator_forward.1} parent=47 // pred_fallthru
          _
        // Predicated region
        $region61: #{box_score_generator_forward.1} parent=47 // pred_check
          %p630 = pneg %p217
        $region62: #{box_score_generator_forward.1} parent=47 // pred_check_branch
          %632 = sbr.rel (%p630) target = $region64
        $region63: #{box_score_generator_forward.1} parent=47 // pred_region
          %p633 = scmp.lt.s32.totalorder %s35, 7
          %s634 = scalar_select %p633, %s35, 7
          %s635 = scalar_lea.vmem %s7, %s634
        $region64: #{box_score_generator_forward.1} parent=47 // pred_fallthru
          _
        // Predicated region
        $region65: #{box_score_generator_forward.1} parent=47 // pred_check
          %p636 = pneg %p243
        $region66: #{box_score_generator_forward.1} parent=47 // pred_check_branch
          %638 = sbr.rel (%p636) target = $region68
        $region67: #{box_score_generator_forward.1} parent=47 // pred_region
          %p639 = scmp.lt.s32.totalorder %s35, 7
          %s640 = scalar_select %p639, %s35, 7
          %s641 = scalar_lea.vmem %s8, %s640
        $region68: #{box_score_generator_forward.1} parent=47 // pred_fallthru
          _
        // Predicated region
        $region69: #{box_score_generator_forward.1} parent=47 // pred_check
          %p642 = pneg %p269
        $region70: #{box_score_generator_forward.1} parent=47 // pred_check_branch
          %644 = sbr.rel (%p642) target = $region72
        $region71: #{box_score_generator_forward.1} parent=47 // pred_region
          %p645 = scmp.lt.s32.totalorder %s35, 7
          %s646 = scalar_select %p645, %s35, 7
          %s647 = scalar_lea.vmem %s9, %s646
        $region72: #{box_score_generator_forward.1} parent=47 // pred_fallthru
          _
        // Predicated region
        $region73: #{box_score_generator_forward.1} parent=47 // pred_check
          %p648 = pneg %p295
        $region74: #{box_score_generator_forward.1} parent=47 // pred_check_branch
          %650 = sbr.rel (%p648) target = $region76
        $region75: #{box_score_generator_forward.1} parent=47 // pred_region
          %s651 = sand.u32 %s35, 1
          %s652 = scalar_lea.sflag [#allocation6], %s651
          %s653 = sand.u32 %s285, 1
          %s654 = smul.addr %s653, 256
          %s655 = scalar_lea.vmem [#allocation7], %s654
          %657 = vsyncadd %s652, 0
          %s658 = smul.addr %s35, 64
          %s659 = smul.addr %s658, 4
          %s660 = scalar_lea.hbm %s10, %s659
          %s661 = sshll.u32 %s660, 4
          %s662 = int_to_ptr.hbm [resolvable:$true] %s661
          %s663 = sshll.u32 %s655, 4
          %s664 = int_to_ptr.vmem [resolvable:$true] %s663
          %669 = dma.hbm_to_vmem [thread:$0]  %s662, 4096, %s664, %s652, 256, 256, 16
        $region76: #{box_score_generator_forward.1} parent=47 // pred_fallthru
          _
        // Predicated region
        $region77: #{box_score_generator_forward.1} parent=47 // pred_check
          %p670 = pneg %p321
        $region78: #{box_score_generator_forward.1} parent=47 // pred_check_branch
          %672 = sbr.rel (%p670) target = $region80
        $region79: #{box_score_generator_forward.1} parent=47 // pred_region
          %p673 = scmp.lt.s32.totalorder %s35, 7
          %s674 = scalar_select %p673, %s35, 7
          %s675 = smul.addr %s674, 4
          %s676 = scalar_lea.vmem %s11, %s675
        $region80: #{box_score_generator_forward.1} parent=47 // pred_fallthru
          _
        // Predicated region
        $region81: #{box_score_generator_forward.1} parent=47 // pred_check
          %p677 = pneg %p347
        $region82: #{box_score_generator_forward.1} parent=47 // pred_check_branch
          %679 = sbr.rel (%p677) target = $region84
        $region83: #{box_score_generator_forward.1} parent=47 // pred_region
          %s680 = sand.u32 %s337, 1
          %s681 = scalar_lea.sflag [#allocation9], %s680
          %s682 = sand.u32 %s337, 1
          %s683 = smul.addr %s682, 256
          %s684 = scalar_lea.vmem [#allocation8], %s683
          %686 = vsyncadd %s681, 0
          %s687 = smul.addr %s35, 64
          %s688 = smul.addr %s687, 4
          %s689 = scalar_lea.hbm %s12, %s688
          %s690 = sshll.u32 %s689, 4
          %s691 = int_to_ptr.hbm [resolvable:$true] %s690
          %s692 = sshll.u32 %s684, 4
          %s693 = int_to_ptr.vmem [resolvable:$true] %s692
          %698 = dma.hbm_to_vmem [thread:$0]  %s691, 4096, %s693, %s681, 64, 64, 4
        $region84: #{box_score_generator_forward.1} parent=47 // pred_fallthru
          _
        // Predicated region
        $region85: #{box_score_generator_forward.1} parent=47 // pred_check
          %p699 = pneg %p373
        $region86: #{box_score_generator_forward.1} parent=47 // pred_check_branch
          %701 = sbr.rel (%p699) target = $region88
        $region87: #{box_score_generator_forward.1} parent=47 // pred_region
          %p702 = scmp.lt.s32.totalorder %s35, 7
          %s703 = scalar_select %p702, %s35, 7
          %s704 = scalar_lea.vmem %s13, %s703
        $region88: #{box_score_generator_forward.1} parent=47 // pred_fallthru
          _
        // Predicated region
        $region89: #{box_score_generator_forward.1} parent=47 // pred_check
          %p705 = pneg %p399
        $region90: #{box_score_generator_forward.1} parent=47 // pred_check_branch
          %707 = sbr.rel (%p705) target = $region92
        $region91: #{box_score_generator_forward.1} parent=47 // pred_region
          %p708 = scmp.lt.s32.totalorder %s35, 7
          %s709 = scalar_select %p708, %s35, 7
          %s710 = scalar_lea.vmem %s14, %s709
        $region92: #{box_score_generator_forward.1} parent=47 // pred_fallthru
          _
        // Predicated region
        $region93: #{box_score_generator_forward.1} parent=47 // pred_check
          %p711 = pneg %p425
        $region94: #{box_score_generator_forward.1} parent=47 // pred_check_branch
          %713 = sbr.rel (%p711) target = $region96
        $region95: #{box_score_generator_forward.1} parent=47 // pred_region
          %p714 = scmp.lt.s32.totalorder %s35, 7
          %s715 = scalar_select %p714, %s35, 7
          %s716 = scalar_lea.vmem %s15, %s715
        $region96: #{box_score_generator_forward.1} parent=47 // pred_fallthru
          _
      $region48: #{box_score_generator_forward.1} parent=5 // pred_fallthru
        _
      %p717 = scmp.le.s32.totalorder 1, %s35
      %p718 = scmp.lt.s32.totalorder %s35, 9
      %p719 = pnand %p717, %p718
      %p720 = pneg %p719
      // Predicated region
      $region97: #{box_score_generator_forward.1} parent=5 // pred_check
        _
      $region98: #{box_score_generator_forward.1} parent=5 // pred_check_branch
        %722 = sbr.rel (%p719) target = $region100
      $region99: #{box_score_generator_forward.1} parent=5 // pred_region
        %s723 = ssub.s32 %s35, 1
        %s724 = sand.u32 %s132, 1
        %s725 = scalar_lea.sflag [#allocation4], %s724
        %s726 = sand.u32 %s132, 1
        %s727 = smul.addr %s726, 192
        %s728 = scalar_lea.vmem [#allocation3], %s727
        // Predicated region
        $region101: #{box_score_generator_forward.1} parent=99 // pred_check
          %p729 = pneg %p145
        $region102: #{box_score_generator_forward.1} parent=99 // pred_check_branch
          %731 = sbr.rel (%p729) target = $region104
        $region103: #{box_score_generator_forward.1} parent=99 // pred_region
          %733 = dma.done %s725, 3072
        $region104: #{box_score_generator_forward.1} parent=99 // pred_fallthru
          _
        %s734 = sand.u32 %s40, 1
        %s735 = scalar_lea.sflag [#allocation6], %s734
        %s736 = sand.u32 %s184, 1
        %s737 = smul.addr %s736, 64
        %s738 = scalar_lea.vmem [#allocation5], %s737
        // Predicated region
        $region105: #{box_score_generator_forward.1} parent=99 // pred_check
          %p739 = pneg %p197
        $region106: #{box_score_generator_forward.1} parent=99 // pred_check_branch
          %741 = sbr.rel (%p739) target = $region108
        $region107: #{box_score_generator_forward.1} parent=99 // pred_region
          %743 = dma.done %s735, 1024
        $region108: #{box_score_generator_forward.1} parent=99 // pred_fallthru
          _
        %s744 = sand.u32 %s40, 1
        %s745 = scalar_lea.sflag [#allocation6], %s744
        %s746 = sand.u32 %s288, 1
        %s747 = smul.addr %s746, 256
        %s748 = scalar_lea.vmem [#allocation7], %s747
        // Predicated region
        $region109: #{box_score_generator_forward.1} parent=99 // pred_check
          %p749 = pneg %p301
        $region110: #{box_score_generator_forward.1} parent=99 // pred_check_branch
          %751 = sbr.rel (%p749) target = $region112
        $region111: #{box_score_generator_forward.1} parent=99 // pred_region
          %753 = dma.done %s745, 4096
        $region112: #{box_score_generator_forward.1} parent=99 // pred_fallthru
          _
        %s754 = sand.u32 %s340, 1
        %s755 = scalar_lea.sflag [#allocation9], %s754
        %s756 = sand.u32 %s340, 1
        %s757 = smul.addr %s756, 256
        %s758 = scalar_lea.vmem [#allocation8], %s757
        // Predicated region
        $region113: #{box_score_generator_forward.1} parent=99 // pred_check
          %p759 = pneg %p353
        $region114: #{box_score_generator_forward.1} parent=99 // pred_check_branch
          %761 = sbr.rel (%p759) target = $region116
        $region115: #{box_score_generator_forward.1} parent=99 // pred_region
          %763 = dma.done %s755, 4096
        $region116: #{box_score_generator_forward.1} parent=99 // pred_fallthru
          _
        %p764 = pneg %p56
        %p765 = pneg %p53
        %p766 = pneg %p77
        %p767 = pneg %p74
        %p768 = pneg %p98
        %p769 = pneg %p95
        %p770 = pneg %p119
        %p771 = pneg %p116
        %s772 = sand.u32 %s132, 1
        %s773 = scalar_lea.sflag [#allocation4], %s772
        %s774 = sand.u32 %s132, 1
        %s775 = smul.addr %s774, 192
        %s776 = scalar_lea.vmem [#allocation3], %s775
        %p777 = pneg %p145
        %p778 = pneg %p142
        %p779 = scmp.lt.s32.totalorder %s40, 7
        %s780 = scalar_select %p779, %s40, 7
        %s781 = smul.addr %s780, 3
        %s782 = scalar_lea.vmem %s5, %s781
        %p783 = pneg %p171
        %p784 = pneg %p168
        %s785 = sand.u32 %s40, 1
        %s786 = scalar_lea.sflag [#allocation6], %s785
        %s787 = sand.u32 %s184, 1
        %s788 = smul.addr %s787, 64
        %s789 = scalar_lea.vmem [#allocation5], %s788
        %p790 = pneg %p197
        %p791 = pneg %p194
        %p792 = scmp.lt.s32.totalorder %s40, 7
        %s793 = scalar_select %p792, %s40, 7
        %s794 = scalar_lea.vmem %s7, %s793
        %p795 = pneg %p223
        %p796 = pneg %p220
        %p797 = scmp.lt.s32.totalorder %s40, 7
        %s798 = scalar_select %p797, %s40, 7
        %s799 = scalar_lea.vmem %s8, %s798
        %p800 = pneg %p249
        %p801 = pneg %p246
        %p802 = scmp.lt.s32.totalorder %s40, 7
        %s803 = scalar_select %p802, %s40, 7
        %s804 = scalar_lea.vmem %s9, %s803
        %p805 = pneg %p275
        %p806 = pneg %p272
        %s807 = sand.u32 %s40, 1
        %s808 = scalar_lea.sflag [#allocation6], %s807
        %s809 = sand.u32 %s288, 1
        %s810 = smul.addr %s809, 256
        %s811 = scalar_lea.vmem [#allocation7], %s810
        %p812 = pneg %p301
        %p813 = pneg %p298
        %p814 = scmp.lt.s32.totalorder %s40, 7
        %s815 = scalar_select %p814, %s40, 7
        %s816 = smul.addr %s815, 4
        %s817 = scalar_lea.vmem %s11, %s816
        %p818 = pneg %p327
        %p819 = pneg %p324
        %s820 = sand.u32 %s340, 1
        %s821 = scalar_lea.sflag [#allocation9], %s820
        %s822 = sand.u32 %s340, 1
        %s823 = smul.addr %s822, 256
        %s824 = scalar_lea.vmem [#allocation8], %s823
        %p825 = pneg %p353
        %p826 = pneg %p350
        %p827 = scmp.lt.s32.totalorder %s40, 7
        %s828 = scalar_select %p827, %s40, 7
        %s829 = scalar_lea.vmem %s13, %s828
        %p830 = pneg %p379
        %p831 = pneg %p376
        %p832 = scmp.lt.s32.totalorder %s40, 7
        %s833 = scalar_select %p832, %s40, 7
        %s834 = scalar_lea.vmem %s14, %s833
        %p835 = pneg %p405
        %p836 = pneg %p402
        %p837 = scmp.lt.s32.totalorder %s40, 7
        %s838 = scalar_select %p837, %s40, 7
        %s839 = scalar_lea.vmem %s15, %s838
        %p840 = pneg %p431
        %p841 = pneg %p428
        %p842 = pneg %p452
        %p843 = pneg %p449
        %p844 = pneg %p473
        %p845 = pneg %p470
        %p846 = pneg %p494
        %p847 = pneg %p491
        %p848 = pneg %p515
        %p849 = pneg %p512
        %p850 = pneg %p536
        %p851 = pneg %p533
        %p852 = scmp.lt.s32.totalorder %s40, 7
        %s853 = scalar_select %p852, %s40, 7
        %s854 = smul.addr %s853, 3
        %s855 = scalar_lea.vmem %s5, %s854
        %p856 = scmp.lt.s32.totalorder %s40, 7
        %s857 = scalar_select %p856, %s40, 7
        %s858 = scalar_lea.vmem %s7, %s857
        %p859 = scmp.lt.s32.totalorder %s40, 7
        %s860 = scalar_select %p859, %s40, 7
        %s861 = scalar_lea.vmem %s8, %s860
        %p862 = scmp.lt.s32.totalorder %s40, 7
        %s863 = scalar_select %p862, %s40, 7
        %s864 = scalar_lea.vmem %s9, %s863
        %p865 = scmp.lt.s32.totalorder %s40, 7
        %s866 = scalar_select %p865, %s40, 7
        %s867 = smul.addr %s866, 4
        %s868 = scalar_lea.vmem %s11, %s867
        %p869 = scmp.lt.s32.totalorder %s40, 7
        %s870 = scalar_select %p869, %s40, 7
        %s871 = scalar_lea.vmem %s13, %s870
        %p872 = scmp.lt.s32.totalorder %s40, 7
        %s873 = scalar_select %p872, %s40, 7
        %s874 = scalar_lea.vmem %s14, %s873
        %p875 = scmp.lt.s32.totalorder %s40, 7
        %s876 = scalar_select %p875, %s40, 7
        %s877 = scalar_lea.vmem %s15, %s876
        %p879 = scmp.eq.s32.totalorder %s40, 0
        // Predicated region
        $region117: #{box_score_generator_forward.1} parent=99 // pred_check
          %p880 = pneg %p879
        $region118: #{box_score_generator_forward.1} parent=99 // pred_check_branch
          %882 = sbr.rel (%p880) target = $region120
        $region119: #{box_score_generator_forward.1} parent=99 // pred_region
          %v883 = vld [vmem:[%s0] sm:$0xff]
          %v884 = vld [vmem:[%s0 + $0x8] sm:$0xff]
          %v885 = vpack.c.bf16 %v884, %v883
          %v886 = vld [vmem:[%s2] sm:$0xf]
          %v887 = vld [vmem:[%s2 + $0x4] sm:$0xf]
          %v888 = vld [vmem:[%s2 + $0x8] sm:$0xf]
          %v889 = vld [vmem:[%s2 + $0xc] sm:$0xf]
          %v890 = vld [vmem:[%s2 + $0x10] sm:$0xf]
          %v891 = vld [vmem:[%s2 + $0x14] sm:$0xf]
          %v892 = vld [vmem:[%s2 + $0x18] sm:$0xf]
          %v893 = vld [vmem:[%s2 + $0x1c] sm:$0xf]
          %v894 = vld [vmem:[%s2 + $0x20] sm:$0xf]
          %v895 = vld [vmem:[%s2 + $0x24] sm:$0xf]
          %v896 = vld [vmem:[%s2 + $0x28] sm:$0xf]
          %v897 = vld [vmem:[%s2 + $0x2c] sm:$0xf]
          %v898 = vld [vmem:[%s2 + $0x30] sm:$0xf]
          %v899 = vld [vmem:[%s2 + $0x34] sm:$0xf]
          %v900 = vld [vmem:[%s2 + $0x38] sm:$0xf]
          %v901 = vld [vmem:[%s2 + $0x3c] sm:$0xf]
          %v902 = vld [vmem:[%s3] sm:$0x1]
          %v904 = vperm.slane %v902, 0
          %v922 = vunpack.c.l.b16 %v886
          %v923 = vunpack.c.l.b16 %v887
          %v924 = vunpack.c.l.b16 %v888
          %v925 = vunpack.c.l.b16 %v889
          %v926 = vunpack.c.l.b16 %v890
          %v927 = vunpack.c.l.b16 %v891
          %v928 = vunpack.c.l.b16 %v892
          %v929 = vunpack.c.l.b16 %v893
          %v930 = vunpack.c.l.b16 %v894
          %v931 = vunpack.c.l.b16 %v895
          %v932 = vunpack.c.l.b16 %v896
          %v933 = vunpack.c.l.b16 %v897
          %v934 = vunpack.c.l.b16 %v898
          %v935 = vunpack.c.l.b16 %v899
          %v936 = vunpack.c.l.b16 %v900
          %v937 = vunpack.c.l.b16 %v901
          %v938 = vpack.c.b16 %v923, %v922
          %v939 = vpack.c.b16 %v925, %v924
          %v940 = vpack.c.b16 %v927, %v926
          %v941 = vpack.c.b16 %v929, %v928
          %v942 = vpack.c.b16 %v931, %v930
          %v943 = vpack.c.b16 %v933, %v932
          %v944 = vpack.c.b16 %v935, %v934
          %v945 = vpack.c.b16 %v937, %v936
          %954 = vmatpush.bf16.msra.mxu0 %v945
          %955 = vmatpush.bf16.msra.mxu0 %v944
          %956 = vmatpush.bf16.msra.mxu0 %v943
          %957 = vmatpush.bf16.msra.mxu0 %v942
          %958 = vmatpush.bf16.msra.mxu0 %v941
          %959 = vmatpush.bf16.msra.mxu0 %v940
          %960 = vmatpush.bf16.msra.mxu0 %v939
          %961 = vmatpush.bf16.msra.mxu0 %v938
          %962 = vmatmul.bf16.gmra.mxu0 %v885
          %v963 = vpop.f32.mrf.mxu0
          %v964 = vadd.f32 %v904, %v963
          %v965 = vpop.f32.mrf.mxu0
          %v966 = vadd.f32 %v904, %v965
          %967 = vdwg.mxu0
          %968 = vst [vmem:[#allocation2] sm:$0xff] %v964
          %969 = vst [vmem:[#allocation2 + $0x8] sm:$0xff] %v966
        $region120: #{box_score_generator_forward.1} parent=99 // pred_fallthru
          _
        %v970 = vld [vmem:[#allocation2] sm:$0xff]
        %v971 = vld [vmem:[#allocation2 + $0x8] sm:$0xff]
        %v972 = vpack.c.bf16 %v971, %v970
        %v973 = vld [vmem:[%s728] sm:$0xff]
        %v974 = vld [vmem:[%s728 + $0x8] sm:$0xf]
        %v975 = vld [vmem:[%s728 + $0xc] sm:$0xff]
        %v976 = vld [vmem:[%s728 + $0x14] sm:$0xf]
        %v977 = vld [vmem:[%s728 + $0x18] sm:$0xff]
        %v978 = vld [vmem:[%s728 + $0x20] sm:$0xf]
        %v979 = vld [vmem:[%s728 + $0x24] sm:$0xff]
        %v980 = vld [vmem:[%s728 + $0x2c] sm:$0xf]
        %v981 = vld [vmem:[%s728 + $0x30] sm:$0xff]
        %v982 = vld [vmem:[%s728 + $0x38] sm:$0xf]
        %v983 = vld [vmem:[%s728 + $0x3c] sm:$0xff]
        %v984 = vld [vmem:[%s728 + $0x44] sm:$0xf]
        %v985 = vld [vmem:[%s728 + $0x48] sm:$0xff]
        %v986 = vld [vmem:[%s728 + $0x50] sm:$0xf]
        %v987 = vld [vmem:[%s728 + $0x54] sm:$0xff]
        %v988 = vld [vmem:[%s728 + $0x5c] sm:$0xf]
        %v989 = vld [vmem:[%s728 + $0x60] sm:$0xff]
        %v990 = vld [vmem:[%s728 + $0x68] sm:$0xf]
        %v991 = vld [vmem:[%s728 + $0x6c] sm:$0xff]
        %v992 = vld [vmem:[%s728 + $0x74] sm:$0xf]
        %v993 = vld [vmem:[%s728 + $0x78] sm:$0xff]
        %v994 = vld [vmem:[%s728 + $0x80] sm:$0xf]
        %v995 = vld [vmem:[%s728 + $0x84] sm:$0xff]
        %v996 = vld [vmem:[%s728 + $0x8c] sm:$0xf]
        %v997 = vld [vmem:[%s728 + $0x90] sm:$0xff]
        %v998 = vld [vmem:[%s728 + $0x98] sm:$0xf]
        %v999 = vld [vmem:[%s728 + $0x9c] sm:$0xff]
        %v1000 = vld [vmem:[%s728 + $0xa4] sm:$0xf]
        %v1001 = vld [vmem:[%s728 + $0xa8] sm:$0xff]
        %v1002 = vld [vmem:[%s728 + $0xb0] sm:$0xf]
        %v1003 = vld [vmem:[%s728 + $0xb4] sm:$0xff]
        %v1004 = vld [vmem:[%s728 + $0xbc] sm:$0xf]
        %v1005 = vld [vmem:[%s855] sm:$0x7]
        %v1007 = vperm.slane %v1005, 0
        %v1008 = vperm.slane %v1005, 1
        %v1009 = vperm.slane %v1005, 2
        %v1045 = vunpack.c.l.b16 %v973
        %v1046 = vunpack.c.h.b16 %v973
        %v1047 = vunpack.c.l.b16 %v974
        %v1048 = vunpack.c.l.b16 %v975
        %v1049 = vunpack.c.h.b16 %v975
        %v1050 = vunpack.c.l.b16 %v976
        %v1051 = vunpack.c.l.b16 %v977
        %v1052 = vunpack.c.h.b16 %v977
        %v1053 = vunpack.c.l.b16 %v978
        %v1054 = vunpack.c.l.b16 %v979
        %v1055 = vunpack.c.h.b16 %v979
        %v1056 = vunpack.c.l.b16 %v980
        %v1057 = vunpack.c.l.b16 %v981
        %v1058 = vunpack.c.h.b16 %v981
        %v1059 = vunpack.c.l.b16 %v982
        %v1060 = vunpack.c.l.b16 %v983
        %v1061 = vunpack.c.h.b16 %v983
        %v1062 = vunpack.c.l.b16 %v984
        %v1063 = vunpack.c.l.b16 %v985
        %v1064 = vunpack.c.h.b16 %v985
        %v1065 = vunpack.c.l.b16 %v986
        %v1066 = vunpack.c.l.b16 %v987
        %v1067 = vunpack.c.h.b16 %v987
        %v1068 = vunpack.c.l.b16 %v988
        %v1069 = vunpack.c.l.b16 %v989
        %v1070 = vunpack.c.h.b16 %v989
        %v1071 = vunpack.c.l.b16 %v990
        %v1072 = vunpack.c.l.b16 %v991
        %v1073 = vunpack.c.h.b16 %v991
        %v1074 = vunpack.c.l.b16 %v992
        %v1075 = vunpack.c.l.b16 %v993
        %v1076 = vunpack.c.h.b16 %v993
        %v1077 = vunpack.c.l.b16 %v994
        %v1078 = vunpack.c.l.b16 %v995
        %v1079 = vunpack.c.h.b16 %v995
        %v1080 = vunpack.c.l.b16 %v996
        %v1081 = vunpack.c.l.b16 %v997
        %v1082 = vunpack.c.h.b16 %v997
        %v1083 = vunpack.c.l.b16 %v998
        %v1084 = vunpack.c.l.b16 %v999
        %v1085 = vunpack.c.h.b16 %v999
        %v1086 = vunpack.c.l.b16 %v1000
        %v1087 = vunpack.c.l.b16 %v1001
        %v1088 = vunpack.c.h.b16 %v1001
        %v1089 = vunpack.c.l.b16 %v1002
        %v1090 = vunpack.c.l.b16 %v1003
        %v1091 = vunpack.c.h.b16 %v1003
        %v1092 = vunpack.c.l.b16 %v1004
        %v1093 = vpack.c.b16 %v1048, %v1045
        %v1094 = vpack.c.b16 %v1049, %v1046
        %v1095 = vpack.c.b16 %v1050, %v1047
        %v1096 = vpack.c.b16 %v1054, %v1051
        %v1097 = vpack.c.b16 %v1055, %v1052
        %v1098 = vpack.c.b16 %v1056, %v1053
        %v1099 = vpack.c.b16 %v1060, %v1057
        %v1100 = vpack.c.b16 %v1061, %v1058
        %v1101 = vpack.c.b16 %v1062, %v1059
        %v1102 = vpack.c.b16 %v1066, %v1063
        %v1103 = vpack.c.b16 %v1067, %v1064
        %v1104 = vpack.c.b16 %v1068, %v1065
        %v1105 = vpack.c.b16 %v1072, %v1069
        %v1106 = vpack.c.b16 %v1073, %v1070
        %v1107 = vpack.c.b16 %v1074, %v1071
        %v1108 = vpack.c.b16 %v1078, %v1075
        %v1109 = vpack.c.b16 %v1079, %v1076
        %v1110 = vpack.c.b16 %v1080, %v1077
        %v1111 = vpack.c.b16 %v1084, %v1081
        %v1112 = vpack.c.b16 %v1085, %v1082
        %v1113 = vpack.c.b16 %v1086, %v1083
        %v1114 = vpack.c.b16 %v1090, %v1087
        %v1115 = vpack.c.b16 %v1091, %v1088
        %v1116 = vpack.c.b16 %v1092, %v1089
        %1141 = vmatpush.bf16.msra.mxu0 %v1114
        %1142 = vmatpush.bf16.msra.mxu0 %v1111
        %1143 = vmatpush.bf16.msra.mxu0 %v1108
        %1144 = vmatpush.bf16.msra.mxu0 %v1105
        %1145 = vmatpush.bf16.msra.mxu0 %v1102
        %1146 = vmatpush.bf16.msra.mxu0 %v1099
        %1147 = vmatpush.bf16.msra.mxu0 %v1096
        %1148 = vmatpush.bf16.msra.mxu0 %v1093
        %1149 = vmatmul.bf16.gmra.mxu0 %v972
        %v1150 = vpop.f32.mrf.mxu0
        %v1151 = vadd.f32 %v1007, %v1150
        %v1152 = vpop.f32.mrf.mxu0
        %v1153 = vadd.f32 %v1007, %v1152
        %1154 = vdwg.mxu0
        %1155 = vmatpush.bf16.msra.mxu0 %v1115
        %1156 = vmatpush.bf16.msra.mxu0 %v1112
        %1157 = vmatpush.bf16.msra.mxu0 %v1109
        %1158 = vmatpush.bf16.msra.mxu0 %v1106
        %1159 = vmatpush.bf16.msra.mxu0 %v1103
        %1160 = vmatpush.bf16.msra.mxu0 %v1100
        %1161 = vmatpush.bf16.msra.mxu0 %v1097
        %1162 = vmatpush.bf16.msra.mxu0 %v1094
        %1163 = vmatmul.bf16.gmra.mxu0 %v972
        %v1164 = vpop.f32.mrf.mxu0
        %v1165 = vadd.f32 %v1008, %v1164
        %v1166 = vpop.f32.mrf.mxu0
        %v1167 = vadd.f32 %v1008, %v1166
        %1168 = vdwg.mxu0
        %1169 = vmatpush.bf16.msra.mxu0 %v1116
        %1170 = vmatpush.bf16.msra.mxu0 %v1113
        %1171 = vmatpush.bf16.msra.mxu0 %v1110
        %1172 = vmatpush.bf16.msra.mxu0 %v1107
        %1173 = vmatpush.bf16.msra.mxu0 %v1104
        %1174 = vmatpush.bf16.msra.mxu0 %v1101
        %1175 = vmatpush.bf16.msra.mxu0 %v1098
        %1176 = vmatpush.bf16.msra.mxu0 %v1095
        %1177 = vmatmul.bf16.gmra.mxu0 %v972
        %v1178 = vpop.f32.mrf.mxu0
        %v1179 = vadd.f32 %v1009, %v1178
        %v1180 = vpop.f32.mrf.mxu0
        %v1181 = vadd.f32 %v1009, %v1180
        %1182 = vdwg.mxu0
        %v1185 = vrot.slane %v1151, 1
        %v1186 = vrot.slane %v1151, 2
        %v1187 = vrot.slane %v1151, 3
        %v1188 = vrot.slane %v1151, 4
        %v1189 = vrot.slane %v1151, 5
        %v1190 = vrot.slane %v1151, 6
        %v1191 = vrot.slane %v1151, 7
        %v1192 = vrot.slane %v1153, 1
        %v1193 = vrot.slane %v1153, 2
        %v1194 = vrot.slane %v1153, 3
        %v1195 = vrot.slane %v1153, 4
        %v1196 = vrot.slane %v1153, 5
        %v1197 = vrot.slane %v1153, 6
        %v1198 = vrot.slane %v1153, 7
        %v1199 = vperm.slane %v1151, 0
        %v1200 = vperm.slane %v1185, 0
        %v1201 = vperm.slane %v1186, 0
        %v1202 = vperm.slane %v1187, 0
        %v1203 = vperm.slane %v1188, 0
        %v1204 = vperm.slane %v1189, 0
        %v1205 = vperm.slane %v1190, 0
        %v1206 = vperm.slane %v1191, 0
        %v1207 = vperm.slane %v1153, 0
        %v1208 = vperm.slane %v1192, 0
        %v1209 = vperm.slane %v1193, 0
        %v1210 = vperm.slane %v1194, 0
        %v1211 = vperm.slane %v1195, 0
        %v1212 = vperm.slane %v1196, 0
        %v1213 = vperm.slane %v1197, 0
        %v1214 = vperm.slane %v1198, 0
        %v1231 = vmul.f32 %v1199, %v1165
        %v1232 = vmul.f32 %v1200, %v1165
        %v1233 = vmul.f32 %v1201, %v1165
        %v1234 = vmul.f32 %v1202, %v1165
        %v1235 = vmul.f32 %v1203, %v1165
        %v1236 = vmul.f32 %v1204, %v1165
        %v1237 = vmul.f32 %v1205, %v1165
        %v1238 = vmul.f32 %v1206, %v1165
        %v1239 = vmul.f32 %v1207, %v1167
        %v1240 = vmul.f32 %v1208, %v1167
        %v1241 = vmul.f32 %v1209, %v1167
        %v1242 = vmul.f32 %v1210, %v1167
        %v1243 = vmul.f32 %v1211, %v1167
        %v1244 = vmul.f32 %v1212, %v1167
        %v1245 = vmul.f32 %v1213, %v1167
        %v1246 = vmul.f32 %v1214, %v1167
        %v1247 = vpack.c.bf16 %v1231, %v1231
        %v1248 = vpack.c.bf16 %v1232, %v1232
        %v1249 = vpack.c.bf16 %v1233, %v1233
        %v1250 = vpack.c.bf16 %v1234, %v1234
        %v1251 = vpack.c.bf16 %v1235, %v1235
        %v1252 = vpack.c.bf16 %v1236, %v1236
        %v1253 = vpack.c.bf16 %v1237, %v1237
        %v1254 = vpack.c.bf16 %v1238, %v1238
        %v1255 = vpack.c.bf16 %v1239, %v1239
        %v1256 = vpack.c.bf16 %v1240, %v1240
        %v1257 = vpack.c.bf16 %v1241, %v1241
        %v1258 = vpack.c.bf16 %v1242, %v1242
        %v1259 = vpack.c.bf16 %v1243, %v1243
        %v1260 = vpack.c.bf16 %v1244, %v1244
        %v1261 = vpack.c.bf16 %v1245, %v1245
        %v1262 = vpack.c.bf16 %v1246, %v1246
        %v1263 = vld [vmem:[%s16] sm:$0xf]
        %v1264 = vld [vmem:[%s16 + $0x4] sm:$0xf]
        %v1265 = vld [vmem:[%s16 + $0x8] sm:$0xf]
        %v1266 = vld [vmem:[%s16 + $0xc] sm:$0xf]
        %v1267 = vld [vmem:[%s16 + $0x10] sm:$0xf]
        %v1268 = vld [vmem:[%s16 + $0x14] sm:$0xf]
        %v1269 = vld [vmem:[%s16 + $0x18] sm:$0xf]
        %v1270 = vld [vmem:[%s16 + $0x1c] sm:$0xf]
        %v1271 = vld [vmem:[%s16 + $0x20] sm:$0xf]
        %v1272 = vld [vmem:[%s16 + $0x24] sm:$0xf]
        %v1273 = vld [vmem:[%s16 + $0x28] sm:$0xf]
        %v1274 = vld [vmem:[%s16 + $0x2c] sm:$0xf]
        %v1275 = vld [vmem:[%s16 + $0x30] sm:$0xf]
        %v1276 = vld [vmem:[%s16 + $0x34] sm:$0xf]
        %v1277 = vld [vmem:[%s16 + $0x38] sm:$0xf]
        %v1278 = vld [vmem:[%s16 + $0x3c] sm:$0xf]
        %v1295 = vunpack.c.l.b16 %v1247
        %v1296 = vunpack.c.l.b16 %v1248
        %v1297 = vunpack.c.l.b16 %v1249
        %v1298 = vunpack.c.l.b16 %v1250
        %v1299 = vunpack.c.l.b16 %v1251
        %v1300 = vunpack.c.l.b16 %v1252
        %v1301 = vunpack.c.l.b16 %v1253
        %v1302 = vunpack.c.l.b16 %v1254
        %v1303 = vunpack.c.l.b16 %v1255
        %v1304 = vunpack.c.l.b16 %v1256
        %v1305 = vunpack.c.l.b16 %v1257
        %v1306 = vunpack.c.l.b16 %v1258
        %v1307 = vunpack.c.l.b16 %v1259
        %v1308 = vunpack.c.l.b16 %v1260
        %v1309 = vunpack.c.l.b16 %v1261
        %v1310 = vunpack.c.l.b16 %v1262
        %v1311 = vpack.c.b16 %v1296, %v1295
        %v1312 = vpack.c.b16 %v1298, %v1297
        %v1313 = vpack.c.b16 %v1300, %v1299
        %v1314 = vpack.c.b16 %v1302, %v1301
        %v1315 = vpack.c.b16 %v1304, %v1303
        %v1316 = vpack.c.b16 %v1306, %v1305
        %v1317 = vpack.c.b16 %v1308, %v1307
        %v1318 = vpack.c.b16 %v1310, %v1309
        %v1343 = vunpack.c.l.b16 %v1263
        %v1344 = vunpack.c.l.b16 %v1264
        %v1345 = vunpack.c.l.b16 %v1265
        %v1346 = vunpack.c.l.b16 %v1266
        %v1347 = vunpack.c.l.b16 %v1267
        %v1348 = vunpack.c.l.b16 %v1268
        %v1349 = vunpack.c.l.b16 %v1269
        %v1350 = vunpack.c.l.b16 %v1270
        %v1351 = vunpack.c.l.b16 %v1271
        %v1352 = vunpack.c.l.b16 %v1272
        %v1353 = vunpack.c.l.b16 %v1273
        %v1354 = vunpack.c.l.b16 %v1274
        %v1355 = vunpack.c.l.b16 %v1275
        %v1356 = vunpack.c.l.b16 %v1276
        %v1357 = vunpack.c.l.b16 %v1277
        %v1358 = vunpack.c.l.b16 %v1278
        %v1359 = vpack.c.b16 %v1344, %v1343
        %v1360 = vpack.c.b16 %v1346, %v1345
        %v1361 = vpack.c.b16 %v1348, %v1347
        %v1362 = vpack.c.b16 %v1350, %v1349
        %v1363 = vpack.c.b16 %v1352, %v1351
        %v1364 = vpack.c.b16 %v1354, %v1353
        %v1365 = vpack.c.b16 %v1356, %v1355
        %v1366 = vpack.c.b16 %v1358, %v1357
        %1375 = vmatpush.bf16.msra.mxu0 %v1366
        %1376 = vmatpush.bf16.msra.mxu0 %v1365
        %1377 = vmatpush.bf16.msra.mxu0 %v1364
        %1378 = vmatpush.bf16.msra.mxu0 %v1363
        %1379 = vmatpush.bf16.msra.mxu0 %v1362
        %1380 = vmatpush.bf16.msra.mxu0 %v1361
        %1381 = vmatpush.bf16.msra.mxu0 %v1360
        %1382 = vmatpush.bf16.msra.mxu0 %v1359
        %1383 = vmatmul.bf16.gmra.mxu0 %v1311
        %v1384 = vpop.f32.mrf.mxu0
        %v1385 = vadd.f32 0.0, %v1384
        %v1386 = vpop.f32.mrf.mxu0
        %v1387 = vadd.f32 0.0, %v1386
        %1388 = vmatmul.bf16.gmra.mxu0 %v1312
        %v1389 = vpop.f32.mrf.mxu0
        %v1390 = vadd.f32 0.0, %v1389
        %v1391 = vpop.f32.mrf.mxu0
        %v1392 = vadd.f32 0.0, %v1391
        %1393 = vmatmul.bf16.gmra.mxu0 %v1313
        %v1394 = vpop.f32.mrf.mxu0
        %v1395 = vadd.f32 0.0, %v1394
        %v1396 = vpop.f32.mrf.mxu0
        %v1397 = vadd.f32 0.0, %v1396
        %1398 = vmatmul.bf16.gmra.mxu0 %v1314
        %v1399 = vpop.f32.mrf.mxu0
        %v1400 = vadd.f32 0.0, %v1399
        %v1401 = vpop.f32.mrf.mxu0
        %v1402 = vadd.f32 0.0, %v1401
        %1403 = vmatmul.bf16.gmra.mxu0 %v1315
        %v1404 = vpop.f32.mrf.mxu0
        %v1405 = vadd.f32 0.0, %v1404
        %v1406 = vpop.f32.mrf.mxu0
        %v1407 = vadd.f32 0.0, %v1406
        %1408 = vmatmul.bf16.gmra.mxu0 %v1316
        %v1409 = vpop.f32.mrf.mxu0
        %v1410 = vadd.f32 0.0, %v1409
        %v1411 = vpop.f32.mrf.mxu0
        %v1412 = vadd.f32 0.0, %v1411
        %1413 = vmatmul.bf16.gmra.mxu0 %v1317
        %v1414 = vpop.f32.mrf.mxu0
        %v1415 = vadd.f32 0.0, %v1414
        %v1416 = vpop.f32.mrf.mxu0
        %v1417 = vadd.f32 0.0, %v1416
        %1418 = vmatmul.bf16.gmra.mxu0 %v1318
        %v1419 = vpop.f32.mrf.mxu0
        %v1420 = vadd.f32 0.0, %v1419
        %v1421 = vpop.f32.mrf.mxu0
        %v1422 = vadd.f32 0.0, %v1421
        %1423 = vdwg.mxu0
        %v1424 = vld [vmem:[%s1] sm:$0xff]
        %v1425 = vld [vmem:[%s1 + $0x8] sm:$0xff]
        %v1426 = vld [vmem:[%s1 + $0x10] sm:$0xff]
        %v1427 = vld [vmem:[%s1 + $0x18] sm:$0xff]
        %v1428 = vld [vmem:[%s1 + $0x20] sm:$0xff]
        %v1429 = vld [vmem:[%s1 + $0x28] sm:$0xff]
        %v1430 = vld [vmem:[%s1 + $0x30] sm:$0xff]
        %v1431 = vld [vmem:[%s1 + $0x38] sm:$0xff]
        %v1432 = vld [vmem:[%s1 + $0x40] sm:$0xff]
        %v1433 = vld [vmem:[%s1 + $0x48] sm:$0xff]
        %v1434 = vld [vmem:[%s1 + $0x50] sm:$0xff]
        %v1435 = vld [vmem:[%s1 + $0x58] sm:$0xff]
        %v1436 = vld [vmem:[%s1 + $0x60] sm:$0xff]
        %v1437 = vld [vmem:[%s1 + $0x68] sm:$0xff]
        %v1438 = vld [vmem:[%s1 + $0x70] sm:$0xff]
        %v1439 = vld [vmem:[%s1 + $0x78] sm:$0xff]
        %v1440 = vadd.f32 %v1385, %v1424
        %v1441 = vadd.f32 %v1387, %v1425
        %v1442 = vadd.f32 %v1390, %v1426
        %v1443 = vadd.f32 %v1392, %v1427
        %v1444 = vadd.f32 %v1395, %v1428
        %v1445 = vadd.f32 %v1397, %v1429
        %v1446 = vadd.f32 %v1400, %v1430
        %v1447 = vadd.f32 %v1402, %v1431
        %v1448 = vadd.f32 %v1405, %v1432
        %v1449 = vadd.f32 %v1407, %v1433
        %v1450 = vadd.f32 %v1410, %v1434
        %v1451 = vadd.f32 %v1412, %v1435
        %v1452 = vadd.f32 %v1415, %v1436
        %v1453 = vadd.f32 %v1417, %v1437
        %v1454 = vadd.f32 %v1420, %v1438
        %v1455 = vadd.f32 %v1422, %v1439
        %vm1456 = vcmask 64512
        %v1457 = vsel %vm1456, %v1440, -inf
        %v1458 = vrot.slane %v1457, 4
        %v1459 = vmax.f32 %v1457, %v1458
        %v1460 = vrot.slane %v1459, 2
        %v1461 = vmax.f32 %v1459, %v1460
        %v1462 = vrot.slane %v1461, 1
        %v1463 = vmax.f32 %v1461, %v1462
        %v1464 = vsel %vm1456, %v1441, -inf
        %v1465 = vrot.slane %v1464, 4
        %v1466 = vmax.f32 %v1464, %v1465
        %v1467 = vrot.slane %v1466, 2
        %v1468 = vmax.f32 %v1466, %v1467
        %v1469 = vrot.slane %v1468, 1
        %v1470 = vmax.f32 %v1468, %v1469
        %v1471 = vsel %vm1456, %v1442, -inf
        %v1472 = vrot.slane %v1471, 4
        %v1473 = vmax.f32 %v1471, %v1472
        %v1474 = vrot.slane %v1473, 2
        %v1475 = vmax.f32 %v1473, %v1474
        %v1476 = vrot.slane %v1475, 1
        %v1477 = vmax.f32 %v1475, %v1476
        %v1478 = vsel %vm1456, %v1443, -inf
        %v1479 = vrot.slane %v1478, 4
        %v1480 = vmax.f32 %v1478, %v1479
        %v1481 = vrot.slane %v1480, 2
        %v1482 = vmax.f32 %v1480, %v1481
        %v1483 = vrot.slane %v1482, 1
        %v1484 = vmax.f32 %v1482, %v1483
        %v1485 = vsel %vm1456, %v1444, -inf
        %v1486 = vrot.slane %v1485, 4
        %v1487 = vmax.f32 %v1485, %v1486
        %v1488 = vrot.slane %v1487, 2
        %v1489 = vmax.f32 %v1487, %v1488
        %v1490 = vrot.slane %v1489, 1
        %v1491 = vmax.f32 %v1489, %v1490
        %v1492 = vsel %vm1456, %v1445, -inf
        %v1493 = vrot.slane %v1492, 4
        %v1494 = vmax.f32 %v1492, %v1493
        %v1495 = vrot.slane %v1494, 2
        %v1496 = vmax.f32 %v1494, %v1495
        %v1497 = vrot.slane %v1496, 1
        %v1498 = vmax.f32 %v1496, %v1497
        %v1499 = vsel %vm1456, %v1446, -inf
        %v1500 = vrot.slane %v1499, 4
        %v1501 = vmax.f32 %v1499, %v1500
        %v1502 = vrot.slane %v1501, 2
        %v1503 = vmax.f32 %v1501, %v1502
        %v1504 = vrot.slane %v1503, 1
        %v1505 = vmax.f32 %v1503, %v1504
        %v1506 = vsel %vm1456, %v1447, -inf
        %v1507 = vrot.slane %v1506, 4
        %v1508 = vmax.f32 %v1506, %v1507
        %v1509 = vrot.slane %v1508, 2
        %v1510 = vmax.f32 %v1508, %v1509
        %v1511 = vrot.slane %v1510, 1
        %v1512 = vmax.f32 %v1510, %v1511
        %v1513 = vsel %vm1456, %v1448, -inf
        %v1514 = vrot.slane %v1513, 4
        %v1515 = vmax.f32 %v1513, %v1514
        %v1516 = vrot.slane %v1515, 2
        %v1517 = vmax.f32 %v1515, %v1516
        %v1518 = vrot.slane %v1517, 1
        %v1519 = vmax.f32 %v1517, %v1518
        %v1520 = vsel %vm1456, %v1449, -inf
        %v1521 = vrot.slane %v1520, 4
        %v1522 = vmax.f32 %v1520, %v1521
        %v1523 = vrot.slane %v1522, 2
        %v1524 = vmax.f32 %v1522, %v1523
        %v1525 = vrot.slane %v1524, 1
        %v1526 = vmax.f32 %v1524, %v1525
        %v1527 = vsel %vm1456, %v1450, -inf
        %v1528 = vrot.slane %v1527, 4
        %v1529 = vmax.f32 %v1527, %v1528
        %v1530 = vrot.slane %v1529, 2
        %v1531 = vmax.f32 %v1529, %v1530
        %v1532 = vrot.slane %v1531, 1
        %v1533 = vmax.f32 %v1531, %v1532
        %v1534 = vsel %vm1456, %v1451, -inf
        %v1535 = vrot.slane %v1534, 4
        %v1536 = vmax.f32 %v1534, %v1535
        %v1537 = vrot.slane %v1536, 2
        %v1538 = vmax.f32 %v1536, %v1537
        %v1539 = vrot.slane %v1538, 1
        %v1540 = vmax.f32 %v1538, %v1539
        %v1541 = vsel %vm1456, %v1452, -inf
        %v1542 = vrot.slane %v1541, 4
        %v1543 = vmax.f32 %v1541, %v1542
        %v1544 = vrot.slane %v1543, 2
        %v1545 = vmax.f32 %v1543, %v1544
        %v1546 = vrot.slane %v1545, 1
        %v1547 = vmax.f32 %v1545, %v1546
        %v1548 = vsel %vm1456, %v1453, -inf
        %v1549 = vrot.slane %v1548, 4
        %v1550 = vmax.f32 %v1548, %v1549
        %v1551 = vrot.slane %v1550, 2
        %v1552 = vmax.f32 %v1550, %v1551
        %v1553 = vrot.slane %v1552, 1
        %v1554 = vmax.f32 %v1552, %v1553
        %v1555 = vsel %vm1456, %v1454, -inf
        %v1556 = vrot.slane %v1555, 4
        %v1557 = vmax.f32 %v1555, %v1556
        %v1558 = vrot.slane %v1557, 2
        %v1559 = vmax.f32 %v1557, %v1558
        %v1560 = vrot.slane %v1559, 1
        %v1561 = vmax.f32 %v1559, %v1560
        %v1562 = vsel %vm1456, %v1455, -inf
        %v1563 = vrot.slane %v1562, 4
        %v1564 = vmax.f32 %v1562, %v1563
        %v1565 = vrot.slane %v1564, 2
        %v1566 = vmax.f32 %v1564, %v1565
        %v1567 = vrot.slane %v1566, 1
        %v1568 = vmax.f32 %v1566, %v1567
        %v1569 = vsub.f32 %v1440, %v1463
        %v1570 = vsub.f32 %v1441, %v1470
        %v1571 = vsub.f32 %v1442, %v1477
        %v1572 = vsub.f32 %v1443, %v1484
        %v1573 = vsub.f32 %v1444, %v1491
        %v1574 = vsub.f32 %v1445, %v1498
        %v1575 = vsub.f32 %v1446, %v1505
        %v1576 = vsub.f32 %v1447, %v1512
        %v1577 = vsub.f32 %v1448, %v1519
        %v1578 = vsub.f32 %v1449, %v1526
        %v1579 = vsub.f32 %v1450, %v1533
        %v1580 = vsub.f32 %v1451, %v1540
        %v1581 = vsub.f32 %v1452, %v1547
        %v1582 = vsub.f32 %v1453, %v1554
        %v1583 = vsub.f32 %v1454, %v1561
        %v1584 = vsub.f32 %v1455, %v1568
        %v1585 = vmul.f32 %v1569, 1.442695
        %v1586 = vpow.pop %v1585
        %v1587 = vmul.f32 %v1570, 1.442695
        %v1588 = vpow.pop %v1587
        %v1589 = vmul.f32 %v1571, 1.442695
        %v1590 = vpow.pop %v1589
        %v1591 = vmul.f32 %v1572, 1.442695
        %v1592 = vpow.pop %v1591
        %v1593 = vmul.f32 %v1573, 1.442695
        %v1594 = vpow.pop %v1593
        %v1595 = vmul.f32 %v1574, 1.442695
        %v1596 = vpow.pop %v1595
        %v1597 = vmul.f32 %v1575, 1.442695
        %v1598 = vpow.pop %v1597
        %v1599 = vmul.f32 %v1576, 1.442695
        %v1600 = vpow.pop %v1599
        %v1601 = vmul.f32 %v1577, 1.442695
        %v1602 = vpow.pop %v1601
        %v1603 = vmul.f32 %v1578, 1.442695
        %v1604 = vpow.pop %v1603
        %v1605 = vmul.f32 %v1579, 1.442695
        %v1606 = vpow.pop %v1605
        %v1607 = vmul.f32 %v1580, 1.442695
        %v1608 = vpow.pop %v1607
        %v1609 = vmul.f32 %v1581, 1.442695
        %v1610 = vpow.pop %v1609
        %v1611 = vmul.f32 %v1582, 1.442695
        %v1612 = vpow.pop %v1611
        %v1613 = vmul.f32 %v1583, 1.442695
        %v1614 = vpow.pop %v1613
        %v1615 = vmul.f32 %v1584, 1.442695
        %v1616 = vpow.pop %v1615
        %v1617 = vsel %vm1456, %v1586, 0.0
        %v1618 = vrot.slane %v1617, 4
        %v1619 = vadd.f32 %v1617, %v1618
        %v1620 = vrot.slane %v1619, 2
        %v1621 = vadd.f32 %v1619, %v1620
        %v1622 = vrot.slane %v1621, 1
        %v1623 = vadd.f32 %v1621, %v1622
        %v1624 = vsel %vm1456, %v1588, 0.0
        %v1625 = vrot.slane %v1624, 4
        %v1626 = vadd.f32 %v1624, %v1625
        %v1627 = vrot.slane %v1626, 2
        %v1628 = vadd.f32 %v1626, %v1627
        %v1629 = vrot.slane %v1628, 1
        %v1630 = vadd.f32 %v1628, %v1629
        %v1631 = vsel %vm1456, %v1590, 0.0
        %v1632 = vrot.slane %v1631, 4
        %v1633 = vadd.f32 %v1631, %v1632
        %v1634 = vrot.slane %v1633, 2
        %v1635 = vadd.f32 %v1633, %v1634
        %v1636 = vrot.slane %v1635, 1
        %v1637 = vadd.f32 %v1635, %v1636
        %v1638 = vsel %vm1456, %v1592, 0.0
        %v1639 = vrot.slane %v1638, 4
        %v1640 = vadd.f32 %v1638, %v1639
        %v1641 = vrot.slane %v1640, 2
        %v1642 = vadd.f32 %v1640, %v1641
        %v1643 = vrot.slane %v1642, 1
        %v1644 = vadd.f32 %v1642, %v1643
        %v1645 = vsel %vm1456, %v1594, 0.0
        %v1646 = vrot.slane %v1645, 4
        %v1647 = vadd.f32 %v1645, %v1646
        %v1648 = vrot.slane %v1647, 2
        %v1649 = vadd.f32 %v1647, %v1648
        %v1650 = vrot.slane %v1649, 1
        %v1651 = vadd.f32 %v1649, %v1650
        %v1652 = vsel %vm1456, %v1596, 0.0
        %v1653 = vrot.slane %v1652, 4
        %v1654 = vadd.f32 %v1652, %v1653
        %v1655 = vrot.slane %v1654, 2
        %v1656 = vadd.f32 %v1654, %v1655
        %v1657 = vrot.slane %v1656, 1
        %v1658 = vadd.f32 %v1656, %v1657
        %v1659 = vsel %vm1456, %v1598, 0.0
        %v1660 = vrot.slane %v1659, 4
        %v1661 = vadd.f32 %v1659, %v1660
        %v1662 = vrot.slane %v1661, 2
        %v1663 = vadd.f32 %v1661, %v1662
        %v1664 = vrot.slane %v1663, 1
        %v1665 = vadd.f32 %v1663, %v1664
        %v1666 = vsel %vm1456, %v1600, 0.0
        %v1667 = vrot.slane %v1666, 4
        %v1668 = vadd.f32 %v1666, %v1667
        %v1669 = vrot.slane %v1668, 2
        %v1670 = vadd.f32 %v1668, %v1669
        %v1671 = vrot.slane %v1670, 1
        %v1672 = vadd.f32 %v1670, %v1671
        %v1673 = vsel %vm1456, %v1602, 0.0
        %v1674 = vrot.slane %v1673, 4
        %v1675 = vadd.f32 %v1673, %v1674
        %v1676 = vrot.slane %v1675, 2
        %v1677 = vadd.f32 %v1675, %v1676
        %v1678 = vrot.slane %v1677, 1
        %v1679 = vadd.f32 %v1677, %v1678
        %v1680 = vsel %vm1456, %v1604, 0.0
        %v1681 = vrot.slane %v1680, 4
        %v1682 = vadd.f32 %v1680, %v1681
        %v1683 = vrot.slane %v1682, 2
        %v1684 = vadd.f32 %v1682, %v1683
        %v1685 = vrot.slane %v1684, 1
        %v1686 = vadd.f32 %v1684, %v1685
        %v1687 = vsel %vm1456, %v1606, 0.0
        %v1688 = vrot.slane %v1687, 4
        %v1689 = vadd.f32 %v1687, %v1688
        %v1690 = vrot.slane %v1689, 2
        %v1691 = vadd.f32 %v1689, %v1690
        %v1692 = vrot.slane %v1691, 1
        %v1693 = vadd.f32 %v1691, %v1692
        %v1694 = vsel %vm1456, %v1608, 0.0
        %v1695 = vrot.slane %v1694, 4
        %v1696 = vadd.f32 %v1694, %v1695
        %v1697 = vrot.slane %v1696, 2
        %v1698 = vadd.f32 %v1696, %v1697
        %v1699 = vrot.slane %v1698, 1
        %v1700 = vadd.f32 %v1698, %v1699
        %v1701 = vsel %vm1456, %v1610, 0.0
        %v1702 = vrot.slane %v1701, 4
        %v1703 = vadd.f32 %v1701, %v1702
        %v1704 = vrot.slane %v1703, 2
        %v1705 = vadd.f32 %v1703, %v1704
        %v1706 = vrot.slane %v1705, 1
        %v1707 = vadd.f32 %v1705, %v1706
        %v1708 = vsel %vm1456, %v1612, 0.0
        %v1709 = vrot.slane %v1708, 4
        %v1710 = vadd.f32 %v1708, %v1709
        %v1711 = vrot.slane %v1710, 2
        %v1712 = vadd.f32 %v1710, %v1711
        %v1713 = vrot.slane %v1712, 1
        %v1714 = vadd.f32 %v1712, %v1713
        %v1715 = vsel %vm1456, %v1614, 0.0
        %v1716 = vrot.slane %v1715, 4
        %v1717 = vadd.f32 %v1715, %v1716
        %v1718 = vrot.slane %v1717, 2
        %v1719 = vadd.f32 %v1717, %v1718
        %v1720 = vrot.slane %v1719, 1
        %v1721 = vadd.f32 %v1719, %v1720
        %v1722 = vsel %vm1456, %v1616, 0.0
        %v1723 = vrot.slane %v1722, 4
        %v1724 = vadd.f32 %v1722, %v1723
        %v1725 = vrot.slane %v1724, 2
        %v1726 = vadd.f32 %v1724, %v1725
        %v1727 = vrot.slane %v1726, 1
        %v1728 = vadd.f32 %v1726, %v1727
        %v1729 = vrcp.pop %v1623
        %v1730 = vrcp.pop %v1630
        %v1731 = vrcp.pop %v1637
        %v1732 = vrcp.pop %v1644
        %v1733 = vrcp.pop %v1651
        %v1734 = vrcp.pop %v1658
        %v1735 = vrcp.pop %v1665
        %v1736 = vrcp.pop %v1672
        %v1737 = vrcp.pop %v1679
        %v1738 = vrcp.pop %v1686
        %v1739 = vrcp.pop %v1693
        %v1740 = vrcp.pop %v1700
        %v1741 = vrcp.pop %v1707
        %v1742 = vrcp.pop %v1714
        %v1743 = vrcp.pop %v1721
        %v1744 = vrcp.pop %v1728
        %v1745 = vmul.f32 %v1586, %v1729
        %v1746 = vmul.f32 %v1588, %v1730
        %v1747 = vmul.f32 %v1590, %v1731
        %v1748 = vmul.f32 %v1592, %v1732
        %v1749 = vmul.f32 %v1594, %v1733
        %v1750 = vmul.f32 %v1596, %v1734
        %v1751 = vmul.f32 %v1598, %v1735
        %v1752 = vmul.f32 %v1600, %v1736
        %v1753 = vmul.f32 %v1602, %v1737
        %v1754 = vmul.f32 %v1604, %v1738
        %v1755 = vmul.f32 %v1606, %v1739
        %v1756 = vmul.f32 %v1608, %v1740
        %v1757 = vmul.f32 %v1610, %v1741
        %v1758 = vmul.f32 %v1612, %v1742
        %v1759 = vmul.f32 %v1614, %v1743
        %v1760 = vmul.f32 %v1616, %v1744
        %v1761 = vpack.c.bf16 %v1746, %v1745
        %v1762 = vpack.c.bf16 %v1748, %v1747
        %v1763 = vpack.c.bf16 %v1750, %v1749
        %v1764 = vpack.c.bf16 %v1752, %v1751
        %v1765 = vpack.c.bf16 %v1754, %v1753
        %v1766 = vpack.c.bf16 %v1756, %v1755
        %v1767 = vpack.c.bf16 %v1758, %v1757
        %v1768 = vpack.c.bf16 %v1760, %v1759
        %v1769 = vld [vmem:[%s17] sm:$0xf]
        %v1771 = vsel %vm1456, %v1761, 0
        %v1774 = vsel %vm1456, %v1762, 0
        %v1777 = vsel %vm1456, %v1763, 0
        %v1780 = vsel %vm1456, %v1764, 0
        %v1783 = vsel %vm1456, %v1765, 0
        %v1786 = vsel %vm1456, %v1766, 0
        %v1789 = vsel %vm1456, %v1767, 0
        %v1792 = vsel %vm1456, %v1768, 0
        %vm1794 = vcmask 1043456
        %v1796 = vsel %vm1794, %v1769, 0
        %1798 = vmatpush.bf16.msra.mxu0 0
        %1799 = vmatpush.bf16.msra.mxu0 0
        %1800 = vmatpush.bf16.msra.mxu0 0
        %1801 = vmatpush.bf16.msra.mxu0 0
        %1802 = vmatpush.bf16.msra.mxu0 0
        %1803 = vmatpush.bf16.msra.mxu0 0
        %1804 = vmatpush.bf16.msra.mxu0 0
        %1805 = vmatpush.bf16.msra.mxu0 %v1796
        %1806 = vmatmul.bf16.gmra.mxu0 %v1771
        %v1807 = vpop.f32.mrf.mxu0
        %v1808 = vadd.f32 0.0, %v1807
        %v1809 = vpop.f32.mrf.mxu0
        %v1810 = vadd.f32 0.0, %v1809
        %1811 = vmatmul.bf16.gmra.mxu0 %v1774
        %v1812 = vpop.f32.mrf.mxu0
        %v1813 = vadd.f32 0.0, %v1812
        %v1814 = vpop.f32.mrf.mxu0
        %v1815 = vadd.f32 0.0, %v1814
        %1816 = vmatmul.bf16.gmra.mxu0 %v1777
        %v1817 = vpop.f32.mrf.mxu0
        %v1818 = vadd.f32 0.0, %v1817
        %v1819 = vpop.f32.mrf.mxu0
        %v1820 = vadd.f32 0.0, %v1819
        %1821 = vmatmul.bf16.gmra.mxu0 %v1780
        %v1822 = vpop.f32.mrf.mxu0
        %v1823 = vadd.f32 0.0, %v1822
        %v1824 = vpop.f32.mrf.mxu0
        %v1825 = vadd.f32 0.0, %v1824
        %1826 = vmatmul.bf16.gmra.mxu0 %v1783
        %v1827 = vpop.f32.mrf.mxu0
        %v1828 = vadd.f32 0.0, %v1827
        %v1829 = vpop.f32.mrf.mxu0
        %v1830 = vadd.f32 0.0, %v1829
        %1831 = vmatmul.bf16.gmra.mxu0 %v1786
        %v1832 = vpop.f32.mrf.mxu0
        %v1833 = vadd.f32 0.0, %v1832
        %v1834 = vpop.f32.mrf.mxu0
        %v1835 = vadd.f32 0.0, %v1834
        %1836 = vmatmul.bf16.gmra.mxu0 %v1789
        %v1837 = vpop.f32.mrf.mxu0
        %v1838 = vadd.f32 0.0, %v1837
        %v1839 = vpop.f32.mrf.mxu0
        %v1840 = vadd.f32 0.0, %v1839
        %1841 = vmatmul.bf16.gmra.mxu0 %v1792
        %v1842 = vpop.f32.mrf.mxu0
        %v1843 = vadd.f32 0.0, %v1842
        %v1844 = vpop.f32.mrf.mxu0
        %v1845 = vadd.f32 0.0, %v1844
        %1846 = vdwg.mxu0
        %v1847 = vmul.f32 %v1808, %v1179
        %v1848 = vmul.f32 %v1810, %v1179
        %v1849 = vmul.f32 %v1813, %v1179
        %v1850 = vmul.f32 %v1815, %v1179
        %v1851 = vmul.f32 %v1818, %v1179
        %v1852 = vmul.f32 %v1820, %v1179
        %v1853 = vmul.f32 %v1823, %v1179
        %v1854 = vmul.f32 %v1825, %v1179
        %v1855 = vmul.f32 %v1828, %v1181
        %v1856 = vmul.f32 %v1830, %v1181
        %v1857 = vmul.f32 %v1833, %v1181
        %v1858 = vmul.f32 %v1835, %v1181
        %v1859 = vmul.f32 %v1838, %v1181
        %v1860 = vmul.f32 %v1840, %v1181
        %v1861 = vmul.f32 %v1843, %v1181
        %v1862 = vmul.f32 %v1845, %v1181
        %v1863 = vrot.slane %v1847, 4
        %v1864 = vadd.f32 %v1847, %v1863
        %v1865 = vrot.slane %v1864, 2
        %v1866 = vadd.f32 %v1864, %v1865
        %v1867 = vrot.slane %v1866, 1
        %v1868 = vadd.f32 %v1866, %v1867
        %v1869 = vrot.slane %v1848, 4
        %v1870 = vadd.f32 %v1848, %v1869
        %v1871 = vrot.slane %v1870, 2
        %v1872 = vadd.f32 %v1870, %v1871
        %v1873 = vrot.slane %v1872, 1
        %v1874 = vadd.f32 %v1872, %v1873
        %v1875 = vrot.slane %v1849, 4
        %v1876 = vadd.f32 %v1849, %v1875
        %v1877 = vrot.slane %v1876, 2
        %v1878 = vadd.f32 %v1876, %v1877
        %v1879 = vrot.slane %v1878, 1
        %v1880 = vadd.f32 %v1878, %v1879
        %v1881 = vrot.slane %v1850, 4
        %v1882 = vadd.f32 %v1850, %v1881
        %v1883 = vrot.slane %v1882, 2
        %v1884 = vadd.f32 %v1882, %v1883
        %v1885 = vrot.slane %v1884, 1
        %v1886 = vadd.f32 %v1884, %v1885
        %v1887 = vrot.slane %v1851, 4
        %v1888 = vadd.f32 %v1851, %v1887
        %v1889 = vrot.slane %v1888, 2
        %v1890 = vadd.f32 %v1888, %v1889
        %v1891 = vrot.slane %v1890, 1
        %v1892 = vadd.f32 %v1890, %v1891
        %v1893 = vrot.slane %v1852, 4
        %v1894 = vadd.f32 %v1852, %v1893
        %v1895 = vrot.slane %v1894, 2
        %v1896 = vadd.f32 %v1894, %v1895
        %v1897 = vrot.slane %v1896, 1
        %v1898 = vadd.f32 %v1896, %v1897
        %v1899 = vrot.slane %v1853, 4
        %v1900 = vadd.f32 %v1853, %v1899
        %v1901 = vrot.slane %v1900, 2
        %v1902 = vadd.f32 %v1900, %v1901
        %v1903 = vrot.slane %v1902, 1
        %v1904 = vadd.f32 %v1902, %v1903
        %v1905 = vrot.slane %v1854, 4
        %v1906 = vadd.f32 %v1854, %v1905
        %v1907 = vrot.slane %v1906, 2
        %v1908 = vadd.f32 %v1906, %v1907
        %v1909 = vrot.slane %v1908, 1
        %v1910 = vadd.f32 %v1908, %v1909
        %v1911 = vrot.slane %v1855, 4
        %v1912 = vadd.f32 %v1855, %v1911
        %v1913 = vrot.slane %v1912, 2
        %v1914 = vadd.f32 %v1912, %v1913
        %v1915 = vrot.slane %v1914, 1
        %v1916 = vadd.f32 %v1914, %v1915
        %v1917 = vrot.slane %v1856, 4
        %v1918 = vadd.f32 %v1856, %v1917
        %v1919 = vrot.slane %v1918, 2
        %v1920 = vadd.f32 %v1918, %v1919
        %v1921 = vrot.slane %v1920, 1
        %v1922 = vadd.f32 %v1920, %v1921
        %v1923 = vrot.slane %v1857, 4
        %v1924 = vadd.f32 %v1857, %v1923
        %v1925 = vrot.slane %v1924, 2
        %v1926 = vadd.f32 %v1924, %v1925
        %v1927 = vrot.slane %v1926, 1
        %v1928 = vadd.f32 %v1926, %v1927
        %v1929 = vrot.slane %v1858, 4
        %v1930 = vadd.f32 %v1858, %v1929
        %v1931 = vrot.slane %v1930, 2
        %v1932 = vadd.f32 %v1930, %v1931
        %v1933 = vrot.slane %v1932, 1
        %v1934 = vadd.f32 %v1932, %v1933
        %v1935 = vrot.slane %v1859, 4
        %v1936 = vadd.f32 %v1859, %v1935
        %v1937 = vrot.slane %v1936, 2
        %v1938 = vadd.f32 %v1936, %v1937
        %v1939 = vrot.slane %v1938, 1
        %v1940 = vadd.f32 %v1938, %v1939
        %v1941 = vrot.slane %v1860, 4
        %v1942 = vadd.f32 %v1860, %v1941
        %v1943 = vrot.slane %v1942, 2
        %v1944 = vadd.f32 %v1942, %v1943
        %v1945 = vrot.slane %v1944, 1
        %v1946 = vadd.f32 %v1944, %v1945
        %v1947 = vrot.slane %v1861, 4
        %v1948 = vadd.f32 %v1861, %v1947
        %v1949 = vrot.slane %v1948, 2
        %v1950 = vadd.f32 %v1948, %v1949
        %v1951 = vrot.slane %v1950, 1
        %v1952 = vadd.f32 %v1950, %v1951
        %v1953 = vrot.slane %v1862, 4
        %v1954 = vadd.f32 %v1862, %v1953
        %v1955 = vrot.slane %v1954, 2
        %v1956 = vadd.f32 %v1954, %v1955
        %v1957 = vrot.slane %v1956, 1
        %v1958 = vadd.f32 %v1956, %v1957
        %v1959 = vpack.c.bf16 %v1868, %v1868
        %v1960 = vpack.c.bf16 %v1874, %v1874
        %v1961 = vpack.c.bf16 %v1880, %v1880
        %v1962 = vpack.c.bf16 %v1886, %v1886
        %v1963 = vpack.c.bf16 %v1892, %v1892
        %v1964 = vpack.c.bf16 %v1898, %v1898
        %v1965 = vpack.c.bf16 %v1904, %v1904
        %v1966 = vpack.c.bf16 %v1910, %v1910
        %v1967 = vpack.c.bf16 %v1916, %v1916
        %v1968 = vpack.c.bf16 %v1922, %v1922
        %v1969 = vpack.c.bf16 %v1928, %v1928
        %v1970 = vpack.c.bf16 %v1934, %v1934
        %v1971 = vpack.c.bf16 %v1940, %v1940
        %v1972 = vpack.c.bf16 %v1946, %v1946
        %v1973 = vpack.c.bf16 %v1952, %v1952
        %v1974 = vpack.c.bf16 %v1958, %v1958
        %v1975 = vld [vmem:[%s738] sm:$0xf]
        %v1976 = vld [vmem:[%s738 + $0x4] sm:$0xf]
        %v1977 = vld [vmem:[%s738 + $0x8] sm:$0xf]
        %v1978 = vld [vmem:[%s738 + $0xc] sm:$0xf]
        %v1979 = vld [vmem:[%s738 + $0x10] sm:$0xf]
        %v1980 = vld [vmem:[%s738 + $0x14] sm:$0xf]
        %v1981 = vld [vmem:[%s738 + $0x18] sm:$0xf]
        %v1982 = vld [vmem:[%s738 + $0x1c] sm:$0xf]
        %v1983 = vld [vmem:[%s738 + $0x20] sm:$0xf]
        %v1984 = vld [vmem:[%s738 + $0x24] sm:$0xf]
        %v1985 = vld [vmem:[%s738 + $0x28] sm:$0xf]
        %v1986 = vld [vmem:[%s738 + $0x2c] sm:$0xf]
        %v1987 = vld [vmem:[%s738 + $0x30] sm:$0xf]
        %v1988 = vld [vmem:[%s738 + $0x34] sm:$0xf]
        %v1989 = vld [vmem:[%s738 + $0x38] sm:$0xf]
        %v1990 = vld [vmem:[%s738 + $0x3c] sm:$0xf]
        %v1991 = vld [vmem:[%s858] sm:$0x1]
        %v1993 = vperm.slane %v1991, 0
        %v2011 = vunpack.c.l.b16 %v1959
        %v2012 = vunpack.c.l.b16 %v1960
        %v2013 = vunpack.c.l.b16 %v1961
        %v2014 = vunpack.c.l.b16 %v1962
        %v2015 = vunpack.c.l.b16 %v1963
        %v2016 = vunpack.c.l.b16 %v1964
        %v2017 = vunpack.c.l.b16 %v1965
        %v2018 = vunpack.c.l.b16 %v1966
        %v2019 = vunpack.c.l.b16 %v1967
        %v2020 = vunpack.c.l.b16 %v1968
        %v2021 = vunpack.c.l.b16 %v1969
        %v2022 = vunpack.c.l.b16 %v1970
        %v2023 = vunpack.c.l.b16 %v1971
        %v2024 = vunpack.c.l.b16 %v1972
        %v2025 = vunpack.c.l.b16 %v1973
        %v2026 = vunpack.c.l.b16 %v1974
        %vm2027 = vcmask 1041409
        %v2028 = vsel %vm2027, %v2012, %v2011
        %vm2029 = vcmask 1042434
        %v2030 = vsel %vm2029, %v2013, %v2028
        %vm2031 = vcmask 1043459
        %v2032 = vsel %vm2031, %v2014, %v2030
        %vm2033 = vcmask 1044484
        %v2034 = vsel %vm2033, %v2015, %v2032
        %vm2035 = vcmask 1045509
        %v2036 = vsel %vm2035, %v2016, %v2034
        %vm2037 = vcmask 1046534
        %v2038 = vsel %vm2037, %v2017, %v2036
        %vm2039 = vcmask 1047559
        %v2040 = vsel %vm2039, %v2018, %v2038
        %v2041 = vsel %vm2027, %v2020, %v2019
        %v2042 = vsel %vm2029, %v2021, %v2041
        %v2043 = vsel %vm2031, %v2022, %v2042
        %v2044 = vsel %vm2033, %v2023, %v2043
        %v2045 = vsel %vm2035, %v2024, %v2044
        %v2046 = vsel %vm2037, %v2025, %v2045
        %v2047 = vsel %vm2039, %v2026, %v2046
        %v2048 = vpack.c.b16 %v2047, %v2040
        %v2066 = vunpack.c.l.b16 %v1975
        %v2067 = vunpack.c.l.b16 %v1976
        %v2068 = vunpack.c.l.b16 %v1977
        %v2069 = vunpack.c.l.b16 %v1978
        %v2070 = vunpack.c.l.b16 %v1979
        %v2071 = vunpack.c.l.b16 %v1980
        %v2072 = vunpack.c.l.b16 %v1981
        %v2073 = vunpack.c.l.b16 %v1982
        %v2074 = vunpack.c.l.b16 %v1983
        %v2075 = vunpack.c.l.b16 %v1984
        %v2076 = vunpack.c.l.b16 %v1985
        %v2077 = vunpack.c.l.b16 %v1986
        %v2078 = vunpack.c.l.b16 %v1987
        %v2079 = vunpack.c.l.b16 %v1988
        %v2080 = vunpack.c.l.b16 %v1989
        %v2081 = vunpack.c.l.b16 %v1990
        %v2082 = vpack.c.b16 %v2067, %v2066
        %v2083 = vpack.c.b16 %v2069, %v2068
        %v2084 = vpack.c.b16 %v2071, %v2070
        %v2085 = vpack.c.b16 %v2073, %v2072
        %v2086 = vpack.c.b16 %v2075, %v2074
        %v2087 = vpack.c.b16 %v2077, %v2076
        %v2088 = vpack.c.b16 %v2079, %v2078
        %v2089 = vpack.c.b16 %v2081, %v2080
        %2098 = vmatpush.bf16.msra.mxu0 %v2089
        %2099 = vmatpush.bf16.msra.mxu0 %v2088
        %2100 = vmatpush.bf16.msra.mxu0 %v2087
        %2101 = vmatpush.bf16.msra.mxu0 %v2086
        %2102 = vmatpush.bf16.msra.mxu0 %v2085
        %2103 = vmatpush.bf16.msra.mxu0 %v2084
        %2104 = vmatpush.bf16.msra.mxu0 %v2083
        %2105 = vmatpush.bf16.msra.mxu0 %v2082
        %2106 = vmatmul.bf16.gmra.mxu0 %v2048
        %v2107 = vpop.f32.mrf.mxu0
        %v2108 = vadd.f32 %v1993, %v2107
        %v2109 = vpop.f32.mrf.mxu0
        %v2110 = vadd.f32 %v1993, %v2109
        %2111 = vdwg.mxu0
        %v2112 = vadd.f32 %v970, %v2108
        %v2113 = vadd.f32 %v971, %v2110
        %v2114 = vld [vmem:[%s861] sm:$0x1]
        %v2115 = vld [vmem:[%s864] sm:$0x1]
        %2116 = vadd.xlane.f32.xlu0 %v2112
        %v2117 = vpop.xlane.xlu0 %2116
        %2118 = vadd.xlane.f32.xlu0 %v2113
        %v2119 = vpop.xlane.xlu0 %2118
        %v2120 = vrcp.pop 128.0
        %v2121 = vmul.f32 128.0, %v2120
        %v2122 = vsub.f32 1.0, %v2121
        %v2123 = vmul.f32 %v2120, %v2122
        %v2124 = vadd.f32 %v2120, %v2123
        %vm2125 = vweird.f32 %v2120
        %v2126 = vsel %vm2125, %v2120, %v2124
        %v2127 = vmul.f32 %v2117, %v2126
        %v2128 = vmul.f32 %v2119, %v2126
        %v2129 = vsub.f32 %v2112, %v2127
        %v2130 = vsub.f32 %v2113, %v2128
        %v2131 = vmul.f32 %v2129, %v2129
        %v2132 = vmul.f32 %v2130, %v2130
        %2133 = vadd.xlane.f32.xlu0 %v2131
        %v2134 = vpop.xlane.xlu0 %2133
        %2135 = vadd.xlane.f32.xlu0 %v2132
        %v2136 = vpop.xlane.xlu0 %2135
        %v2137 = vmul.f32 %v2134, %v2126
        %v2138 = vmul.f32 %v2136, %v2126
        %v2139 = vadd.f32 %v2137, 1e-12
        %v2140 = vadd.f32 %v2138, 1e-12
        %v2141 = vrsqrt.pop %v2139
        %v2142 = vmul.f32 %v2141, %v2139
        %v2143 = vmul.f32 %v2142, %v2141
        %v2144 = vmul.f32 0.5, %v2143
        %v2145 = vsub.f32 1.5, %v2144
        %v2146 = vmul.f32 %v2141, %v2145
        %vm2147 = vweird.f32 %v2139
        %vm2148 = vweird.f32 %v2141
        %vm2149 = vmor %vm2147, %vm2148
        %v2150 = vsel %vm2149, %v2141, %v2146
        %v2151 = vrsqrt.pop %v2140
        %v2152 = vmul.f32 %v2151, %v2140
        %v2153 = vmul.f32 %v2152, %v2151
        %v2154 = vmul.f32 0.5, %v2153
        %v2155 = vsub.f32 1.5, %v2154
        %v2156 = vmul.f32 %v2151, %v2155
        %vm2157 = vweird.f32 %v2140
        %vm2158 = vweird.f32 %v2151
        %vm2159 = vmor %vm2157, %vm2158
        %v2160 = vsel %vm2159, %v2151, %v2156
        %v2161 = vmul.f32 %v2129, %v2150
        %v2162 = vmul.f32 %v2130, %v2160
        %v2164 = vperm.slane %v2114, 0
        %v2166 = vmul.f32 %v2161, %v2164
        %v2167 = vmul.f32 %v2162, %v2164
        %v2169 = vperm.slane %v2115, 0
        %v2171 = vadd.f32 %v2166, %v2169
        %v2172 = vadd.f32 %v2167, %v2169
        %v2173 = vpack.c.bf16 %v2172, %v2171
        %v2174 = vld [vmem:[%s748] sm:$0xff]
        %v2175 = vld [vmem:[%s748 + $0x8] sm:$0xff]
        %v2176 = vld [vmem:[%s748 + $0x10] sm:$0xff]
        %v2177 = vld [vmem:[%s748 + $0x18] sm:$0xff]
        %v2178 = vld [vmem:[%s748 + $0x20] sm:$0xff]
        %v2179 = vld [vmem:[%s748 + $0x28] sm:$0xff]
        %v2180 = vld [vmem:[%s748 + $0x30] sm:$0xff]
        %v2181 = vld [vmem:[%s748 + $0x38] sm:$0xff]
        %v2182 = vld [vmem:[%s748 + $0x40] sm:$0xff]
        %v2183 = vld [vmem:[%s748 + $0x48] sm:$0xff]
        %v2184 = vld [vmem:[%s748 + $0x50] sm:$0xff]
        %v2185 = vld [vmem:[%s748 + $0x58] sm:$0xff]
        %v2186 = vld [vmem:[%s748 + $0x60] sm:$0xff]
        %v2187 = vld [vmem:[%s748 + $0x68] sm:$0xff]
        %v2188 = vld [vmem:[%s748 + $0x70] sm:$0xff]
        %v2189 = vld [vmem:[%s748 + $0x78] sm:$0xff]
        %v2190 = vld [vmem:[%s748 + $0x80] sm:$0xff]
        %v2191 = vld [vmem:[%s748 + $0x88] sm:$0xff]
        %v2192 = vld [vmem:[%s748 + $0x90] sm:$0xff]
        %v2193 = vld [vmem:[%s748 + $0x98] sm:$0xff]
        %v2194 = vld [vmem:[%s748 + $0xa0] sm:$0xff]
        %v2195 = vld [vmem:[%s748 + $0xa8] sm:$0xff]
        %v2196 = vld [vmem:[%s748 + $0xb0] sm:$0xff]
        %v2197 = vld [vmem:[%s748 + $0xb8] sm:$0xff]
        %v2198 = vld [vmem:[%s748 + $0xc0] sm:$0xff]
        %v2199 = vld [vmem:[%s748 + $0xc8] sm:$0xff]
        %v2200 = vld [vmem:[%s748 + $0xd0] sm:$0xff]
        %v2201 = vld [vmem:[%s748 + $0xd8] sm:$0xff]
        %v2202 = vld [vmem:[%s748 + $0xe0] sm:$0xff]
        %v2203 = vld [vmem:[%s748 + $0xe8] sm:$0xff]
        %v2204 = vld [vmem:[%s748 + $0xf0] sm:$0xff]
        %v2205 = vld [vmem:[%s748 + $0xf8] sm:$0xff]
        %v2206 = vld [vmem:[%s868] sm:$0xf]
        %v2208 = vperm.slane %v2206, 0
        %v2209 = vperm.slane %v2206, 1
        %v2210 = vperm.slane %v2206, 2
        %v2211 = vperm.slane %v2206, 3
        %v2248 = vunpack.c.l.b16 %v2174
        %v2249 = vunpack.c.h.b16 %v2174
        %v2250 = vunpack.c.l.b16 %v2175
        %v2251 = vunpack.c.h.b16 %v2175
        %v2252 = vunpack.c.l.b16 %v2176
        %v2253 = vunpack.c.h.b16 %v2176
        %v2254 = vunpack.c.l.b16 %v2177
        %v2255 = vunpack.c.h.b16 %v2177
        %v2256 = vunpack.c.l.b16 %v2178
        %v2257 = vunpack.c.h.b16 %v2178
        %v2258 = vunpack.c.l.b16 %v2179
        %v2259 = vunpack.c.h.b16 %v2179
        %v2260 = vunpack.c.l.b16 %v2180
        %v2261 = vunpack.c.h.b16 %v2180
        %v2262 = vunpack.c.l.b16 %v2181
        %v2263 = vunpack.c.h.b16 %v2181
        %v2264 = vunpack.c.l.b16 %v2182
        %v2265 = vunpack.c.h.b16 %v2182
        %v2266 = vunpack.c.l.b16 %v2183
        %v2267 = vunpack.c.h.b16 %v2183
        %v2268 = vunpack.c.l.b16 %v2184
        %v2269 = vunpack.c.h.b16 %v2184
        %v2270 = vunpack.c.l.b16 %v2185
        %v2271 = vunpack.c.h.b16 %v2185
        %v2272 = vunpack.c.l.b16 %v2186
        %v2273 = vunpack.c.h.b16 %v2186
        %v2274 = vunpack.c.l.b16 %v2187
        %v2275 = vunpack.c.h.b16 %v2187
        %v2276 = vunpack.c.l.b16 %v2188
        %v2277 = vunpack.c.h.b16 %v2188
        %v2278 = vunpack.c.l.b16 %v2189
        %v2279 = vunpack.c.h.b16 %v2189
        %v2280 = vunpack.c.l.b16 %v2190
        %v2281 = vunpack.c.h.b16 %v2190
        %v2282 = vunpack.c.l.b16 %v2191
        %v2283 = vunpack.c.h.b16 %v2191
        %v2284 = vunpack.c.l.b16 %v2192
        %v2285 = vunpack.c.h.b16 %v2192
        %v2286 = vunpack.c.l.b16 %v2193
        %v2287 = vunpack.c.h.b16 %v2193
        %v2288 = vunpack.c.l.b16 %v2194
        %v2289 = vunpack.c.h.b16 %v2194
        %v2290 = vunpack.c.l.b16 %v2195
        %v2291 = vunpack.c.h.b16 %v2195
        %v2292 = vunpack.c.l.b16 %v2196
        %v2293 = vunpack.c.h.b16 %v2196
        %v2294 = vunpack.c.l.b16 %v2197
        %v2295 = vunpack.c.h.b16 %v2197
        %v2296 = vunpack.c.l.b16 %v2198
        %v2297 = vunpack.c.h.b16 %v2198
        %v2298 = vunpack.c.l.b16 %v2199
        %v2299 = vunpack.c.h.b16 %v2199
        %v2300 = vunpack.c.l.b16 %v2200
        %v2301 = vunpack.c.h.b16 %v2200
        %v2302 = vunpack.c.l.b16 %v2201
        %v2303 = vunpack.c.h.b16 %v2201
        %v2304 = vunpack.c.l.b16 %v2202
        %v2305 = vunpack.c.h.b16 %v2202
        %v2306 = vunpack.c.l.b16 %v2203
        %v2307 = vunpack.c.h.b16 %v2203
        %v2308 = vunpack.c.l.b16 %v2204
        %v2309 = vunpack.c.h.b16 %v2204
        %v2310 = vunpack.c.l.b16 %v2205
        %v2311 = vunpack.c.h.b16 %v2205
        %v2312 = vpack.c.b16 %v2252, %v2248
        %v2313 = vpack.c.b16 %v2253, %v2249
        %v2314 = vpack.c.b16 %v2254, %v2250
        %v2315 = vpack.c.b16 %v2255, %v2251
        %v2316 = vpack.c.b16 %v2260, %v2256
        %v2317 = vpack.c.b16 %v2261, %v2257
        %v2318 = vpack.c.b16 %v2262, %v2258
        %v2319 = vpack.c.b16 %v2263, %v2259
        %v2320 = vpack.c.b16 %v2268, %v2264
        %v2321 = vpack.c.b16 %v2269, %v2265
        %v2322 = vpack.c.b16 %v2270, %v2266
        %v2323 = vpack.c.b16 %v2271, %v2267
        %v2324 = vpack.c.b16 %v2276, %v2272
        %v2325 = vpack.c.b16 %v2277, %v2273
        %v2326 = vpack.c.b16 %v2278, %v2274
        %v2327 = vpack.c.b16 %v2279, %v2275
        %v2328 = vpack.c.b16 %v2284, %v2280
        %v2329 = vpack.c.b16 %v2285, %v2281
        %v2330 = vpack.c.b16 %v2286, %v2282
        %v2331 = vpack.c.b16 %v2287, %v2283
        %v2332 = vpack.c.b16 %v2292, %v2288
        %v2333 = vpack.c.b16 %v2293, %v2289
        %v2334 = vpack.c.b16 %v2294, %v2290
        %v2335 = vpack.c.b16 %v2295, %v2291
        %v2336 = vpack.c.b16 %v2300, %v2296
        %v2337 = vpack.c.b16 %v2301, %v2297
        %v2338 = vpack.c.b16 %v2302, %v2298
        %v2339 = vpack.c.b16 %v2303, %v2299
        %v2340 = vpack.c.b16 %v2308, %v2304
        %v2341 = vpack.c.b16 %v2309, %v2305
        %v2342 = vpack.c.b16 %v2310, %v2306
        %v2343 = vpack.c.b16 %v2311, %v2307
        %2376 = vmatpush.bf16.msra.mxu0 %v2340
        %2377 = vmatpush.bf16.msra.mxu0 %v2336
        %2378 = vmatpush.bf16.msra.mxu0 %v2332
        %2379 = vmatpush.bf16.msra.mxu0 %v2328
        %2380 = vmatpush.bf16.msra.mxu0 %v2324
        %2381 = vmatpush.bf16.msra.mxu0 %v2320
        %2382 = vmatpush.bf16.msra.mxu0 %v2316
        %2383 = vmatpush.bf16.msra.mxu0 %v2312
        %2384 = vmatmul.bf16.gmra.mxu0 %v2173
        %v2385 = vpop.f32.mrf.mxu0
        %v2386 = vadd.f32 %v2208, %v2385
        %v2387 = vpop.f32.mrf.mxu0
        %v2388 = vadd.f32 %v2208, %v2387
        %2389 = vdwg.mxu0
        %2390 = vmatpush.bf16.msra.mxu0 %v2341
        %2391 = vmatpush.bf16.msra.mxu0 %v2337
        %2392 = vmatpush.bf16.msra.mxu0 %v2333
        %2393 = vmatpush.bf16.msra.mxu0 %v2329
        %2394 = vmatpush.bf16.msra.mxu0 %v2325
        %2395 = vmatpush.bf16.msra.mxu0 %v2321
        %2396 = vmatpush.bf16.msra.mxu0 %v2317
        %2397 = vmatpush.bf16.msra.mxu0 %v2313
        %2398 = vmatmul.bf16.gmra.mxu0 %v2173
        %v2399 = vpop.f32.mrf.mxu0
        %v2400 = vadd.f32 %v2209, %v2399
        %v2401 = vpop.f32.mrf.mxu0
        %v2402 = vadd.f32 %v2209, %v2401
        %2403 = vdwg.mxu0
        %2404 = vmatpush.bf16.msra.mxu0 %v2342
        %2405 = vmatpush.bf16.msra.mxu0 %v2338
        %2406 = vmatpush.bf16.msra.mxu0 %v2334
        %2407 = vmatpush.bf16.msra.mxu0 %v2330
        %2408 = vmatpush.bf16.msra.mxu0 %v2326
        %2409 = vmatpush.bf16.msra.mxu0 %v2322
        %2410 = vmatpush.bf16.msra.mxu0 %v2318
        %2411 = vmatpush.bf16.msra.mxu0 %v2314
        %2412 = vmatmul.bf16.gmra.mxu0 %v2173
        %v2413 = vpop.f32.mrf.mxu0
        %v2414 = vadd.f32 %v2210, %v2413
        %v2415 = vpop.f32.mrf.mxu0
        %v2416 = vadd.f32 %v2210, %v2415
        %2417 = vdwg.mxu0
        %2418 = vmatpush.bf16.msra.mxu0 %v2343
        %2419 = vmatpush.bf16.msra.mxu0 %v2339
        %2420 = vmatpush.bf16.msra.mxu0 %v2335
        %2421 = vmatpush.bf16.msra.mxu0 %v2331
        %2422 = vmatpush.bf16.msra.mxu0 %v2327
        %2423 = vmatpush.bf16.msra.mxu0 %v2323
        %2424 = vmatpush.bf16.msra.mxu0 %v2319
        %2425 = vmatpush.bf16.msra.mxu0 %v2315
        %2426 = vmatmul.bf16.gmra.mxu0 %v2173
        %v2427 = vpop.f32.mrf.mxu0
        %v2428 = vadd.f32 %v2211, %v2427
        %v2429 = vpop.f32.mrf.mxu0
        %v2430 = vadd.f32 %v2211, %v2429
        %2431 = vdwg.mxu0
        %v2432 = vmul.f32 %v2386, 0.5
        %v2433 = vmul.f32 %v2400, 0.5
        %v2434 = vmul.f32 %v2414, 0.5
        %v2435 = vmul.f32 %v2428, 0.5
        %v2436 = vmul.f32 %v2388, 0.5
        %v2437 = vmul.f32 %v2402, 0.5
        %v2438 = vmul.f32 %v2416, 0.5
        %v2439 = vmul.f32 %v2430, 0.5
        %v2440 = vmul.f32 %v2386, 0.044715
        %v2441 = vmul.f32 %v2400, 0.044715
        %v2442 = vmul.f32 %v2414, 0.044715
        %v2443 = vmul.f32 %v2428, 0.044715
        %v2444 = vmul.f32 %v2388, 0.044715
        %v2445 = vmul.f32 %v2402, 0.044715
        %v2446 = vmul.f32 %v2416, 0.044715
        %v2447 = vmul.f32 %v2430, 0.044715
        %v2448 = vmul.f32 %v2440, %v2386
        %v2449 = vmul.f32 %v2441, %v2400
        %v2450 = vmul.f32 %v2442, %v2414
        %v2451 = vmul.f32 %v2443, %v2428
        %v2452 = vmul.f32 %v2444, %v2388
        %v2453 = vmul.f32 %v2445, %v2402
        %v2454 = vmul.f32 %v2446, %v2416
        %v2455 = vmul.f32 %v2447, %v2430
        %v2456 = vmul.f32 %v2448, %v2386
        %v2457 = vmul.f32 %v2449, %v2400
        %v2458 = vmul.f32 %v2450, %v2414
        %v2459 = vmul.f32 %v2451, %v2428
        %v2460 = vmul.f32 %v2452, %v2388
        %v2461 = vmul.f32 %v2453, %v2402
        %v2462 = vmul.f32 %v2454, %v2416
        %v2463 = vmul.f32 %v2455, %v2430
        %v2464 = vadd.f32 %v2386, %v2456
        %v2465 = vadd.f32 %v2400, %v2457
        %v2466 = vadd.f32 %v2414, %v2458
        %v2467 = vadd.f32 %v2428, %v2459
        %v2468 = vadd.f32 %v2388, %v2460
        %v2469 = vadd.f32 %v2402, %v2461
        %v2470 = vadd.f32 %v2416, %v2462
        %v2471 = vadd.f32 %v2430, %v2463
        %v2472 = vmul.f32 %v2464, 0.7978846
        %v2473 = vmul.f32 %v2465, 0.7978846
        %v2474 = vmul.f32 %v2466, 0.7978846
        %v2475 = vmul.f32 %v2467, 0.7978846
        %v2476 = vmul.f32 %v2468, 0.7978846
        %v2477 = vmul.f32 %v2469, 0.7978846
        %v2478 = vmul.f32 %v2470, 0.7978846
        %v2479 = vmul.f32 %v2471, 0.7978846
        %v2480 = vtanh.pop %v2472
        %v2481 = vtanh.pop %v2473
        %v2482 = vtanh.pop %v2474
        %v2483 = vtanh.pop %v2475
        %v2484 = vtanh.pop %v2476
        %v2485 = vtanh.pop %v2477
        %v2486 = vtanh.pop %v2478
        %v2487 = vtanh.pop %v2479
        %v2488 = vadd.f32 %v2480, 1.0
        %v2489 = vadd.f32 %v2481, 1.0
        %v2490 = vadd.f32 %v2482, 1.0
        %v2491 = vadd.f32 %v2483, 1.0
        %v2492 = vadd.f32 %v2484, 1.0
        %v2493 = vadd.f32 %v2485, 1.0
        %v2494 = vadd.f32 %v2486, 1.0
        %v2495 = vadd.f32 %v2487, 1.0
        %v2496 = vmul.f32 %v2432, %v2488
        %v2497 = vmul.f32 %v2433, %v2489
        %v2498 = vmul.f32 %v2434, %v2490
        %v2499 = vmul.f32 %v2435, %v2491
        %v2500 = vmul.f32 %v2436, %v2492
        %v2501 = vmul.f32 %v2437, %v2493
        %v2502 = vmul.f32 %v2438, %v2494
        %v2503 = vmul.f32 %v2439, %v2495
        %v2504 = vpack.c.bf16 %v2500, %v2496
        %v2505 = vpack.c.bf16 %v2501, %v2497
        %v2506 = vpack.c.bf16 %v2502, %v2498
        %v2507 = vpack.c.bf16 %v2503, %v2499
        %v2508 = vld [vmem:[%s758] sm:$0xf]
        %v2509 = vld [vmem:[%s758 + $0x4] sm:$0xf]
        %v2510 = vld [vmem:[%s758 + $0x8] sm:$0xf]
        %v2511 = vld [vmem:[%s758 + $0xc] sm:$0xf]
        %v2512 = vld [vmem:[%s758 + $0x10] sm:$0xf]
        %v2513 = vld [vmem:[%s758 + $0x14] sm:$0xf]
        %v2514 = vld [vmem:[%s758 + $0x18] sm:$0xf]
        %v2515 = vld [vmem:[%s758 + $0x1c] sm:$0xf]
        %v2516 = vld [vmem:[%s758 + $0x20] sm:$0xf]
        %v2517 = vld [vmem:[%s758 + $0x24] sm:$0xf]
        %v2518 = vld [vmem:[%s758 + $0x28] sm:$0xf]
        %v2519 = vld [vmem:[%s758 + $0x2c] sm:$0xf]
        %v2520 = vld [vmem:[%s758 + $0x30] sm:$0xf]
        %v2521 = vld [vmem:[%s758 + $0x34] sm:$0xf]
        %v2522 = vld [vmem:[%s758 + $0x38] sm:$0xf]
        %v2523 = vld [vmem:[%s758 + $0x3c] sm:$0xf]
        %v2524 = vld [vmem:[%s758 + $0x40] sm:$0xf]
        %v2525 = vld [vmem:[%s758 + $0x44] sm:$0xf]
        %v2526 = vld [vmem:[%s758 + $0x48] sm:$0xf]
        %v2527 = vld [vmem:[%s758 + $0x4c] sm:$0xf]
        %v2528 = vld [vmem:[%s758 + $0x50] sm:$0xf]
        %v2529 = vld [vmem:[%s758 + $0x54] sm:$0xf]
        %v2530 = vld [vmem:[%s758 + $0x58] sm:$0xf]
        %v2531 = vld [vmem:[%s758 + $0x5c] sm:$0xf]
        %v2532 = vld [vmem:[%s758 + $0x60] sm:$0xf]
        %v2533 = vld [vmem:[%s758 + $0x64] sm:$0xf]
        %v2534 = vld [vmem:[%s758 + $0x68] sm:$0xf]
        %v2535 = vld [vmem:[%s758 + $0x6c] sm:$0xf]
        %v2536 = vld [vmem:[%s758 + $0x70] sm:$0xf]
        %v2537 = vld [vmem:[%s758 + $0x74] sm:$0xf]
        %v2538 = vld [vmem:[%s758 + $0x78] sm:$0xf]
        %v2539 = vld [vmem:[%s758 + $0x7c] sm:$0xf]
        %v2540 = vld [vmem:[%s758 + $0x80] sm:$0xf]
        %v2541 = vld [vmem:[%s758 + $0x84] sm:$0xf]
        %v2542 = vld [vmem:[%s758 + $0x88] sm:$0xf]
        %v2543 = vld [vmem:[%s758 + $0x8c] sm:$0xf]
        %v2544 = vld [vmem:[%s758 + $0x90] sm:$0xf]
        %v2545 = vld [vmem:[%s758 + $0x94] sm:$0xf]
        %v2546 = vld [vmem:[%s758 + $0x98] sm:$0xf]
        %v2547 = vld [vmem:[%s758 + $0x9c] sm:$0xf]
        %v2548 = vld [vmem:[%s758 + $0xa0] sm:$0xf]
        %v2549 = vld [vmem:[%s758 + $0xa4] sm:$0xf]
        %v2550 = vld [vmem:[%s758 + $0xa8] sm:$0xf]
        %v2551 = vld [vmem:[%s758 + $0xac] sm:$0xf]
        %v2552 = vld [vmem:[%s758 + $0xb0] sm:$0xf]
        %v2553 = vld [vmem:[%s758 + $0xb4] sm:$0xf]
        %v2554 = vld [vmem:[%s758 + $0xb8] sm:$0xf]
        %v2555 = vld [vmem:[%s758 + $0xbc] sm:$0xf]
        %v2556 = vld [vmem:[%s758 + $0xc0] sm:$0xf]
        %v2557 = vld [vmem:[%s758 + $0xc4] sm:$0xf]
        %v2558 = vld [vmem:[%s758 + $0xc8] sm:$0xf]
        %v2559 = vld [vmem:[%s758 + $0xcc] sm:$0xf]
        %v2560 = vld [vmem:[%s758 + $0xd0] sm:$0xf]
        %v2561 = vld [vmem:[%s758 + $0xd4] sm:$0xf]
        %v2562 = vld [vmem:[%s758 + $0xd8] sm:$0xf]
        %v2563 = vld [vmem:[%s758 + $0xdc] sm:$0xf]
        %v2564 = vld [vmem:[%s758 + $0xe0] sm:$0xf]
        %v2565 = vld [vmem:[%s758 + $0xe4] sm:$0xf]
        %v2566 = vld [vmem:[%s758 + $0xe8] sm:$0xf]
        %v2567 = vld [vmem:[%s758 + $0xec] sm:$0xf]
        %v2568 = vld [vmem:[%s758 + $0xf0] sm:$0xf]
        %v2569 = vld [vmem:[%s758 + $0xf4] sm:$0xf]
        %v2570 = vld [vmem:[%s758 + $0xf8] sm:$0xf]
        %v2571 = vld [vmem:[%s758 + $0xfc] sm:$0xf]
        %v2572 = vld [vmem:[%s871] sm:$0x1]
        %v2574 = vperm.slane %v2572, 0
        %v2640 = vunpack.c.l.b16 %v2508
        %v2641 = vunpack.c.l.b16 %v2509
        %v2642 = vunpack.c.l.b16 %v2510
        %v2643 = vunpack.c.l.b16 %v2511
        %v2644 = vunpack.c.l.b16 %v2512
        %v2645 = vunpack.c.l.b16 %v2513
        %v2646 = vunpack.c.l.b16 %v2514
        %v2647 = vunpack.c.l.b16 %v2515
        %v2648 = vunpack.c.l.b16 %v2516
        %v2649 = vunpack.c.l.b16 %v2517
        %v2650 = vunpack.c.l.b16 %v2518
        %v2651 = vunpack.c.l.b16 %v2519
        %v2652 = vunpack.c.l.b16 %v2520
        %v2653 = vunpack.c.l.b16 %v2521
        %v2654 = vunpack.c.l.b16 %v2522
        %v2655 = vunpack.c.l.b16 %v2523
        %v2656 = vunpack.c.l.b16 %v2524
        %v2657 = vunpack.c.l.b16 %v2525
        %v2658 = vunpack.c.l.b16 %v2526
        %v2659 = vunpack.c.l.b16 %v2527
        %v2660 = vunpack.c.l.b16 %v2528
        %v2661 = vunpack.c.l.b16 %v2529
        %v2662 = vunpack.c.l.b16 %v2530
        %v2663 = vunpack.c.l.b16 %v2531
        %v2664 = vunpack.c.l.b16 %v2532
        %v2665 = vunpack.c.l.b16 %v2533
        %v2666 = vunpack.c.l.b16 %v2534
        %v2667 = vunpack.c.l.b16 %v2535
        %v2668 = vunpack.c.l.b16 %v2536
        %v2669 = vunpack.c.l.b16 %v2537
        %v2670 = vunpack.c.l.b16 %v2538
        %v2671 = vunpack.c.l.b16 %v2539
        %v2672 = vunpack.c.l.b16 %v2540
        %v2673 = vunpack.c.l.b16 %v2541
        %v2674 = vunpack.c.l.b16 %v2542
        %v2675 = vunpack.c.l.b16 %v2543
        %v2676 = vunpack.c.l.b16 %v2544
        %v2677 = vunpack.c.l.b16 %v2545
        %v2678 = vunpack.c.l.b16 %v2546
        %v2679 = vunpack.c.l.b16 %v2547
        %v2680 = vunpack.c.l.b16 %v2548
        %v2681 = vunpack.c.l.b16 %v2549
        %v2682 = vunpack.c.l.b16 %v2550
        %v2683 = vunpack.c.l.b16 %v2551
        %v2684 = vunpack.c.l.b16 %v2552
        %v2685 = vunpack.c.l.b16 %v2553
        %v2686 = vunpack.c.l.b16 %v2554
        %v2687 = vunpack.c.l.b16 %v2555
        %v2688 = vunpack.c.l.b16 %v2556
        %v2689 = vunpack.c.l.b16 %v2557
        %v2690 = vunpack.c.l.b16 %v2558
        %v2691 = vunpack.c.l.b16 %v2559
        %v2692 = vunpack.c.l.b16 %v2560
        %v2693 = vunpack.c.l.b16 %v2561
        %v2694 = vunpack.c.l.b16 %v2562
        %v2695 = vunpack.c.l.b16 %v2563
        %v2696 = vunpack.c.l.b16 %v2564
        %v2697 = vunpack.c.l.b16 %v2565
        %v2698 = vunpack.c.l.b16 %v2566
        %v2699 = vunpack.c.l.b16 %v2567
        %v2700 = vunpack.c.l.b16 %v2568
        %v2701 = vunpack.c.l.b16 %v2569
        %v2702 = vunpack.c.l.b16 %v2570
        %v2703 = vunpack.c.l.b16 %v2571
        %v2704 = vpack.c.b16 %v2641, %v2640
        %v2705 = vpack.c.b16 %v2643, %v2642
        %v2706 = vpack.c.b16 %v2645, %v2644
        %v2707 = vpack.c.b16 %v2647, %v2646
        %v2708 = vpack.c.b16 %v2649, %v2648
        %v2709 = vpack.c.b16 %v2651, %v2650
        %v2710 = vpack.c.b16 %v2653, %v2652
        %v2711 = vpack.c.b16 %v2655, %v2654
        %v2712 = vpack.c.b16 %v2657, %v2656
        %v2713 = vpack.c.b16 %v2659, %v2658
        %v2714 = vpack.c.b16 %v2661, %v2660
        %v2715 = vpack.c.b16 %v2663, %v2662
        %v2716 = vpack.c.b16 %v2665, %v2664
        %v2717 = vpack.c.b16 %v2667, %v2666
        %v2718 = vpack.c.b16 %v2669, %v2668
        %v2719 = vpack.c.b16 %v2671, %v2670
        %v2720 = vpack.c.b16 %v2673, %v2672
        %v2721 = vpack.c.b16 %v2675, %v2674
        %v2722 = vpack.c.b16 %v2677, %v2676
        %v2723 = vpack.c.b16 %v2679, %v2678
        %v2724 = vpack.c.b16 %v2681, %v2680
        %v2725 = vpack.c.b16 %v2683, %v2682
        %v2726 = vpack.c.b16 %v2685, %v2684
        %v2727 = vpack.c.b16 %v2687, %v2686
        %v2728 = vpack.c.b16 %v2689, %v2688
        %v2729 = vpack.c.b16 %v2691, %v2690
        %v2730 = vpack.c.b16 %v2693, %v2692
        %v2731 = vpack.c.b16 %v2695, %v2694
        %v2732 = vpack.c.b16 %v2697, %v2696
        %v2733 = vpack.c.b16 %v2699, %v2698
        %v2734 = vpack.c.b16 %v2701, %v2700
        %v2735 = vpack.c.b16 %v2703, %v2702
        %2768 = vmatpush.bf16.msra.mxu0 %v2711
        %2769 = vmatpush.bf16.msra.mxu0 %v2710
        %2770 = vmatpush.bf16.msra.mxu0 %v2709
        %2771 = vmatpush.bf16.msra.mxu0 %v2708
        %2772 = vmatpush.bf16.msra.mxu0 %v2707
        %2773 = vmatpush.bf16.msra.mxu0 %v2706
        %2774 = vmatpush.bf16.msra.mxu0 %v2705
        %2775 = vmatpush.bf16.msra.mxu0 %v2704
        %2776 = vmatmul.bf16.gmra.mxu0 %v2504
        %v2777 = vpop.f32.mrf.mxu0
        %v2778 = vadd.f32 %v2574, %v2777
        %v2779 = vpop.f32.mrf.mxu0
        %v2780 = vadd.f32 %v2574, %v2779
        %2781 = vdwg.mxu0
        %2782 = vmatpush.bf16.msra.mxu0 %v2719
        %2783 = vmatpush.bf16.msra.mxu0 %v2718
        %2784 = vmatpush.bf16.msra.mxu0 %v2717
        %2785 = vmatpush.bf16.msra.mxu0 %v2716
        %2786 = vmatpush.bf16.msra.mxu0 %v2715
        %2787 = vmatpush.bf16.msra.mxu0 %v2714
        %2788 = vmatpush.bf16.msra.mxu0 %v2713
        %2789 = vmatpush.bf16.msra.mxu0 %v2712
        %2790 = vmatmul.bf16.gmra.mxu0 %v2505
        %v2791 = vpop.f32.mrf.mxu0
        %v2792 = vadd.f32 %v2778, %v2791
        %v2793 = vpop.f32.mrf.mxu0
        %v2794 = vadd.f32 %v2780, %v2793
        %2795 = vdwg.mxu0
        %2796 = vmatpush.bf16.msra.mxu0 %v2727
        %2797 = vmatpush.bf16.msra.mxu0 %v2726
        %2798 = vmatpush.bf16.msra.mxu0 %v2725
        %2799 = vmatpush.bf16.msra.mxu0 %v2724
        %2800 = vmatpush.bf16.msra.mxu0 %v2723
        %2801 = vmatpush.bf16.msra.mxu0 %v2722
        %2802 = vmatpush.bf16.msra.mxu0 %v2721
        %2803 = vmatpush.bf16.msra.mxu0 %v2720
        %2804 = vmatmul.bf16.gmra.mxu0 %v2506
        %v2805 = vpop.f32.mrf.mxu0
        %v2806 = vadd.f32 %v2792, %v2805
        %v2807 = vpop.f32.mrf.mxu0
        %v2808 = vadd.f32 %v2794, %v2807
        %2809 = vdwg.mxu0
        %2810 = vmatpush.bf16.msra.mxu0 %v2735
        %2811 = vmatpush.bf16.msra.mxu0 %v2734
        %2812 = vmatpush.bf16.msra.mxu0 %v2733
        %2813 = vmatpush.bf16.msra.mxu0 %v2732
        %2814 = vmatpush.bf16.msra.mxu0 %v2731
        %2815 = vmatpush.bf16.msra.mxu0 %v2730
        %2816 = vmatpush.bf16.msra.mxu0 %v2729
        %2817 = vmatpush.bf16.msra.mxu0 %v2728
        %2818 = vmatmul.bf16.gmra.mxu0 %v2507
        %v2819 = vpop.f32.mrf.mxu0
        %v2820 = vadd.f32 %v2806, %v2819
        %v2821 = vpop.f32.mrf.mxu0
        %v2822 = vadd.f32 %v2808, %v2821
        %2823 = vdwg.mxu0
        %v2824 = vadd.f32 %v2171, %v2820
        %v2825 = vadd.f32 %v2172, %v2822
        %v2826 = vld [vmem:[%s874] sm:$0x1]
        %v2827 = vld [vmem:[%s877] sm:$0x1]
        %2828 = vadd.xlane.f32.xlu0 %v2824
        %v2829 = vpop.xlane.xlu0 %2828
        %2830 = vadd.xlane.f32.xlu0 %v2825
        %v2831 = vpop.xlane.xlu0 %2830
        %v2832 = vmul.f32 %v2829, %v2126
        %v2833 = vmul.f32 %v2831, %v2126
        %v2834 = vsub.f32 %v2824, %v2832
        %v2835 = vsub.f32 %v2825, %v2833
        %v2836 = vmul.f32 %v2834, %v2834
        %v2837 = vmul.f32 %v2835, %v2835
        %2838 = vadd.xlane.f32.xlu0 %v2836
        %v2839 = vpop.xlane.xlu0 %2838
        %2840 = vadd.xlane.f32.xlu0 %v2837
        %v2841 = vpop.xlane.xlu0 %2840
        %v2842 = vmul.f32 %v2839, %v2126
        %v2843 = vmul.f32 %v2841, %v2126
        %v2844 = vadd.f32 %v2842, 1e-12
        %v2845 = vadd.f32 %v2843, 1e-12
        %v2846 = vrsqrt.pop %v2844
        %v2847 = vmul.f32 %v2846, %v2844
        %v2848 = vmul.f32 %v2847, %v2846
        %v2849 = vmul.f32 0.5, %v2848
        %v2850 = vsub.f32 1.5, %v2849
        %v2851 = vmul.f32 %v2846, %v2850
        %vm2852 = vweird.f32 %v2844
        %vm2853 = vweird.f32 %v2846
        %vm2854 = vmor %vm2852, %vm2853
        %v2855 = vsel %vm2854, %v2846, %v2851
        %v2856 = vrsqrt.pop %v2845
        %v2857 = vmul.f32 %v2856, %v2845
        %v2858 = vmul.f32 %v2857, %v2856
        %v2859 = vmul.f32 0.5, %v2858
        %v2860 = vsub.f32 1.5, %v2859
        %v2861 = vmul.f32 %v2856, %v2860
        %vm2862 = vweird.f32 %v2845
        %vm2863 = vweird.f32 %v2856
        %vm2864 = vmor %vm2862, %vm2863
        %v2865 = vsel %vm2864, %v2856, %v2861
        %v2866 = vmul.f32 %v2834, %v2855
        %v2867 = vmul.f32 %v2835, %v2865
        %v2869 = vperm.slane %v2826, 0
        %v2871 = vmul.f32 %v2866, %v2869
        %v2872 = vmul.f32 %v2867, %v2869
        %v2874 = vperm.slane %v2827, 0
        %v2876 = vadd.f32 %v2871, %v2874
        %v2877 = vadd.f32 %v2872, %v2874
        %2878 = vst [vmem:[#allocation2] sm:$0xff] %v2876
        %2879 = vst [vmem:[#allocation2 + $0x8] sm:$0xff] %v2877
        %p2880 = scmp.eq.s32.totalorder %s40, 7
        // Predicated region
        $region121: #{box_score_generator_forward.1} parent=99 // pred_check
          %p2881 = pneg %p2880
        $region122: #{box_score_generator_forward.1} parent=99 // pred_check_branch
          %2883 = sbr.rel (%p2881) target = $region124
        $region123: #{box_score_generator_forward.1} parent=99 // pred_region
          %v2884 = vpack.c.bf16 %v2877, %v2876
          %v2885 = vld [vmem:[%s18] sm:$0xf]
          %v2886 = vld [vmem:[%s18 + $0x4] sm:$0xf]
          %v2887 = vld [vmem:[%s18 + $0x8] sm:$0xf]
          %v2888 = vld [vmem:[%s18 + $0xc] sm:$0xf]
          %v2889 = vld [vmem:[%s18 + $0x10] sm:$0xf]
          %v2890 = vld [vmem:[%s18 + $0x14] sm:$0xf]
          %v2891 = vld [vmem:[%s18 + $0x18] sm:$0xf]
          %v2892 = vld [vmem:[%s18 + $0x1c] sm:$0xf]
          %v2893 = vld [vmem:[%s18 + $0x20] sm:$0xf]
          %v2894 = vld [vmem:[%s18 + $0x24] sm:$0xf]
          %v2895 = vld [vmem:[%s18 + $0x28] sm:$0xf]
          %v2896 = vld [vmem:[%s18 + $0x2c] sm:$0xf]
          %v2897 = vld [vmem:[%s18 + $0x30] sm:$0xf]
          %v2898 = vld [vmem:[%s18 + $0x34] sm:$0xf]
          %v2899 = vld [vmem:[%s18 + $0x38] sm:$0xf]
          %v2900 = vld [vmem:[%s18 + $0x3c] sm:$0xf]
          %v2901 = vld [vmem:[%s19] sm:$0x1]
          %v2903 = vperm.slane %v2901, 0
          %v2921 = vunpack.c.l.b16 %v2885
          %v2922 = vunpack.c.l.b16 %v2886
          %v2923 = vunpack.c.l.b16 %v2887
          %v2924 = vunpack.c.l.b16 %v2888
          %v2925 = vunpack.c.l.b16 %v2889
          %v2926 = vunpack.c.l.b16 %v2890
          %v2927 = vunpack.c.l.b16 %v2891
          %v2928 = vunpack.c.l.b16 %v2892
          %v2929 = vunpack.c.l.b16 %v2893
          %v2930 = vunpack.c.l.b16 %v2894
          %v2931 = vunpack.c.l.b16 %v2895
          %v2932 = vunpack.c.l.b16 %v2896
          %v2933 = vunpack.c.l.b16 %v2897
          %v2934 = vunpack.c.l.b16 %v2898
          %v2935 = vunpack.c.l.b16 %v2899
          %v2936 = vunpack.c.l.b16 %v2900
          %v2937 = vpack.c.b16 %v2922, %v2921
          %v2938 = vpack.c.b16 %v2924, %v2923
          %v2939 = vpack.c.b16 %v2926, %v2925
          %v2940 = vpack.c.b16 %v2928, %v2927
          %v2941 = vpack.c.b16 %v2930, %v2929
          %v2942 = vpack.c.b16 %v2932, %v2931
          %v2943 = vpack.c.b16 %v2934, %v2933
          %v2944 = vpack.c.b16 %v2936, %v2935
          %2953 = vmatpush.bf16.msra.mxu0 %v2944
          %2954 = vmatpush.bf16.msra.mxu0 %v2943
          %2955 = vmatpush.bf16.msra.mxu0 %v2942
          %2956 = vmatpush.bf16.msra.mxu0 %v2941
          %2957 = vmatpush.bf16.msra.mxu0 %v2940
          %2958 = vmatpush.bf16.msra.mxu0 %v2939
          %2959 = vmatpush.bf16.msra.mxu0 %v2938
          %2960 = vmatpush.bf16.msra.mxu0 %v2937
          %2961 = vmatmul.bf16.gmra.mxu0 %v2884
          %v2962 = vpop.f32.mrf.mxu0
          %v2963 = vadd.f32 %v2903, %v2962
          %v2964 = vpop.f32.mrf.mxu0
          %v2965 = vadd.f32 %v2903, %v2964
          %2966 = vdwg.mxu0
          %2967 = vst [vmem:[%s20] sm:$0xff] %v2963
          %2968 = vst [vmem:[%s20 + $0x8] sm:$0xff] %v2965
        $region124: #{box_score_generator_forward.1} parent=99 // pred_fallthru
          _
        // Predicated region
        $region125: #{box_score_generator_forward.1} parent=99 // pred_check
          %p2969 = pneg %p533
        $region126: #{box_score_generator_forward.1} parent=99 // pred_check_branch
          %2971 = sbr.rel (%p2969) target = $region128
        $region127: #{box_score_generator_forward.1} parent=99 // pred_region
          _
        $region128: #{box_score_generator_forward.1} parent=99 // pred_fallthru
          _
        // Predicated region
        $region129: #{box_score_generator_forward.1} parent=99 // pred_check
          %p2972 = pneg %p533
        $region130: #{box_score_generator_forward.1} parent=99 // pred_check_branch
          %2974 = sbr.rel (%p2972) target = $region132
        $region131: #{box_score_generator_forward.1} parent=99 // pred_region
          _
        $region132: #{box_score_generator_forward.1} parent=99 // pred_fallthru
          _
      $region100: #{box_score_generator_forward.1} parent=5 // pred_fallthru
        _
      %p2975 = scmp.le.s32.totalorder 2, %s35
      // Predicated region
      $region133: #{box_score_generator_forward.1} parent=5 // pred_check
        %p2976 = pneg %p2975
      $region134: #{box_score_generator_forward.1} parent=5 // pred_check_branch
        %2978 = sbr.rel (%p2976) target = $region136
      $region135: #{box_score_generator_forward.1} parent=5 // pred_region
        %s2979 = ssub.s32 %s35, 2
      $region136: #{box_score_generator_forward.1} parent=5 // pred_fallthru
        _
    $region6: #{box_score_generator_forward.1} parent=1 // loop_footer
      %s39 = sadd.s32 1, %s35
    $region7: #{box_score_generator_forward.1} parent=1 // loop_footer_branch
      %34 = sbr.rel target = $region3
    $region8: #{box_score_generator_forward.1} parent=1 // loop_exit
      _
    %2980 = vsyncpa [#allocation4], 1
    %s2981 = scalar_lea.sflag [#allocation4], 1
    %2982 = vsyncpa %s2981, 1
    %2983 = vsyncpa [#allocation6], 1
    %s2984 = scalar_lea.sflag [#allocation6], 1
    %2985 = vsyncpa %s2984, 1
    %2986 = vsyncpa [#allocation9], 1
    %s2987 = scalar_lea.sflag [#allocation9], 1
    %2988 = vsyncpa %s2987, 1

</llo_original>
